<compile_context>
chip_gen: v7x
topology: tpu7x:2x2x1
jax: 0.10.0
libtpu: 0.0.40
codegen_flags: <defaults>
</compile_context>

<pallas_src>
import functools
import math

import jax
import jax.numpy as jnp
from jax.experimental import pallas as pl
from jax.experimental.pallas import tpu as pltpu


# ----------------------------- in-kernel helpers -----------------------------

def _layer_norm(x, gamma, beta, eps=1e-5):
    mean = jnp.mean(x, axis=-1, keepdims=True)
    var = jnp.mean((x - mean) ** 2, axis=-1, keepdims=True)
    return (x - mean) * jax.lax.rsqrt(var + eps) * gamma + beta


def _gelu_tanh(x):
    # TODO(synk): PyTorch nn.GELU() default is the exact erf form; erf has no
    # guaranteed Mosaic lowering, so the tanh approximation is used (|diff| ~1e-3).
    c = math.sqrt(2.0 / math.pi)
    return 0.5 * x * (1.0 + jnp.tanh(c * (x + 0.044715 * x * x * x)))


# --------------------------------- kernel ------------------------------------

def encoder_kernel(x_ref, wqkv_ref, wo_ref, g1_ref, b1_ref, g2_ref, b2_ref,
                   w1_ref, bm1_ref, w2_ref, bm2_ref, o_ref,
                   *, num_heads, key_dim):
    BT, S, E = x_ref.shape                         # batch-tile, seq, embedding
    x = x_ref[...].reshape(BT * S, E)              # fold batch tile into M rows

    # dropout1 identity (eval); LayerNorm1
    ln1 = _layer_norm(x, g1_ref[0], b1_ref[0])     # (BT*S, E)

    # ONE fused, lane-dense QKV projection. Columns: [Q_all | K_all | V_all],
    # each E wide with per-head kd columns contiguous (head-major).
    qkv = jnp.dot(ln1, wqkv_ref[...], preferred_element_type=jnp.float32)  # (BT*S, 3E)
    q_all = qkv[:, :E]                             # lane-dense 128-wide slabs
    k_all = qkv[:, E:2 * E]
    v_all = qkv[:, 2 * E:]

    inv_sqrt_kd = 1.0 / math.sqrt(key_dim)
    ctx_rows = []
    for bt in range(BT):                           # BT is 1 or 2: tiny static loop
        rows = slice(bt * S, (bt + 1) * S)
        qh = jnp.swapaxes(q_all[rows].reshape(S, num_heads, key_dim), 0, 1)  # (H,S,kd)
        kh = jnp.swapaxes(k_all[rows].reshape(S, num_heads, key_dim), 0, 1)
        vh = jnp.swapaxes(v_all[rows].reshape(S, num_heads, key_dim), 0, 1)

        # Head-batched scores: no explicit k.T, one batched contraction.
        scores = jnp.einsum("hqd,hkd->hqk", qh, kh,
                            preferred_element_type=jnp.float32) * inv_sqrt_kd
        # PyTorch F.softmax(dim=1) on (B, S_q, S_k) normalizes over the *query*
        # axis, which is axis 1 of this (H, S_q, S_k) tile.
        s = scores - jnp.max(scores, axis=1, keepdims=True)
        p = jnp.exp(s)
        attn = p * pl.reciprocal(jnp.sum(p, axis=1, keepdims=True), approx=True)

        ctx = jnp.einsum("hqk,hkd->hqd", attn, vh,
                         preferred_element_type=jnp.float32)       # (H, S, kd)
        # (S, H, kd) -> (S, E) reshape IS the head concat (head-major columns).
        ctx_rows.append(jnp.swapaxes(ctx, 0, 1).reshape(S, E))

    z = ctx_rows[0] if BT == 1 else jnp.concatenate(ctx_rows, axis=0)  # (BT*S, E)

    msa = jnp.dot(z, wo_ref[...], preferred_element_type=jnp.float32)

    # dropout2 identity; first residual
    res = x + msa
    ln2 = _layer_norm(res, g2_ref[0], b2_ref[0])

    h1 = _gelu_tanh(jnp.dot(ln2, w1_ref[...],
                            preferred_element_type=jnp.float32) + bm1_ref[0])
    mlp = jnp.dot(h1, w2_ref[...], preferred_element_type=jnp.float32) + bm2_ref[0]

    # dropout3 identity; second residual
    o_ref[...] = (res + mlp).reshape(BT, S, E).astype(o_ref.dtype)


# --------------------------------- wrapper ------------------------------------

def _fuse_qkv(w_qkv, num_heads, key_dim):
    """(H, E, 3*kd) per-head [q|k|v] -> (E, 3*E) as [Wq_all | Wk_all | Wv_all]."""
    E = w_qkv.shape[1]
    hk = num_heads * key_dim
    wq = jnp.transpose(w_qkv[:, :, :key_dim], (1, 0, 2)).reshape(E, hk)
    wk = jnp.transpose(w_qkv[:, :, key_dim:2 * key_dim], (1, 0, 2)).reshape(E, hk)
    wv = jnp.transpose(w_qkv[:, :, 2 * key_dim:], (1, 0, 2)).reshape(E, hk)
    return jnp.concatenate([wq, wk, wv], axis=1)


def _pick_batch_tile(batch):
    """Fold the batch on single-TC chips (v5e/v6e); keep a parallel batch grid
    on dual-TensorCore chips (v7x / v5p / v4) so both cores get work."""
    try:
        kind = jax.devices()[0].device_kind.lower()
    except Exception:
        kind = ""
    dual_tc = any(tok in kind for tok in ("v7", "7x", "v5p", "v4"))
    if dual_tc and batch % 2 == 0:
        return batch // 2
    return batch


def transformer_encoder(x, params, *, num_heads, key_dim, batch_tile=None):
    B, S, E = x.shape
    Hm = params["w_mlp1"].shape[1]
    assert E == num_heads * key_dim

    w_fused = _fuse_qkv(params["w_qkv"], num_heads, key_dim)

    if batch_tile is None:
        batch_tile = _pick_batch_tile(B)
    assert B % batch_tile == 0
    grid = (B // batch_tile,)

    kernel = functools.partial(encoder_kernel, num_heads=num_heads, key_dim=key_dim)

    def full(shape):
        # whole-array block, replicated across the batch grid (stays VMEM-resident)
        return pl.BlockSpec(shape, lambda b: (0,) * len(shape))

    flops = int(2 * B * S * E * (3 * E)                 # fused QKV projection
                + 4 * B * num_heads * S * S * key_dim   # scores + context
                + 2 * B * S * E * E                     # output projection
                + 4 * B * S * E * Hm)                   # MLP (both layers)
    transcendentals = int(B * num_heads * S * S         # exp
                          + B * S * Hm                  # tanh (GELU)
                          + B * num_heads * S + 2 * B * S)  # recip + rsqrt
    bytes_accessed = int(4 * (2 * x.size + w_fused.size + params["w_o"].size
                              + params["w_mlp1"].size + params["w_mlp2"].size
                              + params["b_mlp1"].size + params["b_mlp2"].size
                              + 4 * E))

    return pl.pallas_call(
        kernel,
        out_shape=jax.ShapeDtypeStruct((B, S, E), x.dtype),
        grid=grid,
        in_specs=[
            pl.BlockSpec((batch_tile, S, E), lambda b: (b, 0, 0)),  # x
            full((E, 3 * E)),                                       # fused QKV weight
            full((E, E)),                                           # MSA output proj
            full((1, E)), full((1, E)),                             # LN1 gamma, beta
            full((1, E)), full((1, E)),                             # LN2 gamma, beta
            full((E, Hm)), full((1, Hm)),                           # MLP W1, b1
            full((Hm, E)), full((1, E)),                            # MLP W2, b2
        ],
        out_specs=pl.BlockSpec((batch_tile, S, E), lambda b: (b, 0, 0)),
        compiler_params=pltpu.CompilerParams(
            dimension_semantics=("parallel",)),
        cost_estimate=pl.CostEstimate(
            flops=flops, transcendentals=transcendentals,
            bytes_accessed=bytes_accessed),
    )(x, w_fused, params["w_o"], params["g1"], params["b1"],
      params["g2"], params["b2"], params["w_mlp1"], params["b_mlp1"],
      params["w_mlp2"], params["b_mlp2"])


# ----------------------------- pure-JAX reference ------------------------------

def reference_encoder(x, params, *, num_heads, key_dim):
    ln1 = _layer_norm(x, params["g1"][0], params["b1"][0])
    heads = []
    for h in range(num_heads):
        qkv = ln1 @ params["w_qkv"][h]
        q, k, v = (qkv[..., :key_dim],
                   qkv[..., key_dim:2 * key_dim],
                   qkv[..., 2 * key_dim:])
        scores = jnp.einsum("bqd,bkd->bqk", q, k) / math.sqrt(key_dim)
        attn = jax.nn.softmax(scores, axis=1)      # matches F.softmax(dim=1)
        heads.append(jnp.einsum("bqk,bkd->bqd", attn, v))
    z = jnp.concatenate(heads, axis=-1)
    msa = z @ params["w_o"]
    res = x + msa
    ln2 = _layer_norm(res, params["g2"][0], params["b2"][0])
    h1 = _gelu_tanh(ln2 @ params["w_mlp1"] + params["b_mlp1"][0])
    mlp = h1 @ params["w_mlp2"] + params["b_mlp2"][0]
    return res + mlp


# ----------------------------------- main --------------------------------------

if __name__ == "__main__":
    B, S, E = 2, 8, 128
    num_heads, key_dim, hidden = 4, 32, 256     # E = num_heads * key_dim

    key = jax.random.PRNGKey(0)
    ks = jax.random.split(key, 8)
    scale = 0.05                                 # deterministic synthetic init

    params = {
        "w_qkv":  scale * jax.random.normal(ks[0], (num_heads, E, 3 * key_dim), jnp.float32),
        "w_o":    scale * jax.random.normal(ks[1], (E, E), jnp.float32),
        "g1":     jnp.ones((1, E), jnp.float32),
        "b1":     jnp.zeros((1, E), jnp.float32),
        "g2":     jnp.ones((1, E), jnp.float32),
        "b2":     jnp.zeros((1, E), jnp.float32),
        "w_mlp1": scale * jax.random.normal(ks[2], (E, hidden), jnp.float32),
        "b_mlp1": scale * jax.random.normal(ks[3], (1, hidden), jnp.float32),
        "w_mlp2": scale * jax.random.normal(ks[4], (hidden, E), jnp.float32),
        "b_mlp2": scale * jax.random.normal(ks[5], (1, E), jnp.float32),
    }
    x = jax.random.normal(ks[6], (B, S, E), jnp.float32)

    out = transformer_encoder(x, params, num_heads=num_heads, key_dim=key_dim)
    out = jax.block_until_ready(out)

    ref = reference_encoder(x, params, num_heads=num_heads, key_dim=key_dim)
    assert out.shape == (B, S, E)
    # Tolerance 2e-3: everything is f32 except the EUP approximate reciprocal
    # used for the softmax normalization (pl.reciprocal(approx=True)).
    assert jnp.allclose(out, ref, rtol=2e-3, atol=2e-3), \
        f"max abs diff {jnp.max(jnp.abs(out - ref))}"

    print("KERNEL_OK")
</pallas_src>

<mosaic_0001>
module attributes {stable_mosaic.version = 11 : i64} {
  func.func @encoder_kernel(%arg0: i32, %arg1: memref<2x8x128xf32, #tpu.memory_space<vmem>>, %arg2: memref<128x384xf32, #tpu.memory_space<vmem>>, %arg3: memref<128x128xf32, #tpu.memory_space<vmem>>, %arg4: memref<1x128xf32, #tpu.memory_space<vmem>>, %arg5: memref<1x128xf32, #tpu.memory_space<vmem>>, %arg6: memref<1x128xf32, #tpu.memory_space<vmem>>, %arg7: memref<1x128xf32, #tpu.memory_space<vmem>>, %arg8: memref<128x256xf32, #tpu.memory_space<vmem>>, %arg9: memref<1x256xf32, #tpu.memory_space<vmem>>, %arg10: memref<256x128xf32, #tpu.memory_space<vmem>>, %arg11: memref<1x128xf32, #tpu.memory_space<vmem>>, %arg12: memref<2x8x128xf32, #tpu.memory_space<vmem>>) attributes {dimension_semantics = [#tpu.dimension_semantics<parallel>], iteration_bounds = array<i64: 1>, scalar_prefetch = 0 : i64, scratch_operands = 0 : i64, tpu.core_type = #tpu.core_type<tc>, window_params = [{transform_indices = @transform_0, window_bounds = array<i64: 2, 8, 128>}, {pipeline_mode = #tpu.pipeline_mode<synchronous>, transform_indices = @transform_1, window_bounds = array<i64: 128, 384>}, {pipeline_mode = #tpu.pipeline_mode<synchronous>, transform_indices = @transform_2, window_bounds = array<i64: 128, 128>}, {pipeline_mode = #tpu.pipeline_mode<synchronous>, transform_indices = @transform_3, window_bounds = array<i64: 1, 128>}, {pipeline_mode = #tpu.pipeline_mode<synchronous>, transform_indices = @transform_4, window_bounds = array<i64: 1, 128>}, {pipeline_mode = #tpu.pipeline_mode<synchronous>, transform_indices = @transform_5, window_bounds = array<i64: 1, 128>}, {pipeline_mode = #tpu.pipeline_mode<synchronous>, transform_indices = @transform_6, window_bounds = array<i64: 1, 128>}, {pipeline_mode = #tpu.pipeline_mode<synchronous>, transform_indices = @transform_7, window_bounds = array<i64: 128, 256>}, {pipeline_mode = #tpu.pipeline_mode<synchronous>, transform_indices = @transform_8, window_bounds = array<i64: 1, 256>}, {pipeline_mode = #tpu.pipeline_mode<synchronous>, transform_indices = @transform_9, window_bounds = array<i64: 256, 128>}, {pipeline_mode = #tpu.pipeline_mode<synchronous>, transform_indices = @transform_10, window_bounds = array<i64: 1, 128>}, {transform_indices = @transform_11, window_bounds = array<i64: 2, 8, 128>}]} {
    %c0 = arith.constant 0 : index
    %c0_0 = arith.constant 0 : index
    %c0_1 = arith.constant 0 : index
    %0 = vector.load %arg1[%c0, %c0_0, %c0_1] : memref<2x8x128xf32, #tpu.memory_space<vmem>>, vector<2x8x128xf32>
    %1 = vector.shape_cast %0 : vector<2x8x128xf32> to vector<16x128xf32>
    %c0_2 = arith.constant 0 : index
    %c0_3 = arith.constant 0 : index
    %2 = vector.load %arg4[%c0_2, %c0_3] : memref<1x128xf32, #tpu.memory_space<vmem>>, vector<1x128xf32>
    %3 = vector.shape_cast %2 : vector<1x128xf32> to vector<128xf32>
    %c0_4 = arith.constant 0 : index
    %c0_5 = arith.constant 0 : index
    %4 = vector.load %arg5[%c0_4, %c0_5] : memref<1x128xf32, #tpu.memory_space<vmem>>, vector<1x128xf32>
    %5 = vector.shape_cast %4 : vector<1x128xf32> to vector<128xf32>
    %cst = arith.constant dense<0.000000e+00> : vector<16xf32>
    %6 = vector.multi_reduction <add>, %1, %cst [1] : vector<16x128xf32> to vector<16xf32>
    %7 = vector.shape_cast %6 : vector<16xf32> to vector<16x1xf32>
    %cst_6 = arith.constant 1.280000e+02 : f32
    %8 = vector.broadcast %cst_6 : f32 to vector<16x1xf32>
    %9 = arith.divf %7, %8 : vector<16x1xf32>
    %10 = vector.broadcast %9 : vector<16x1xf32> to vector<16x128xf32>
    %11 = arith.subf %1, %10 : vector<16x128xf32>
    %12 = arith.mulf %11, %11 : vector<16x128xf32>
    %cst_7 = arith.constant dense<0.000000e+00> : vector<16xf32>
    %13 = vector.multi_reduction <add>, %12, %cst_7 [1] : vector<16x128xf32> to vector<16xf32>
    %14 = vector.shape_cast %13 : vector<16xf32> to vector<16x1xf32>
    %cst_8 = arith.constant 1.280000e+02 : f32
    %15 = vector.broadcast %cst_8 : f32 to vector<16x1xf32>
    %16 = arith.divf %14, %15 : vector<16x1xf32>
    %17 = vector.broadcast %9 : vector<16x1xf32> to vector<16x128xf32>
    %18 = arith.subf %1, %17 : vector<16x128xf32>
    %cst_9 = arith.constant 9.99999974E-6 : f32
    %19 = vector.broadcast %cst_9 : f32 to vector<16x1xf32>
    %20 = arith.addf %16, %19 : vector<16x1xf32>
    %21 = math.rsqrt %20 : vector<16x1xf32>
    %22 = vector.broadcast %21 : vector<16x1xf32> to vector<16x128xf32>
    %23 = arith.mulf %18, %22 : vector<16x128xf32>
    %24 = vector.shape_cast %3 : vector<128xf32> to vector<1x128xf32>
    %25 = vector.broadcast %24 : vector<1x128xf32> to vector<16x128xf32>
    %26 = arith.mulf %23, %25 : vector<16x128xf32>
    %27 = vector.shape_cast %5 : vector<128xf32> to vector<1x128xf32>
    %28 = vector.broadcast %27 : vector<1x128xf32> to vector<16x128xf32>
    %29 = arith.addf %26, %28 : vector<16x128xf32>
    %c0_10 = arith.constant 0 : index
    %c0_11 = arith.constant 0 : index
    %30 = vector.load %arg2[%c0_10, %c0_11] : memref<128x384xf32, #tpu.memory_space<vmem>>, vector<128x384xf32>
    %cst_12 = arith.constant dense<0.000000e+00> : vector<16x384xf32>
    %31 = tpu.matmul %29, %30, %cst_12 {dimension_numbers = #tpu.dot_dimension_numbers<[1], [0], [0], [1], [0, 0, 1, 1], [], []>} : vector<16x128xf32>, vector<128x384xf32>, vector<16x384xf32> -> vector<16x384xf32>
    %32 = vector.extract_strided_slice %31 {offsets = [0, 0], sizes = [16, 128], strides = [1, 1]} : vector<16x384xf32> to vector<16x128xf32>
    %33 = vector.extract_strided_slice %31 {offsets = [0, 128], sizes = [16, 128], strides = [1, 1]} : vector<16x384xf32> to vector<16x128xf32>
    %34 = vector.extract_strided_slice %31 {offsets = [0, 256], sizes = [16, 128], strides = [1, 1]} : vector<16x384xf32> to vector<16x128xf32>
    %35 = vector.extract_strided_slice %32 {offsets = [0, 0], sizes = [8, 128], strides = [1, 1]} : vector<16x128xf32> to vector<8x128xf32>
    %36 = vector.shape_cast %35 : vector<8x128xf32> to vector<8x4x32xf32>
    %37 = tpu.transpose %36, [1, 0, 2] : vector<8x4x32xf32> -> vector<4x8x32xf32>
    %38 = vector.extract_strided_slice %33 {offsets = [0, 0], sizes = [8, 128], strides = [1, 1]} : vector<16x128xf32> to vector<8x128xf32>
    %39 = vector.shape_cast %38 : vector<8x128xf32> to vector<8x4x32xf32>
    %40 = tpu.transpose %39, [1, 0, 2] : vector<8x4x32xf32> -> vector<4x8x32xf32>
    %41 = vector.extract_strided_slice %34 {offsets = [0, 0], sizes = [8, 128], strides = [1, 1]} : vector<16x128xf32> to vector<8x128xf32>
    %42 = vector.shape_cast %41 : vector<8x128xf32> to vector<8x4x32xf32>
    %43 = tpu.transpose %42, [1, 0, 2] : vector<8x4x32xf32> -> vector<4x8x32xf32>
    "tpu.trace_start"() <{level = 10 : i32, message = "hqd,hkd->hqk"}> : () -> ()
    %cst_13 = arith.constant dense<0.000000e+00> : vector<4x8x8xf32>
    %44 = tpu.matmul %37, %40, %cst_13 {dimension_numbers = #tpu.dot_dimension_numbers<[2], [2], [1], [1], [0, 0, 0, 1, 1, 1], [0], [0]>} : vector<4x8x32xf32>, vector<4x8x32xf32>, vector<4x8x8xf32> -> vector<4x8x8xf32>
    "tpu.trace_stop"() : () -> ()
    %cst_14 = arith.constant 0.176776692 : f32
    %45 = vector.broadcast %cst_14 : f32 to vector<4x8x8xf32>
    %46 = arith.mulf %44, %45 : vector<4x8x8xf32>
    %cst_15 = arith.constant dense<0xFF800000> : vector<4x8xf32>
    %47 = vector.multi_reduction <maximumf>, %46, %cst_15 [1] : vector<4x8x8xf32> to vector<4x8xf32>
    %48 = vector.shape_cast %47 : vector<4x8xf32> to vector<4x1x8xf32>
    %49 = vector.broadcast %48 : vector<4x1x8xf32> to vector<4x8x8xf32>
    %50 = arith.subf %46, %49 : vector<4x8x8xf32>
    %51 = math.exp %50 : vector<4x8x8xf32>
    %cst_16 = arith.constant dense<0.000000e+00> : vector<4x8xf32>
    %52 = vector.multi_reduction <add>, %51, %cst_16 [1] : vector<4x8x8xf32> to vector<4x8xf32>
    %53 = vector.shape_cast %52 : vector<4x8xf32> to vector<4x1x8xf32>
    %54 = tpu.reciprocal %53 {approx = true} : vector<4x1x8xf32> -> vector<4x1x8xf32>
    %55 = vector.broadcast %54 : vector<4x1x8xf32> to vector<4x8x8xf32>
    %56 = arith.mulf %51, %55 : vector<4x8x8xf32>
    "tpu.trace_start"() <{level = 10 : i32, message = "hqk,hkd->hqd"}> : () -> ()
    %cst_17 = arith.constant dense<0.000000e+00> : vector<4x8x32xf32>
    %57 = tpu.matmul %56, %43, %cst_17 {dimension_numbers = #tpu.dot_dimension_numbers<[2], [1], [1], [2], [0, 0, 0, 1, 1, 2], [0], [0]>} : vector<4x8x8xf32>, vector<4x8x32xf32>, vector<4x8x32xf32> -> vector<4x8x32xf32>
    "tpu.trace_stop"() : () -> ()
    %58 = tpu.transpose %57, [1, 0, 2] : vector<4x8x32xf32> -> vector<8x4x32xf32>
    %59 = vector.shape_cast %58 : vector<8x4x32xf32> to vector<8x128xf32>
    %60 = vector.extract_strided_slice %32 {offsets = [8, 0], sizes = [8, 128], strides = [1, 1]} : vector<16x128xf32> to vector<8x128xf32>
    %61 = vector.shape_cast %60 : vector<8x128xf32> to vector<8x4x32xf32>
    %62 = tpu.transpose %61, [1, 0, 2] : vector<8x4x32xf32> -> vector<4x8x32xf32>
    %63 = vector.extract_strided_slice %33 {offsets = [8, 0], sizes = [8, 128], strides = [1, 1]} : vector<16x128xf32> to vector<8x128xf32>
    %64 = vector.shape_cast %63 : vector<8x128xf32> to vector<8x4x32xf32>
    %65 = tpu.transpose %64, [1, 0, 2] : vector<8x4x32xf32> -> vector<4x8x32xf32>
    %66 = vector.extract_strided_slice %34 {offsets = [8, 0], sizes = [8, 128], strides = [1, 1]} : vector<16x128xf32> to vector<8x128xf32>
    %67 = vector.shape_cast %66 : vector<8x128xf32> to vector<8x4x32xf32>
    %68 = tpu.transpose %67, [1, 0, 2] : vector<8x4x32xf32> -> vector<4x8x32xf32>
    "tpu.trace_start"() <{level = 10 : i32, message = "hqd,hkd->hqk"}> : () -> ()
    %cst_18 = arith.constant dense<0.000000e+00> : vector<4x8x8xf32>
    %69 = tpu.matmul %62, %65, %cst_18 {dimension_numbers = #tpu.dot_dimension_numbers<[2], [2], [1], [1], [0, 0, 0, 1, 1, 1], [0], [0]>} : vector<4x8x32xf32>, vector<4x8x32xf32>, vector<4x8x8xf32> -> vector<4x8x8xf32>
    "tpu.trace_stop"() : () -> ()
    %cst_19 = arith.constant 0.176776692 : f32
    %70 = vector.broadcast %cst_19 : f32 to vector<4x8x8xf32>
    %71 = arith.mulf %69, %70 : vector<4x8x8xf32>
    %cst_20 = arith.constant dense<0xFF800000> : vector<4x8xf32>
    %72 = vector.multi_reduction <maximumf>, %71, %cst_20 [1] : vector<4x8x8xf32> to vector<4x8xf32>
    %73 = vector.shape_cast %72 : vector<4x8xf32> to vector<4x1x8xf32>
    %74 = vector.broadcast %73 : vector<4x1x8xf32> to vector<4x8x8xf32>
    %75 = arith.subf %71, %74 : vector<4x8x8xf32>
    %76 = math.exp %75 : vector<4x8x8xf32>
    %cst_21 = arith.constant dense<0.000000e+00> : vector<4x8xf32>
    %77 = vector.multi_reduction <add>, %76, %cst_21 [1] : vector<4x8x8xf32> to vector<4x8xf32>
    %78 = vector.shape_cast %77 : vector<4x8xf32> to vector<4x1x8xf32>
    %79 = tpu.reciprocal %78 {approx = true} : vector<4x1x8xf32> -> vector<4x1x8xf32>
    %80 = vector.broadcast %79 : vector<4x1x8xf32> to vector<4x8x8xf32>
    %81 = arith.mulf %76, %80 : vector<4x8x8xf32>
    "tpu.trace_start"() <{level = 10 : i32, message = "hqk,hkd->hqd"}> : () -> ()
    %cst_22 = arith.constant dense<0.000000e+00> : vector<4x8x32xf32>
    %82 = tpu.matmul %81, %68, %cst_22 {dimension_numbers = #tpu.dot_dimension_numbers<[2], [1], [1], [2], [0, 0, 0, 1, 1, 2], [0], [0]>} : vector<4x8x8xf32>, vector<4x8x32xf32>, vector<4x8x32xf32> -> vector<4x8x32xf32>
    "tpu.trace_stop"() : () -> ()
    %83 = tpu.transpose %82, [1, 0, 2] : vector<4x8x32xf32> -> vector<8x4x32xf32>
    %84 = vector.shape_cast %83 : vector<8x4x32xf32> to vector<8x128xf32>
    %85 = tpu.concatenate %59, %84 in 0 : vector<8x128xf32>, vector<8x128xf32> -> vector<16x128xf32>
    %c0_23 = arith.constant 0 : index
    %c0_24 = arith.constant 0 : index
    %86 = vector.load %arg3[%c0_23, %c0_24] : memref<128x128xf32, #tpu.memory_space<vmem>>, vector<128x128xf32>
    %cst_25 = arith.constant dense<0.000000e+00> : vector<16x128xf32>
    %87 = tpu.matmul %85, %86, %cst_25 {dimension_numbers = #tpu.dot_dimension_numbers<[1], [0], [0], [1], [0, 0, 1, 1], [], []>} : vector<16x128xf32>, vector<128x128xf32>, vector<16x128xf32> -> vector<16x128xf32>
    %88 = arith.addf %1, %87 : vector<16x128xf32>
    %c0_26 = arith.constant 0 : index
    %c0_27 = arith.constant 0 : index
    %89 = vector.load %arg6[%c0_26, %c0_27] : memref<1x128xf32, #tpu.memory_space<vmem>>, vector<1x128xf32>
    %90 = vector.shape_cast %89 : vector<1x128xf32> to vector<128xf32>
    %c0_28 = arith.constant 0 : index
    %c0_29 = arith.constant 0 : index
    %91 = vector.load %arg7[%c0_28, %c0_29] : memref<1x128xf32, #tpu.memory_space<vmem>>, vector<1x128xf32>
    %92 = vector.shape_cast %91 : vector<1x128xf32> to vector<128xf32>
    %cst_30 = arith.constant dense<0.000000e+00> : vector<16xf32>
    %93 = vector.multi_reduction <add>, %88, %cst_30 [1] : vector<16x128xf32> to vector<16xf32>
    %94 = vector.shape_cast %93 : vector<16xf32> to vector<16x1xf32>
    %cst_31 = arith.constant 1.280000e+02 : f32
    %95 = vector.broadcast %cst_31 : f32 to vector<16x1xf32>
    %96 = arith.divf %94, %95 : vector<16x1xf32>
    %97 = vector.broadcast %96 : vector<16x1xf32> to vector<16x128xf32>
    %98 = arith.subf %88, %97 : vector<16x128xf32>
    %99 = arith.mulf %98, %98 : vector<16x128xf32>
    %cst_32 = arith.constant dense<0.000000e+00> : vector<16xf32>
    %100 = vector.multi_reduction <add>, %99, %cst_32 [1] : vector<16x128xf32> to vector<16xf32>
    %101 = vector.shape_cast %100 : vector<16xf32> to vector<16x1xf32>
    %cst_33 = arith.constant 1.280000e+02 : f32
    %102 = vector.broadcast %cst_33 : f32 to vector<16x1xf32>
    %103 = arith.divf %101, %102 : vector<16x1xf32>
    %104 = vector.broadcast %96 : vector<16x1xf32> to vector<16x128xf32>
    %105 = arith.subf %88, %104 : vector<16x128xf32>
    %cst_34 = arith.constant 9.99999974E-6 : f32
    %106 = vector.broadcast %cst_34 : f32 to vector<16x1xf32>
    %107 = arith.addf %103, %106 : vector<16x1xf32>
    %108 = math.rsqrt %107 : vector<16x1xf32>
    %109 = vector.broadcast %108 : vector<16x1xf32> to vector<16x128xf32>
    %110 = arith.mulf %105, %109 : vector<16x128xf32>
    %111 = vector.shape_cast %90 : vector<128xf32> to vector<1x128xf32>
    %112 = vector.broadcast %111 : vector<1x128xf32> to vector<16x128xf32>
    %113 = arith.mulf %110, %112 : vector<16x128xf32>
    %114 = vector.shape_cast %92 : vector<128xf32> to vector<1x128xf32>
    %115 = vector.broadcast %114 : vector<1x128xf32> to vector<16x128xf32>
    %116 = arith.addf %113, %115 : vector<16x128xf32>
    %c0_35 = arith.constant 0 : index
    %c0_36 = arith.constant 0 : index
    %117 = vector.load %arg8[%c0_35, %c0_36] : memref<128x256xf32, #tpu.memory_space<vmem>>, vector<128x256xf32>
    %cst_37 = arith.constant dense<0.000000e+00> : vector<16x256xf32>
    %118 = tpu.matmul %116, %117, %cst_37 {dimension_numbers = #tpu.dot_dimension_numbers<[1], [0], [0], [1], [0, 0, 1, 1], [], []>} : vector<16x128xf32>, vector<128x256xf32>, vector<16x256xf32> -> vector<16x256xf32>
    %c0_38 = arith.constant 0 : index
    %c0_39 = arith.constant 0 : index
    %119 = vector.load %arg9[%c0_38, %c0_39] : memref<1x256xf32, #tpu.memory_space<vmem>>, vector<1x256xf32>
    %120 = vector.shape_cast %119 : vector<1x256xf32> to vector<256xf32>
    %121 = vector.shape_cast %120 : vector<256xf32> to vector<1x256xf32>
    %122 = vector.broadcast %121 : vector<1x256xf32> to vector<16x256xf32>
    %123 = arith.addf %118, %122 : vector<16x256xf32>
    %cst_40 = arith.constant 5.000000e-01 : f32
    %124 = vector.broadcast %cst_40 : f32 to vector<16x256xf32>
    %125 = arith.mulf %124, %123 : vector<16x256xf32>
    %cst_41 = arith.constant 4.471500e-02 : f32
    %126 = vector.broadcast %cst_41 : f32 to vector<16x256xf32>
    %127 = arith.mulf %126, %123 : vector<16x256xf32>
    %128 = arith.mulf %127, %123 : vector<16x256xf32>
    %129 = arith.mulf %128, %123 : vector<16x256xf32>
    %130 = arith.addf %123, %129 : vector<16x256xf32>
    %cst_42 = arith.constant 0.797884583 : f32
    %131 = vector.broadcast %cst_42 : f32 to vector<16x256xf32>
    %132 = arith.mulf %131, %130 : vector<16x256xf32>
    %133 = math.tanh %132 : vector<16x256xf32>
    %cst_43 = arith.constant 1.000000e+00 : f32
    %134 = vector.broadcast %cst_43 : f32 to vector<16x256xf32>
    %135 = arith.addf %134, %133 : vector<16x256xf32>
    %136 = arith.mulf %125, %135 : vector<16x256xf32>
    %c0_44 = arith.constant 0 : index
    %c0_45 = arith.constant 0 : index
    %137 = vector.load %arg10[%c0_44, %c0_45] : memref<256x128xf32, #tpu.memory_space<vmem>>, vector<256x128xf32>
    %cst_46 = arith.constant dense<0.000000e+00> : vector<16x128xf32>
    %138 = tpu.matmul %136, %137, %cst_46 {dimension_numbers = #tpu.dot_dimension_numbers<[1], [0], [0], [1], [0, 0, 1, 1], [], []>} : vector<16x256xf32>, vector<256x128xf32>, vector<16x128xf32> -> vector<16x128xf32>
    %c0_47 = arith.constant 0 : index
    %c0_48 = arith.constant 0 : index
    %139 = vector.load %arg11[%c0_47, %c0_48] : memref<1x128xf32, #tpu.memory_space<vmem>>, vector<1x128xf32>
    %140 = vector.shape_cast %139 : vector<1x128xf32> to vector<128xf32>
    %141 = vector.shape_cast %140 : vector<128xf32> to vector<1x128xf32>
    %142 = vector.broadcast %141 : vector<1x128xf32> to vector<16x128xf32>
    %143 = arith.addf %138, %142 : vector<16x128xf32>
    %144 = arith.addf %88, %143 : vector<16x128xf32>
    %145 = vector.shape_cast %144 : vector<16x128xf32> to vector<2x8x128xf32>
    %c0_49 = arith.constant 0 : index
    %c0_50 = arith.constant 0 : index
    %c0_51 = arith.constant 0 : index
    %146 = vector.load %arg12[%c0_49, %c0_50, %c0_51] : memref<2x8x128xf32, #tpu.memory_space<vmem>>, vector<2x8x128xf32>
    tpu.vector_store %arg12[%c0_49, %c0_50, %c0_51], %145 {strides = array<i32>} : memref<2x8x128xf32, #tpu.memory_space<vmem>>, vector<2x8x128xf32>,
    return
  }
  func.func @transform_0(%arg0: i32) -> (i32, i32, i32) {
    %c0_i32 = arith.constant 0 : i32
    %c0_i32_0 = arith.constant 0 : i32
    %c0_i32_1 = arith.constant 0 : i32
    return %arg0, %c0_i32, %c0_i32_0 : i32, i32, i32
  }
  func.func @transform_1(%arg0: i32) -> (i32, i32) {
    %c0_i32 = arith.constant 0 : i32
    %c0_i32_0 = arith.constant 0 : i32
    %c0_i32_1 = arith.constant 0 : i32
    return %c0_i32, %c0_i32_0 : i32, i32
  }
  func.func @transform_2(%arg0: i32) -> (i32, i32) {
    %c0_i32 = arith.constant 0 : i32
    %c0_i32_0 = arith.constant 0 : i32
    %c0_i32_1 = arith.constant 0 : i32
    return %c0_i32, %c0_i32_0 : i32, i32
  }
  func.func @transform_3(%arg0: i32) -> (i32, i32) {
    %c0_i32 = arith.constant 0 : i32
    %c0_i32_0 = arith.constant 0 : i32
    %c0_i32_1 = arith.constant 0 : i32
    return %c0_i32, %c0_i32_0 : i32, i32
  }
  func.func @transform_4(%arg0: i32) -> (i32, i32) {
    %c0_i32 = arith.constant 0 : i32
    %c0_i32_0 = arith.constant 0 : i32
    %c0_i32_1 = arith.constant 0 : i32
    return %c0_i32, %c0_i32_0 : i32, i32
  }
  func.func @transform_5(%arg0: i32) -> (i32, i32) {
    %c0_i32 = arith.constant 0 : i32
    %c0_i32_0 = arith.constant 0 : i32
    %c0_i32_1 = arith.constant 0 : i32
    return %c0_i32, %c0_i32_0 : i32, i32
  }
  func.func @transform_6(%arg0: i32) -> (i32, i32) {
    %c0_i32 = arith.constant 0 : i32
    %c0_i32_0 = arith.constant 0 : i32
    %c0_i32_1 = arith.constant 0 : i32
    return %c0_i32, %c0_i32_0 : i32, i32
  }
  func.func @transform_7(%arg0: i32) -> (i32, i32) {
    %c0_i32 = arith.constant 0 : i32
    %c0_i32_0 = arith.constant 0 : i32
    %c0_i32_1 = arith.constant 0 : i32
    return %c0_i32, %c0_i32_0 : i32, i32
  }
  func.func @transform_8(%arg0: i32) -> (i32, i32) {
    %c0_i32 = arith.constant 0 : i32
    %c0_i32_0 = arith.constant 0 : i32
    %c0_i32_1 = arith.constant 0 : i32
    return %c0_i32, %c0_i32_0 : i32, i32
  }
  func.func @transform_9(%arg0: i32) -> (i32, i32) {
    %c0_i32 = arith.constant 0 : i32
    %c0_i32_0 = arith.constant 0 : i32
    %c0_i32_1 = arith.constant 0 : i32
    return %c0_i32, %c0_i32_0 : i32, i32
  }
  func.func @transform_10(%arg0: i32) -> (i32, i32) {
    %c0_i32 = arith.constant 0 : i32
    %c0_i32_0 = arith.constant 0 : i32
    %c0_i32_1 = arith.constant 0 : i32
    return %c0_i32, %c0_i32_0 : i32, i32
  }
  func.func @transform_11(%arg0: i32) -> (i32, i32, i32) {
    %c0_i32 = arith.constant 0 : i32
    %c0_i32_0 = arith.constant 0 : i32
    %c0_i32_1 = arith.constant 0 : i32
    return %arg0, %c0_i32, %c0_i32_0 : i32, i32, i32
  }
}

</mosaic_0001>

<llo_original>
// kernel: tpu_custom_call.1
$region0: #{tpu_custom_call.1}
  #allocation0 [shape = 'u32[]', space=smem, size = 0x4, offset = 0x4, fixed_abs, tag = 'smem constant byte address 0x4 - core index']
  #allocation1 [shape = 'u32[144,128]{1,0:T(1,128)}', space=vmem, size = 0x12000, scoped, tag = 'internal scratch']
  %s0 = inlined_call_operand.hbm [shape: f32[2,8,128], index: 0, kind: input, shape index: {}]
  %s1 = inlined_call_operand.hbm [shape: f32[128,384], index: 1, kind: input, shape index: {}]
  %s2 = inlined_call_operand.hbm [shape: f32[128,128], index: 2, kind: input, shape index: {}]
  %s3 = inlined_call_operand.vmem [shape: f32[1,128], index: 3, kind: input, shape index: {}]
  %s4 = inlined_call_operand.vmem [shape: f32[1,128], index: 4, kind: input, shape index: {}]
  %s5 = inlined_call_operand.vmem [shape: f32[1,128], index: 5, kind: input, shape index: {}]
  %s6 = inlined_call_operand.vmem [shape: f32[1,128], index: 6, kind: input, shape index: {}]
  %s7 = inlined_call_operand.hbm [shape: f32[128,256], index: 7, kind: input, shape index: {}]
  %s8 = inlined_call_operand.vmem [shape: f32[1,256], index: 8, kind: input, shape index: {}]
  %s9 = inlined_call_operand.hbm [shape: f32[256,128], index: 9, kind: input, shape index: {}]
  %s10 = inlined_call_operand.vmem [shape: f32[1,128], index: 10, kind: input, shape index: {}]
  %s11 = inlined_call_operand.hbm [shape: f32[2,8,128], index: 11, kind: output, shape index: {}]
  %s12 = sld [smem:[#allocation0]]
  $region74: #{tpu_custom_call.1} parent=0
    _
  %s14 = ssub.s32 1, %s12
  %s15 = scalar_select 0, %s14, %s12
  $region1: #{tpu_custom_call.1} parent=0
    #allocation2 [shape = 'u8[8192]{0}', space=vmem, size = 0x2000, scoped, tag = 'input window, operand 0, single buffered']
    #allocation3 [shape = 's32[1]{0}', space=sflag, size = 0x4, scoped, tag = 'scoped memory for tpu_custom_call.1']
    #allocation4 [shape = 's32[1]{0}', space=sflag, size = 0x4, scoped, tag = 'scoped memory for tpu_custom_call.1']
    #allocation5 [shape = 'u8[196608]{0}', space=vmem, size = 0x30000, scoped, tag = 'input window, operand 1, single buffered']
    #allocation6 [shape = 's32[1]{0}', space=sflag, size = 0x4, scoped, tag = 'scoped memory for tpu_custom_call.1']
    #allocation7 [shape = 'u8[65536]{0}', space=vmem, size = 0x10000, scoped, tag = 'input window, operand 2, single buffered']
    #allocation8 [shape = 'u8[131072]{0}', space=vmem, size = 0x20000, scoped, tag = 'input window, operand 7, single buffered']
    #allocation9 [shape = 's32[1]{0}', space=sflag, size = 0x4, scoped, tag = 'scoped memory for tpu_custom_call.1']
    #allocation10 [shape = 'u8[131072]{0}', space=vmem, size = 0x20000, scoped, tag = 'input window, operand 9, single buffered']
    #allocation11 [shape = 'u8[8192]{0}', space=vmem, size = 0x2000, scoped, tag = 'output window, operand 0, single buffered']
    %16 = vsyncpa [#allocation3], 0
    %17 = vsyncpa [#allocation6], 0
    %18 = vsyncpa [#allocation9], 0
    %19 = vsyncpa [#allocation4], 0
    // Predicated region
    $region2: #{tpu_custom_call.1} parent=1 // pred_check
      _
    $region3: #{tpu_custom_call.1} parent=1 // pred_check_branch
      %21 = sbr.rel (0) target = $region5
    $region4: #{tpu_custom_call.1} parent=1 // pred_region
      %s23 = ssub.s32 256, 256
      %24 = vsyncadd [#allocation3], %s23
      %s25 = sshll.u32 [#allocation2], 4
      %s26 = int_to_ptr.vmem [resolvable:$true] %s25
      %31 = dma.hbm_to_vmem [thread:$0]  %s0, 256, %s26, [#allocation3], 128, 128, 8
    $region5: #{tpu_custom_call.1} parent=1 // pred_fallthru
      _
    // Predicated region
    $region6: #{tpu_custom_call.1} parent=1 // pred_check
      _
    $region7: #{tpu_custom_call.1} parent=1 // pred_check_branch
      %33 = sbr.rel (0) target = $region9
    $region8: #{tpu_custom_call.1} parent=1 // pred_region
      %s35 = ssub.s32 6144, 6144
      %36 = vsyncadd [#allocation6], %s35
      %s37 = sshll.u32 [#allocation5], 4
      %s38 = int_to_ptr.vmem [resolvable:$true] %s37
      %43 = dma.hbm_to_vmem [thread:$0]  %s1, 6144, %s38, [#allocation6], 384, 384, 24
    $region9: #{tpu_custom_call.1} parent=1 // pred_fallthru
      _
    // Predicated region
    $region10: #{tpu_custom_call.1} parent=1 // pred_check
      _
    $region11: #{tpu_custom_call.1} parent=1 // pred_check_branch
      %45 = sbr.rel (0) target = $region13
    $region12: #{tpu_custom_call.1} parent=1 // pred_region
      %s47 = ssub.s32 2048, 2048
      %48 = vsyncadd [#allocation6], %s47
      %s49 = sshll.u32 [#allocation7], 4
      %s50 = int_to_ptr.vmem [resolvable:$true] %s49
      %55 = dma.hbm_to_vmem [thread:$0]  %s2, 2048, %s50, [#allocation6], 128, 128, 8
    $region13: #{tpu_custom_call.1} parent=1 // pred_fallthru
      _
    // Predicated region
    $region14: #{tpu_custom_call.1} parent=1 // pred_check
      _
    $region15: #{tpu_custom_call.1} parent=1 // pred_check_branch
      %57 = sbr.rel (0) target = $region17
    $region16: #{tpu_custom_call.1} parent=1 // pred_region
      _
    $region17: #{tpu_custom_call.1} parent=1 // pred_fallthru
      _
    // Predicated region
    $region18: #{tpu_custom_call.1} parent=1 // pred_check
      _
    $region19: #{tpu_custom_call.1} parent=1 // pred_check_branch
      %59 = sbr.rel (0) target = $region21
    $region20: #{tpu_custom_call.1} parent=1 // pred_region
      _
    $region21: #{tpu_custom_call.1} parent=1 // pred_fallthru
      _
    // Predicated region
    $region22: #{tpu_custom_call.1} parent=1 // pred_check
      _
    $region23: #{tpu_custom_call.1} parent=1 // pred_check_branch
      %61 = sbr.rel (0) target = $region25
    $region24: #{tpu_custom_call.1} parent=1 // pred_region
      _
    $region25: #{tpu_custom_call.1} parent=1 // pred_fallthru
      _
    // Predicated region
    $region26: #{tpu_custom_call.1} parent=1 // pred_check
      _
    $region27: #{tpu_custom_call.1} parent=1 // pred_check_branch
      %63 = sbr.rel (0) target = $region29
    $region28: #{tpu_custom_call.1} parent=1 // pred_region
      _
    $region29: #{tpu_custom_call.1} parent=1 // pred_fallthru
      _
    // Predicated region
    $region30: #{tpu_custom_call.1} parent=1 // pred_check
      _
    $region31: #{tpu_custom_call.1} parent=1 // pred_check_branch
      %65 = sbr.rel (0) target = $region33
    $region32: #{tpu_custom_call.1} parent=1 // pred_region
      %s67 = ssub.s32 4096, 4096
      %68 = vsyncadd [#allocation9], %s67
      %s69 = sshll.u32 [#allocation8], 4
      %s70 = int_to_ptr.vmem [resolvable:$true] %s69
      %75 = dma.hbm_to_vmem [thread:$0]  %s7, 4096, %s70, [#allocation9], 256, 256, 16
    $region33: #{tpu_custom_call.1} parent=1 // pred_fallthru
      _
    // Predicated region
    $region34: #{tpu_custom_call.1} parent=1 // pred_check
      _
    $region35: #{tpu_custom_call.1} parent=1 // pred_check_branch
      %77 = sbr.rel (0) target = $region37
    $region36: #{tpu_custom_call.1} parent=1 // pred_region
      _
    $region37: #{tpu_custom_call.1} parent=1 // pred_fallthru
      _
    // Predicated region
    $region38: #{tpu_custom_call.1} parent=1 // pred_check
      _
    $region39: #{tpu_custom_call.1} parent=1 // pred_check_branch
      %79 = sbr.rel (0) target = $region41
    $region40: #{tpu_custom_call.1} parent=1 // pred_region
      %s81 = ssub.s32 4096, 4096
      %82 = vsyncadd [#allocation9], %s81
      %s83 = sshll.u32 [#allocation10], 4
      %s84 = int_to_ptr.vmem [resolvable:$true] %s83
      %89 = dma.hbm_to_vmem [thread:$0]  %s9, 4096, %s84, [#allocation9], 128, 128, 8
    $region41: #{tpu_custom_call.1} parent=1 // pred_fallthru
      _
    // Predicated region
    $region42: #{tpu_custom_call.1} parent=1 // pred_check
      _
    $region43: #{tpu_custom_call.1} parent=1 // pred_check_branch
      %91 = sbr.rel (0) target = $region45
    $region44: #{tpu_custom_call.1} parent=1 // pred_region
      _
    $region45: #{tpu_custom_call.1} parent=1 // pred_fallthru
      _
    // Predicated region
    $region46: #{tpu_custom_call.1} parent=1 // pred_check
      _
    $region47: #{tpu_custom_call.1} parent=1 // pred_check_branch
      %93 = sbr.rel (0) target = $region49
    $region48: #{tpu_custom_call.1} parent=1 // pred_region
      %94 = dma.done [#allocation3], 256
    $region49: #{tpu_custom_call.1} parent=1 // pred_fallthru
      _
    // Predicated region
    $region50: #{tpu_custom_call.1} parent=1 // pred_check
      _
    $region51: #{tpu_custom_call.1} parent=1 // pred_check_branch
      %96 = sbr.rel (0) target = $region53
    $region52: #{tpu_custom_call.1} parent=1 // pred_region
      %97 = dma.done [#allocation6], 6144
    $region53: #{tpu_custom_call.1} parent=1 // pred_fallthru
      _
    // Predicated region
    $region54: #{tpu_custom_call.1} parent=1 // pred_check
      _
    $region55: #{tpu_custom_call.1} parent=1 // pred_check_branch
      %99 = sbr.rel (0) target = $region57
    $region56: #{tpu_custom_call.1} parent=1 // pred_region
      %100 = dma.done [#allocation6], 2048
    $region57: #{tpu_custom_call.1} parent=1 // pred_fallthru
      _
    // Predicated region
    $region58: #{tpu_custom_call.1} parent=1 // pred_check
      _
    $region59: #{tpu_custom_call.1} parent=1 // pred_check_branch
      %102 = sbr.rel (0) target = $region61
    $region60: #{tpu_custom_call.1} parent=1 // pred_region
      %103 = dma.done [#allocation9], 4096
    $region61: #{tpu_custom_call.1} parent=1 // pred_fallthru
      _
    // Predicated region
    $region62: #{tpu_custom_call.1} parent=1 // pred_check
      _
    $region63: #{tpu_custom_call.1} parent=1 // pred_check_branch
      %105 = sbr.rel (0) target = $region65
    $region64: #{tpu_custom_call.1} parent=1 // pred_region
      %106 = dma.done [#allocation9], 4096
    $region65: #{tpu_custom_call.1} parent=1 // pred_fallthru
      _
    %v107 = vld [vmem:[#allocation2] sm:$0xff]
    %v108 = vld [vmem:[#allocation2 + $0x8] sm:$0xff]
    %v109 = vld [vmem:[%s3] sm:$0x1]
    %v110 = vld [vmem:[%s4] sm:$0x1]
    %111 = vadd.xlane.f32.xlu0 %v107
    %v112 = vpop.xlane.xlu0 %111
    %113 = vadd.xlane.f32.xlu0 %v108
    %v114 = vpop.xlane.xlu0 %113
    %v115 = vrcp.pop 128.0
    %v116 = vmul.f32 %v112, %v115
    %v117 = vmul.f32 %v114, %v115
    %v118 = vsub.f32 %v107, %v116
    %v119 = vsub.f32 %v108, %v117
    %v120 = vmul.f32 %v118, %v118
    %v121 = vmul.f32 %v119, %v119
    %122 = vadd.xlane.f32.xlu0 %v120
    %v123 = vpop.xlane.xlu0 %122
    %124 = vadd.xlane.f32.xlu0 %v121
    %v125 = vpop.xlane.xlu0 %124
    %v126 = vmul.f32 %v123, %v115
    %v127 = vmul.f32 %v125, %v115
    %v128 = vadd.f32 %v126, 1e-05
    %v129 = vadd.f32 %v127, 1e-05
    %v130 = vrsqrt.pop %v128
    %v131 = vrsqrt.pop %v129
    %v132 = vmul.f32 %v118, %v130
    %v133 = vmul.f32 %v119, %v131
    %v135 = vlaneseq
    %v136 = vshrl.u32 %v135, 7
    %v137 = vsub.s32 0, %v136
    %v138 = vrot.slane %v109, %v137
    %v140 = vmul.f32 %v132, %v138
    %v141 = vmul.f32 %v133, %v138
    %v143 = vlaneseq
    %v144 = vshrl.u32 %v143, 7
    %v145 = vsub.s32 0, %v144
    %v146 = vrot.slane %v110, %v145
    %v148 = vadd.f32 %v140, %v146
    %v149 = vadd.f32 %v141, %v146
    %v150 = vld [vmem:[#allocation5] sm:$0xff]
    %v151 = vld [vmem:[#allocation5 + $0x8] sm:$0xff]
    %v152 = vld [vmem:[#allocation5 + $0x10] sm:$0xff]
    %v153 = vld [vmem:[#allocation5 + $0x18] sm:$0xff]
    %v154 = vld [vmem:[#allocation5 + $0x20] sm:$0xff]
    %v155 = vld [vmem:[#allocation5 + $0x28] sm:$0xff]
    %v156 = vld [vmem:[#allocation5 + $0x30] sm:$0xff]
    %v157 = vld [vmem:[#allocation5 + $0x38] sm:$0xff]
    %v158 = vld [vmem:[#allocation5 + $0x40] sm:$0xff]
    %v159 = vld [vmem:[#allocation5 + $0x48] sm:$0xff]
    %v160 = vld [vmem:[#allocation5 + $0x50] sm:$0xff]
    %v161 = vld [vmem:[#allocation5 + $0x58] sm:$0xff]
    %v162 = vld [vmem:[#allocation5 + $0x60] sm:$0xff]
    %v163 = vld [vmem:[#allocation5 + $0x68] sm:$0xff]
    %v164 = vld [vmem:[#allocation5 + $0x70] sm:$0xff]
    %v165 = vld [vmem:[#allocation5 + $0x78] sm:$0xff]
    %v166 = vld [vmem:[#allocation5 + $0x80] sm:$0xff]
    %v167 = vld [vmem:[#allocation5 + $0x88] sm:$0xff]
    %v168 = vld [vmem:[#allocation5 + $0x90] sm:$0xff]
    %v169 = vld [vmem:[#allocation5 + $0x98] sm:$0xff]
    %v170 = vld [vmem:[#allocation5 + $0xa0] sm:$0xff]
    %v171 = vld [vmem:[#allocation5 + $0xa8] sm:$0xff]
    %v172 = vld [vmem:[#allocation5 + $0xb0] sm:$0xff]
    %v173 = vld [vmem:[#allocation5 + $0xb8] sm:$0xff]
    %v174 = vld [vmem:[#allocation5 + $0xc0] sm:$0xff]
    %v175 = vld [vmem:[#allocation5 + $0xc8] sm:$0xff]
    %v176 = vld [vmem:[#allocation5 + $0xd0] sm:$0xff]
    %v177 = vld [vmem:[#allocation5 + $0xd8] sm:$0xff]
    %v178 = vld [vmem:[#allocation5 + $0xe0] sm:$0xff]
    %v179 = vld [vmem:[#allocation5 + $0xe8] sm:$0xff]
    %v180 = vld [vmem:[#allocation5 + $0xf0] sm:$0xff]
    %v181 = vld [vmem:[#allocation5 + $0xf8] sm:$0xff]
    %v182 = vld [vmem:[#allocation5 + $0x100] sm:$0xff]
    %v183 = vld [vmem:[#allocation5 + $0x108] sm:$0xff]
    %v184 = vld [vmem:[#allocation5 + $0x110] sm:$0xff]
    %v185 = vld [vmem:[#allocation5 + $0x118] sm:$0xff]
    %v186 = vld [vmem:[#allocation5 + $0x120] sm:$0xff]
    %v187 = vld [vmem:[#allocation5 + $0x128] sm:$0xff]
    %v188 = vld [vmem:[#allocation5 + $0x130] sm:$0xff]
    %v189 = vld [vmem:[#allocation5 + $0x138] sm:$0xff]
    %v190 = vld [vmem:[#allocation5 + $0x140] sm:$0xff]
    %v191 = vld [vmem:[#allocation5 + $0x148] sm:$0xff]
    %v192 = vld [vmem:[#allocation5 + $0x150] sm:$0xff]
    %v193 = vld [vmem:[#allocation5 + $0x158] sm:$0xff]
    %v194 = vld [vmem:[#allocation5 + $0x160] sm:$0xff]
    %v195 = vld [vmem:[#allocation5 + $0x168] sm:$0xff]
    %v196 = vld [vmem:[#allocation5 + $0x170] sm:$0xff]
    %v197 = vld [vmem:[#allocation5 + $0x178] sm:$0xff]
    %198 = vmatprep.subr.mxu0 %v151
    %199 = vmatpush1.msra.mxu0 %v150
    %200 = vmatprep.subr.mxu0 %v154
    %201 = vmatpush1.msra.mxu0 %v153
    %202 = vmatprep.subr.mxu0 %v157
    %203 = vmatpush1.msra.mxu0 %v156
    %204 = vmatprep.subr.mxu0 %v160
    %205 = vmatpush1.msra.mxu0 %v159
    %206 = vmatprep.subr.mxu0 %v163
    %207 = vmatpush1.msra.mxu0 %v162
    %208 = vmatprep.subr.mxu0 %v166
    %209 = vmatpush1.msra.mxu0 %v165
    %210 = vmatprep.subr.mxu0 %v169
    %211 = vmatpush1.msra.mxu0 %v168
    %212 = vmatprep.subr.mxu0 %v172
    %213 = vmatpush1.msra.mxu0 %v171
    %214 = vmatprep.subr.mxu0 %v175
    %215 = vmatpush1.msra.mxu0 %v174
    %216 = vmatprep.subr.mxu0 %v178
    %217 = vmatpush1.msra.mxu0 %v177
    %218 = vmatprep.subr.mxu0 %v181
    %219 = vmatpush1.msra.mxu0 %v180
    %220 = vmatprep.subr.mxu0 %v184
    %221 = vmatpush1.msra.mxu0 %v183
    %222 = vmatprep.subr.mxu0 %v187
    %223 = vmatpush1.msra.mxu0 %v186
    %224 = vmatprep.subr.mxu0 %v190
    %225 = vmatpush1.msra.mxu0 %v189
    %226 = vmatprep.subr.mxu0 %v193
    %227 = vmatpush1.msra.mxu0 %v192
    %228 = vmatprep.subr.mxu0 %v196
    %229 = vmatpush1.msra.mxu0 %v195
    %230 = vmatprep.subr.mxu0 0.0
    %231 = vmatpush1.msra.mxu0 0.0
    %232 = vmatprep.subr.mxu0 0.0
    %233 = vmatpush1.msra.mxu0 0.0
    %234 = vmatprep.subr.mxu0 0.0
    %235 = vmatpush1.msra.mxu0 0.0
    %236 = vmatprep.subr.mxu0 0.0
    %237 = vmatpush1.msra.mxu0 0.0
    %238 = vmatprep.subr.mxu0 0.0
    %239 = vmatpush1.msra.mxu0 0.0
    %240 = vmatprep.subr.mxu0 0.0
    %241 = vmatpush1.msra.mxu0 0.0
    %242 = vmatprep.subr.mxu0 0.0
    %243 = vmatpush1.msra.mxu0 0.0
    %244 = vmatprep.subr.mxu0 0.0
    %245 = vmatpush1.msra.mxu0 0.0
    %246 = vmatprep.subr.mxu0 0.0
    %247 = vmatpush1.msra.mxu0 0.0
    %248 = vmatprep.subr.mxu0 0.0
    %249 = vmatpush1.msra.mxu0 0.0
    %250 = vmatprep.subr.mxu0 0.0
    %251 = vmatpush1.msra.mxu0 0.0
    %252 = vmatprep.subr.mxu0 0.0
    %253 = vmatpush1.msra.mxu0 0.0
    %254 = vmatprep.subr.mxu0 0.0
    %255 = vmatpush1.msra.mxu0 0.0
    %256 = vmatprep.subr.mxu0 0.0
    %257 = vmatpush1.msra.mxu0 0.0
    %258 = vmatprep.subr.mxu0 0.0
    %259 = vmatpush1.msra.mxu0 0.0
    %260 = vmatprep.subr.mxu0 0.0
    %261 = vmatpush1.msra.mxu0 0.0
    %262 = vmatprep.mubr.f32.mxu0 0.0
    %263 = vmatmul.mubr.f32.gmra.mrb[0].mxu0 %v148
    %v264 = vpop.f32.mrb[0].mxu0
    %v265 = vadd.f32 0.0, %v264
    %v266 = vpop.f32.mrb[0].mxu0
    %v267 = vadd.f32 0.0, %v266
    %268 = vmatprep.mubr.f32.mxu0 0.0
    %269 = vmatmul.mubr.f32.gmra.mrb[0].mxu0 %v149
    %v270 = vpop.f32.mrb[0].mxu0
    %v271 = vadd.f32 0.0, %v270
    %v272 = vpop.f32.mrb[0].mxu0
    %v273 = vadd.f32 0.0, %v272
    %274 = vdwg.mxu0
    %275 = vmatprep.subr.mxu0 0.0
    %276 = vmatpush1.msra.mxu0 %v152
    %277 = vmatprep.subr.mxu0 0.0
    %278 = vmatpush1.msra.mxu0 %v155
    %279 = vmatprep.subr.mxu0 0.0
    %280 = vmatpush1.msra.mxu0 %v158
    %281 = vmatprep.subr.mxu0 0.0
    %282 = vmatpush1.msra.mxu0 %v161
    %283 = vmatprep.subr.mxu0 0.0
    %284 = vmatpush1.msra.mxu0 %v164
    %285 = vmatprep.subr.mxu0 0.0
    %286 = vmatpush1.msra.mxu0 %v167
    %287 = vmatprep.subr.mxu0 0.0
    %288 = vmatpush1.msra.mxu0 %v170
    %289 = vmatprep.subr.mxu0 0.0
    %290 = vmatpush1.msra.mxu0 %v173
    %291 = vmatprep.subr.mxu0 0.0
    %292 = vmatpush1.msra.mxu0 %v176
    %293 = vmatprep.subr.mxu0 0.0
    %294 = vmatpush1.msra.mxu0 %v179
    %295 = vmatprep.subr.mxu0 0.0
    %296 = vmatpush1.msra.mxu0 %v182
    %297 = vmatprep.subr.mxu0 0.0
    %298 = vmatpush1.msra.mxu0 %v185
    %299 = vmatprep.subr.mxu0 0.0
    %300 = vmatpush1.msra.mxu0 %v188
    %301 = vmatprep.subr.mxu0 0.0
    %302 = vmatpush1.msra.mxu0 %v191
    %303 = vmatprep.subr.mxu0 0.0
    %304 = vmatpush1.msra.mxu0 %v194
    %305 = vmatprep.subr.mxu0 0.0
    %306 = vmatpush1.msra.mxu0 %v197
    %307 = vmatprep.subr.mxu0 0.0
    %308 = vmatpush1.msra.mxu0 0.0
    %309 = vmatprep.subr.mxu0 0.0
    %310 = vmatpush1.msra.mxu0 0.0
    %311 = vmatprep.subr.mxu0 0.0
    %312 = vmatpush1.msra.mxu0 0.0
    %313 = vmatprep.subr.mxu0 0.0
    %314 = vmatpush1.msra.mxu0 0.0
    %315 = vmatprep.subr.mxu0 0.0
    %316 = vmatpush1.msra.mxu0 0.0
    %317 = vmatprep.subr.mxu0 0.0
    %318 = vmatpush1.msra.mxu0 0.0
    %319 = vmatprep.subr.mxu0 0.0
    %320 = vmatpush1.msra.mxu0 0.0
    %321 = vmatprep.subr.mxu0 0.0
    %322 = vmatpush1.msra.mxu0 0.0
    %323 = vmatprep.subr.mxu0 0.0
    %324 = vmatpush1.msra.mxu0 0.0
    %325 = vmatprep.subr.mxu0 0.0
    %326 = vmatpush1.msra.mxu0 0.0
    %327 = vmatprep.subr.mxu0 0.0
    %328 = vmatpush1.msra.mxu0 0.0
    %329 = vmatprep.subr.mxu0 0.0
    %330 = vmatpush1.msra.mxu0 0.0
    %331 = vmatprep.subr.mxu0 0.0
    %332 = vmatpush1.msra.mxu0 0.0
    %333 = vmatprep.subr.mxu0 0.0
    %334 = vmatpush1.msra.mxu0 0.0
    %335 = vmatprep.subr.mxu0 0.0
    %336 = vmatpush1.msra.mxu0 0.0
    %337 = vmatprep.subr.mxu0 0.0
    %338 = vmatpush1.msra.mxu0 0.0
    %339 = vmatprep.mubr.f32.mxu0 0.0
    %340 = vmatmul.mubr.f32.gmra.mrb[0].mxu0 %v148
    %v341 = vpop.f32.mrb[0].mxu0
    %v342 = vadd.f32 0.0, %v341
    %v343 = vpop.f32.mrb[0].mxu0
    %344 = vmatprep.mubr.f32.mxu0 0.0
    %345 = vmatmul.mubr.f32.gmra.mrb[0].mxu0 %v149
    %v346 = vpop.f32.mrb[0].mxu0
    %v347 = vadd.f32 0.0, %v346
    %v348 = vpop.f32.mrb[0].mxu0
    %349 = vdwg.mxu0
    %351 = vrot.lane.b32.xlu0 %v265, 96
    %v352 = vpop.permute.xlu0 %351
    %354 = vrot.lane.b32.xlu0 %v265, 64
    %v355 = vpop.permute.xlu0 %354
    %357 = vrot.lane.b32.xlu0 %v265, 32
    %v358 = vpop.permute.xlu0 %357
    %v360 = vcombine.low %v265, %v355
    %v361 = vcombine.high %v265, %v355
    %v363 = vunpack.c.l.s4 1983009808
    %v364 = vunpack.c.0.s8 %v363
    %v365 = vlaneseq
    %v366 = vshrl.u32 %v365, 7
    %v367 = vsub.s32 %v364, %v366
    %v368 = vrot.slane %v360, %v367
    %v370 = vunpack.c.l.s4 1983009808
    %v371 = vunpack.c.0.s8 %v370
    %v372 = vlaneseq
    %v373 = vshrl.u32 %v372, 7
    %v374 = vsub.s32 %v371, %v373
    %v375 = vrot.slane %v361, %v374
    %v376 = vcombine.low %v352, %v358
    %v377 = vcombine.high %v352, %v358
    %v379 = vunpack.c.l.s4 1983009808
    %v380 = vunpack.c.0.s8 %v379
    %v381 = vlaneseq
    %v382 = vshrl.u32 %v381, 7
    %v383 = vsub.s32 %v380, %v382
    %v384 = vrot.slane %v376, %v383
    %v386 = vunpack.c.l.s4 1983009808
    %v387 = vunpack.c.0.s8 %v386
    %v388 = vlaneseq
    %v389 = vshrl.u32 %v388, 7
    %v390 = vsub.s32 %v387, %v389
    %v391 = vrot.slane %v377, %v390
    %v392 = vcombine.low %v368, %v384
    %v393 = vcombine.high %v368, %v384
    %v395 = vunpack.c.l.s4 1934713408
    %v396 = vunpack.c.0.s8 %v395
    %v397 = vlaneseq
    %v398 = vshrl.u32 %v397, 7
    %v399 = vsub.s32 %v396, %v398
    %v400 = vrot.slane %v392, %v399
    %v402 = vunpack.c.l.s4 1934713408
    %v403 = vunpack.c.0.s8 %v402
    %v404 = vlaneseq
    %v405 = vshrl.u32 %v404, 7
    %v406 = vsub.s32 %v403, %v405
    %v407 = vrot.slane %v393, %v406
    %v408 = vcombine.low %v375, %v391
    %v409 = vcombine.high %v375, %v391
    %v411 = vunpack.c.l.s4 1934713408
    %v412 = vunpack.c.0.s8 %v411
    %v413 = vlaneseq
    %v414 = vshrl.u32 %v413, 7
    %v415 = vsub.s32 %v412, %v414
    %v416 = vrot.slane %v408, %v415
    %v418 = vunpack.c.l.s4 1934713408
    %v419 = vunpack.c.0.s8 %v418
    %v420 = vlaneseq
    %v421 = vshrl.u32 %v420, 7
    %v422 = vsub.s32 %v419, %v421
    %v423 = vrot.slane %v409, %v422
    %v424 = vcombine.high %v400, 0.0
    %v425 = vcombine.high %v407, 0.0
    %v426 = vcombine.high %v416, 0.0
    %v427 = vcombine.high %v423, 0.0
    %v428 = vcombine.low %v400, %v407
    %v430 = vunpack.c.l.s4 1983009808
    %v431 = vunpack.c.0.s8 %v430
    %v432 = vlaneseq
    %v433 = vshrl.u32 %v432, 7
    %v434 = vsub.s32 %v431, %v433
    %v435 = vrot.slane %v428, %v434
    %v436 = vcombine.low %v424, %v425
    %v438 = vunpack.c.l.s4 1983009808
    %v439 = vunpack.c.0.s8 %v438
    %v440 = vlaneseq
    %v441 = vshrl.u32 %v440, 7
    %v442 = vsub.s32 %v439, %v441
    %v443 = vrot.slane %v436, %v442
    %v444 = vcombine.low %v416, %v423
    %v446 = vunpack.c.l.s4 1983009808
    %v447 = vunpack.c.0.s8 %v446
    %v448 = vlaneseq
    %v449 = vshrl.u32 %v448, 7
    %v450 = vsub.s32 %v447, %v449
    %v451 = vrot.slane %v444, %v450
    %v452 = vcombine.low %v426, %v427
    %v454 = vunpack.c.l.s4 1983009808
    %v455 = vunpack.c.0.s8 %v454
    %v456 = vlaneseq
    %v457 = vshrl.u32 %v456, 7
    %v458 = vsub.s32 %v455, %v457
    %v459 = vrot.slane %v452, %v458
    %v460 = vcombine.low %v435, %v443
    %v461 = vcombine.high %v435, %v443
    %v463 = vunpack.c.l.s4 1934713408
    %v464 = vunpack.c.0.s8 %v463
    %v465 = vlaneseq
    %v466 = vshrl.u32 %v465, 7
    %v467 = vsub.s32 %v464, %v466
    %v468 = vrot.slane %v460, %v467
    %v470 = vunpack.c.l.s4 1934713408
    %v471 = vunpack.c.0.s8 %v470
    %v472 = vlaneseq
    %v473 = vshrl.u32 %v472, 7
    %v474 = vsub.s32 %v471, %v473
    %v475 = vrot.slane %v461, %v474
    %v476 = vcombine.low %v451, %v459
    %v477 = vcombine.high %v451, %v459
    %v479 = vunpack.c.l.s4 1934713408
    %v480 = vunpack.c.0.s8 %v479
    %v481 = vlaneseq
    %v482 = vshrl.u32 %v481, 7
    %v483 = vsub.s32 %v480, %v482
    %v484 = vrot.slane %v476, %v483
    %v486 = vunpack.c.l.s4 1934713408
    %v487 = vunpack.c.0.s8 %v486
    %v488 = vlaneseq
    %v489 = vshrl.u32 %v488, 7
    %v490 = vsub.s32 %v487, %v489
    %v491 = vrot.slane %v477, %v490
    %v492 = vcombine.low %v468, %v484
    %v493 = vcombine.high %v468, %v484
    %v494 = vcombine.low %v475, %v491
    %v495 = vcombine.high %v475, %v491
    %497 = vrot.lane.b32.xlu0 %v267, 96
    %v498 = vpop.permute.xlu0 %497
    %500 = vrot.lane.b32.xlu0 %v267, 64
    %v501 = vpop.permute.xlu0 %500
    %503 = vrot.lane.b32.xlu0 %v267, 32
    %v504 = vpop.permute.xlu0 %503
    %v506 = vcombine.low %v267, %v501
    %v507 = vcombine.high %v267, %v501
    %v509 = vunpack.c.l.s4 1983009808
    %v510 = vunpack.c.0.s8 %v509
    %v511 = vlaneseq
    %v512 = vshrl.u32 %v511, 7
    %v513 = vsub.s32 %v510, %v512
    %v514 = vrot.slane %v506, %v513
    %v516 = vunpack.c.l.s4 1983009808
    %v517 = vunpack.c.0.s8 %v516
    %v518 = vlaneseq
    %v519 = vshrl.u32 %v518, 7
    %v520 = vsub.s32 %v517, %v519
    %v521 = vrot.slane %v507, %v520
    %v522 = vcombine.low %v498, %v504
    %v523 = vcombine.high %v498, %v504
    %v525 = vunpack.c.l.s4 1983009808
    %v526 = vunpack.c.0.s8 %v525
    %v527 = vlaneseq
    %v528 = vshrl.u32 %v527, 7
    %v529 = vsub.s32 %v526, %v528
    %v530 = vrot.slane %v522, %v529
    %v532 = vunpack.c.l.s4 1983009808
    %v533 = vunpack.c.0.s8 %v532
    %v534 = vlaneseq
    %v535 = vshrl.u32 %v534, 7
    %v536 = vsub.s32 %v533, %v535
    %v537 = vrot.slane %v523, %v536
    %v538 = vcombine.low %v514, %v530
    %v539 = vcombine.high %v514, %v530
    %v541 = vunpack.c.l.s4 1934713408
    %v542 = vunpack.c.0.s8 %v541
    %v543 = vlaneseq
    %v544 = vshrl.u32 %v543, 7
    %v545 = vsub.s32 %v542, %v544
    %v546 = vrot.slane %v538, %v545
    %v548 = vunpack.c.l.s4 1934713408
    %v549 = vunpack.c.0.s8 %v548
    %v550 = vlaneseq
    %v551 = vshrl.u32 %v550, 7
    %v552 = vsub.s32 %v549, %v551
    %v553 = vrot.slane %v539, %v552
    %v554 = vcombine.low %v521, %v537
    %v555 = vcombine.high %v521, %v537
    %v557 = vunpack.c.l.s4 1934713408
    %v558 = vunpack.c.0.s8 %v557
    %v559 = vlaneseq
    %v560 = vshrl.u32 %v559, 7
    %v561 = vsub.s32 %v558, %v560
    %v562 = vrot.slane %v554, %v561
    %v564 = vunpack.c.l.s4 1934713408
    %v565 = vunpack.c.0.s8 %v564
    %v566 = vlaneseq
    %v567 = vshrl.u32 %v566, 7
    %v568 = vsub.s32 %v565, %v567
    %v569 = vrot.slane %v555, %v568
    %v570 = vcombine.high %v546, 0.0
    %v571 = vcombine.high %v553, 0.0
    %v572 = vcombine.high %v562, 0.0
    %v573 = vcombine.high %v569, 0.0
    %v574 = vcombine.low %v546, %v553
    %v576 = vunpack.c.l.s4 1983009808
    %v577 = vunpack.c.0.s8 %v576
    %v578 = vlaneseq
    %v579 = vshrl.u32 %v578, 7
    %v580 = vsub.s32 %v577, %v579
    %v581 = vrot.slane %v574, %v580
    %v582 = vcombine.low %v570, %v571
    %v584 = vunpack.c.l.s4 1983009808
    %v585 = vunpack.c.0.s8 %v584
    %v586 = vlaneseq
    %v587 = vshrl.u32 %v586, 7
    %v588 = vsub.s32 %v585, %v587
    %v589 = vrot.slane %v582, %v588
    %v590 = vcombine.low %v562, %v569
    %v592 = vunpack.c.l.s4 1983009808
    %v593 = vunpack.c.0.s8 %v592
    %v594 = vlaneseq
    %v595 = vshrl.u32 %v594, 7
    %v596 = vsub.s32 %v593, %v595
    %v597 = vrot.slane %v590, %v596
    %v598 = vcombine.low %v572, %v573
    %v600 = vunpack.c.l.s4 1983009808
    %v601 = vunpack.c.0.s8 %v600
    %v602 = vlaneseq
    %v603 = vshrl.u32 %v602, 7
    %v604 = vsub.s32 %v601, %v603
    %v605 = vrot.slane %v598, %v604
    %v606 = vcombine.low %v581, %v589
    %v607 = vcombine.high %v581, %v589
    %v609 = vunpack.c.l.s4 1934713408
    %v610 = vunpack.c.0.s8 %v609
    %v611 = vlaneseq
    %v612 = vshrl.u32 %v611, 7
    %v613 = vsub.s32 %v610, %v612
    %v614 = vrot.slane %v606, %v613
    %v616 = vunpack.c.l.s4 1934713408
    %v617 = vunpack.c.0.s8 %v616
    %v618 = vlaneseq
    %v619 = vshrl.u32 %v618, 7
    %v620 = vsub.s32 %v617, %v619
    %v621 = vrot.slane %v607, %v620
    %v622 = vcombine.low %v597, %v605
    %v623 = vcombine.high %v597, %v605
    %v625 = vunpack.c.l.s4 1934713408
    %v626 = vunpack.c.0.s8 %v625
    %v627 = vlaneseq
    %v628 = vshrl.u32 %v627, 7
    %v629 = vsub.s32 %v626, %v628
    %v630 = vrot.slane %v622, %v629
    %v632 = vunpack.c.l.s4 1934713408
    %v633 = vunpack.c.0.s8 %v632
    %v634 = vlaneseq
    %v635 = vshrl.u32 %v634, 7
    %v636 = vsub.s32 %v633, %v635
    %v637 = vrot.slane %v623, %v636
    %v638 = vcombine.low %v614, %v630
    %v639 = vcombine.high %v614, %v630
    %v640 = vcombine.low %v621, %v637
    %v641 = vcombine.high %v621, %v637
    %643 = vrot.lane.b32.xlu0 %v342, 96
    %v644 = vpop.permute.xlu0 %643
    %646 = vrot.lane.b32.xlu0 %v342, 64
    %v647 = vpop.permute.xlu0 %646
    %649 = vrot.lane.b32.xlu0 %v342, 32
    %v650 = vpop.permute.xlu0 %649
    %v652 = vcombine.low %v342, %v647
    %v653 = vcombine.high %v342, %v647
    %v655 = vunpack.c.l.s4 1983009808
    %v656 = vunpack.c.0.s8 %v655
    %v657 = vlaneseq
    %v658 = vshrl.u32 %v657, 7
    %v659 = vsub.s32 %v656, %v658
    %v660 = vrot.slane %v652, %v659
    %v662 = vunpack.c.l.s4 1983009808
    %v663 = vunpack.c.0.s8 %v662
    %v664 = vlaneseq
    %v665 = vshrl.u32 %v664, 7
    %v666 = vsub.s32 %v663, %v665
    %v667 = vrot.slane %v653, %v666
    %v668 = vcombine.low %v644, %v650
    %v669 = vcombine.high %v644, %v650
    %v671 = vunpack.c.l.s4 1983009808
    %v672 = vunpack.c.0.s8 %v671
    %v673 = vlaneseq
    %v674 = vshrl.u32 %v673, 7
    %v675 = vsub.s32 %v672, %v674
    %v676 = vrot.slane %v668, %v675
    %v678 = vunpack.c.l.s4 1983009808
    %v679 = vunpack.c.0.s8 %v678
    %v680 = vlaneseq
    %v681 = vshrl.u32 %v680, 7
    %v682 = vsub.s32 %v679, %v681
    %v683 = vrot.slane %v669, %v682
    %v684 = vcombine.low %v660, %v676
    %v685 = vcombine.high %v660, %v676
    %v687 = vunpack.c.l.s4 1934713408
    %v688 = vunpack.c.0.s8 %v687
    %v689 = vlaneseq
    %v690 = vshrl.u32 %v689, 7
    %v691 = vsub.s32 %v688, %v690
    %v692 = vrot.slane %v684, %v691
    %v694 = vunpack.c.l.s4 1934713408
    %v695 = vunpack.c.0.s8 %v694
    %v696 = vlaneseq
    %v697 = vshrl.u32 %v696, 7
    %v698 = vsub.s32 %v695, %v697
    %v699 = vrot.slane %v685, %v698
    %v700 = vcombine.low %v667, %v683
    %v701 = vcombine.high %v667, %v683
    %v703 = vunpack.c.l.s4 1934713408
    %v704 = vunpack.c.0.s8 %v703
    %v705 = vlaneseq
    %v706 = vshrl.u32 %v705, 7
    %v707 = vsub.s32 %v704, %v706
    %v708 = vrot.slane %v700, %v707
    %v710 = vunpack.c.l.s4 1934713408
    %v711 = vunpack.c.0.s8 %v710
    %v712 = vlaneseq
    %v713 = vshrl.u32 %v712, 7
    %v714 = vsub.s32 %v711, %v713
    %v715 = vrot.slane %v701, %v714
    %v716 = vcombine.high %v692, 0.0
    %v717 = vcombine.high %v699, 0.0
    %v718 = vcombine.high %v708, 0.0
    %v719 = vcombine.high %v715, 0.0
    %v720 = vcombine.low %v692, %v699
    %v722 = vunpack.c.l.s4 1983009808
    %v723 = vunpack.c.0.s8 %v722
    %v724 = vlaneseq
    %v725 = vshrl.u32 %v724, 7
    %v726 = vsub.s32 %v723, %v725
    %v727 = vrot.slane %v720, %v726
    %v728 = vcombine.low %v716, %v717
    %v730 = vunpack.c.l.s4 1983009808
    %v731 = vunpack.c.0.s8 %v730
    %v732 = vlaneseq
    %v733 = vshrl.u32 %v732, 7
    %v734 = vsub.s32 %v731, %v733
    %v735 = vrot.slane %v728, %v734
    %v736 = vcombine.low %v708, %v715
    %v738 = vunpack.c.l.s4 1983009808
    %v739 = vunpack.c.0.s8 %v738
    %v740 = vlaneseq
    %v741 = vshrl.u32 %v740, 7
    %v742 = vsub.s32 %v739, %v741
    %v743 = vrot.slane %v736, %v742
    %v744 = vcombine.low %v718, %v719
    %v746 = vunpack.c.l.s4 1983009808
    %v747 = vunpack.c.0.s8 %v746
    %v748 = vlaneseq
    %v749 = vshrl.u32 %v748, 7
    %v750 = vsub.s32 %v747, %v749
    %v751 = vrot.slane %v744, %v750
    %v752 = vcombine.low %v727, %v735
    %v753 = vcombine.high %v727, %v735
    %v755 = vunpack.c.l.s4 1934713408
    %v756 = vunpack.c.0.s8 %v755
    %v757 = vlaneseq
    %v758 = vshrl.u32 %v757, 7
    %v759 = vsub.s32 %v756, %v758
    %v760 = vrot.slane %v752, %v759
    %v762 = vunpack.c.l.s4 1934713408
    %v763 = vunpack.c.0.s8 %v762
    %v764 = vlaneseq
    %v765 = vshrl.u32 %v764, 7
    %v766 = vsub.s32 %v763, %v765
    %v767 = vrot.slane %v753, %v766
    %v768 = vcombine.low %v743, %v751
    %v769 = vcombine.high %v743, %v751
    %v771 = vunpack.c.l.s4 1934713408
    %v772 = vunpack.c.0.s8 %v771
    %v773 = vlaneseq
    %v774 = vshrl.u32 %v773, 7
    %v775 = vsub.s32 %v772, %v774
    %v776 = vrot.slane %v768, %v775
    %v778 = vunpack.c.l.s4 1934713408
    %v779 = vunpack.c.0.s8 %v778
    %v780 = vlaneseq
    %v781 = vshrl.u32 %v780, 7
    %v782 = vsub.s32 %v779, %v781
    %v783 = vrot.slane %v769, %v782
    %v784 = vcombine.low %v760, %v776
    %v785 = vcombine.high %v760, %v776
    %v786 = vcombine.low %v767, %v783
    %v787 = vcombine.high %v767, %v783
    %vm788 = vcmask 261120
    %v790 = vsel %vm788, %v492, 0
    %v793 = vsel %vm788, %v638, 0
    %795 = vmatprep.subr.mxu0 0.0
    %796 = vmatpush1.xpose.msra.mxu0 %v793
    %797 = vmatprep.subr.mxu0 0.0
    %798 = vmatpush1.xpose.msra.mxu0 0.0
    %799 = vmatprep.subr.mxu0 0.0
    %800 = vmatpush1.xpose.msra.mxu0 0.0
    %801 = vmatprep.subr.mxu0 0.0
    %802 = vmatpush1.xpose.msra.mxu0 0.0
    %803 = vmatprep.subr.mxu0 0.0
    %804 = vmatpush1.xpose.msra.mxu0 0.0
    %805 = vmatprep.subr.mxu0 0.0
    %806 = vmatpush1.xpose.msra.mxu0 0.0
    %807 = vmatprep.subr.mxu0 0.0
    %808 = vmatpush1.xpose.msra.mxu0 0.0
    %809 = vmatprep.subr.mxu0 0.0
    %810 = vmatpush1.xpose.msra.mxu0 0.0
    %811 = vmatprep.subr.mxu0 0.0
    %812 = vmatpush1.xpose.msra.mxu0 0.0
    %813 = vmatprep.subr.mxu0 0.0
    %814 = vmatpush1.xpose.msra.mxu0 0.0
    %815 = vmatprep.subr.mxu0 0.0
    %816 = vmatpush1.xpose.msra.mxu0 0.0
    %817 = vmatprep.subr.mxu0 0.0
    %818 = vmatpush1.xpose.msra.mxu0 0.0
    %819 = vmatprep.subr.mxu0 0.0
    %820 = vmatpush1.xpose.msra.mxu0 0.0
    %821 = vmatprep.subr.mxu0 0.0
    %822 = vmatpush1.xpose.msra.mxu0 0.0
    %823 = vmatprep.subr.mxu0 0.0
    %824 = vmatpush1.xpose.msra.mxu0 0.0
    %825 = vmatprep.subr.mxu0 0.0
    %826 = vmatpush1.xpose.msra.mxu0 0.0
    %827 = vmatprep.subr.mxu0 0.0
    %828 = vmatpush1.xpose.msra.mxu0 0.0
    %829 = vmatprep.subr.mxu0 0.0
    %830 = vmatpush1.xpose.msra.mxu0 0.0
    %831 = vmatprep.subr.mxu0 0.0
    %832 = vmatpush1.xpose.msra.mxu0 0.0
    %833 = vmatprep.subr.mxu0 0.0
    %834 = vmatpush1.xpose.msra.mxu0 0.0
    %835 = vmatprep.subr.mxu0 0.0
    %836 = vmatpush1.xpose.msra.mxu0 0.0
    %837 = vmatprep.subr.mxu0 0.0
    %838 = vmatpush1.xpose.msra.mxu0 0.0
    %839 = vmatprep.subr.mxu0 0.0
    %840 = vmatpush1.xpose.msra.mxu0 0.0
    %841 = vmatprep.subr.mxu0 0.0
    %842 = vmatpush1.xpose.msra.mxu0 0.0
    %843 = vmatprep.subr.mxu0 0.0
    %844 = vmatpush1.xpose.msra.mxu0 0.0
    %845 = vmatprep.subr.mxu0 0.0
    %846 = vmatpush1.xpose.msra.mxu0 0.0
    %847 = vmatprep.subr.mxu0 0.0
    %848 = vmatpush1.xpose.msra.mxu0 0.0
    %849 = vmatprep.subr.mxu0 0.0
    %850 = vmatpush1.xpose.msra.mxu0 0.0
    %851 = vmatprep.subr.mxu0 0.0
    %852 = vmatpush1.xpose.msra.mxu0 0.0
    %853 = vmatprep.subr.mxu0 0.0
    %854 = vmatpush1.xpose.msra.mxu0 0.0
    %855 = vmatprep.subr.mxu0 0.0
    %856 = vmatpush1.xpose.msra.mxu0 0.0
    %857 = vmatprep.subr.mxu0 0.0
    %858 = vmatpush1.xpose.msra.mxu0 0.0
    %859 = vmatprep.mubr.f32.mxu0 0.0
    %860 = vmatmul.mubr.f32.gmra.mrb[0].mxu0 %v790
    %v861 = vpop.f32.mrb[0].mxu0
    %v862 = vadd.f32 0.0, %v861
    %v863 = vpop.f32.mrb[0].mxu0
    %864 = vdwg.mxu0
    %v866 = vsel %vm788, %v493, 0
    %v869 = vsel %vm788, %v639, 0
    %871 = vmatprep.subr.mxu0 0.0
    %872 = vmatpush1.xpose.msra.mxu0 %v869
    %873 = vmatprep.subr.mxu0 0.0
    %874 = vmatpush1.xpose.msra.mxu0 0.0
    %875 = vmatprep.subr.mxu0 0.0
    %876 = vmatpush1.xpose.msra.mxu0 0.0
    %877 = vmatprep.subr.mxu0 0.0
    %878 = vmatpush1.xpose.msra.mxu0 0.0
    %879 = vmatprep.subr.mxu0 0.0
    %880 = vmatpush1.xpose.msra.mxu0 0.0
    %881 = vmatprep.subr.mxu0 0.0
    %882 = vmatpush1.xpose.msra.mxu0 0.0
    %883 = vmatprep.subr.mxu0 0.0
    %884 = vmatpush1.xpose.msra.mxu0 0.0
    %885 = vmatprep.subr.mxu0 0.0
    %886 = vmatpush1.xpose.msra.mxu0 0.0
    %887 = vmatprep.subr.mxu0 0.0
    %888 = vmatpush1.xpose.msra.mxu0 0.0
    %889 = vmatprep.subr.mxu0 0.0
    %890 = vmatpush1.xpose.msra.mxu0 0.0
    %891 = vmatprep.subr.mxu0 0.0
    %892 = vmatpush1.xpose.msra.mxu0 0.0
    %893 = vmatprep.subr.mxu0 0.0
    %894 = vmatpush1.xpose.msra.mxu0 0.0
    %895 = vmatprep.subr.mxu0 0.0
    %896 = vmatpush1.xpose.msra.mxu0 0.0
    %897 = vmatprep.subr.mxu0 0.0
    %898 = vmatpush1.xpose.msra.mxu0 0.0
    %899 = vmatprep.subr.mxu0 0.0
    %900 = vmatpush1.xpose.msra.mxu0 0.0
    %901 = vmatprep.subr.mxu0 0.0
    %902 = vmatpush1.xpose.msra.mxu0 0.0
    %903 = vmatprep.subr.mxu0 0.0
    %904 = vmatpush1.xpose.msra.mxu0 0.0
    %905 = vmatprep.subr.mxu0 0.0
    %906 = vmatpush1.xpose.msra.mxu0 0.0
    %907 = vmatprep.subr.mxu0 0.0
    %908 = vmatpush1.xpose.msra.mxu0 0.0
    %909 = vmatprep.subr.mxu0 0.0
    %910 = vmatpush1.xpose.msra.mxu0 0.0
    %911 = vmatprep.subr.mxu0 0.0
    %912 = vmatpush1.xpose.msra.mxu0 0.0
    %913 = vmatprep.subr.mxu0 0.0
    %914 = vmatpush1.xpose.msra.mxu0 0.0
    %915 = vmatprep.subr.mxu0 0.0
    %916 = vmatpush1.xpose.msra.mxu0 0.0
    %917 = vmatprep.subr.mxu0 0.0
    %918 = vmatpush1.xpose.msra.mxu0 0.0
    %919 = vmatprep.subr.mxu0 0.0
    %920 = vmatpush1.xpose.msra.mxu0 0.0
    %921 = vmatprep.subr.mxu0 0.0
    %922 = vmatpush1.xpose.msra.mxu0 0.0
    %923 = vmatprep.subr.mxu0 0.0
    %924 = vmatpush1.xpose.msra.mxu0 0.0
    %925 = vmatprep.subr.mxu0 0.0
    %926 = vmatpush1.xpose.msra.mxu0 0.0
    %927 = vmatprep.subr.mxu0 0.0
    %928 = vmatpush1.xpose.msra.mxu0 0.0
    %929 = vmatprep.subr.mxu0 0.0
    %930 = vmatpush1.xpose.msra.mxu0 0.0
    %931 = vmatprep.subr.mxu0 0.0
    %932 = vmatpush1.xpose.msra.mxu0 0.0
    %933 = vmatprep.subr.mxu0 0.0
    %934 = vmatpush1.xpose.msra.mxu0 0.0
    %935 = vmatprep.mubr.f32.mxu0 0.0
    %936 = vmatmul.mubr.f32.gmra.mrb[0].mxu0 %v866
    %v937 = vpop.f32.mrb[0].mxu0
    %v938 = vadd.f32 0.0, %v937
    %v939 = vpop.f32.mrb[0].mxu0
    %940 = vdwg.mxu0
    %v942 = vsel %vm788, %v494, 0
    %v945 = vsel %vm788, %v640, 0
    %947 = vmatprep.subr.mxu0 0.0
    %948 = vmatpush1.xpose.msra.mxu0 %v945
    %949 = vmatprep.subr.mxu0 0.0
    %950 = vmatpush1.xpose.msra.mxu0 0.0
    %951 = vmatprep.subr.mxu0 0.0
    %952 = vmatpush1.xpose.msra.mxu0 0.0
    %953 = vmatprep.subr.mxu0 0.0
    %954 = vmatpush1.xpose.msra.mxu0 0.0
    %955 = vmatprep.subr.mxu0 0.0
    %956 = vmatpush1.xpose.msra.mxu0 0.0
    %957 = vmatprep.subr.mxu0 0.0
    %958 = vmatpush1.xpose.msra.mxu0 0.0
    %959 = vmatprep.subr.mxu0 0.0
    %960 = vmatpush1.xpose.msra.mxu0 0.0
    %961 = vmatprep.subr.mxu0 0.0
    %962 = vmatpush1.xpose.msra.mxu0 0.0
    %963 = vmatprep.subr.mxu0 0.0
    %964 = vmatpush1.xpose.msra.mxu0 0.0
    %965 = vmatprep.subr.mxu0 0.0
    %966 = vmatpush1.xpose.msra.mxu0 0.0
    %967 = vmatprep.subr.mxu0 0.0
    %968 = vmatpush1.xpose.msra.mxu0 0.0
    %969 = vmatprep.subr.mxu0 0.0
    %970 = vmatpush1.xpose.msra.mxu0 0.0
    %971 = vmatprep.subr.mxu0 0.0
    %972 = vmatpush1.xpose.msra.mxu0 0.0
    %973 = vmatprep.subr.mxu0 0.0
    %974 = vmatpush1.xpose.msra.mxu0 0.0
    %975 = vmatprep.subr.mxu0 0.0
    %976 = vmatpush1.xpose.msra.mxu0 0.0
    %977 = vmatprep.subr.mxu0 0.0
    %978 = vmatpush1.xpose.msra.mxu0 0.0
    %979 = vmatprep.subr.mxu0 0.0
    %980 = vmatpush1.xpose.msra.mxu0 0.0
    %981 = vmatprep.subr.mxu0 0.0
    %982 = vmatpush1.xpose.msra.mxu0 0.0
    %983 = vmatprep.subr.mxu0 0.0
    %984 = vmatpush1.xpose.msra.mxu0 0.0
    %985 = vmatprep.subr.mxu0 0.0
    %986 = vmatpush1.xpose.msra.mxu0 0.0
    %987 = vmatprep.subr.mxu0 0.0
    %988 = vmatpush1.xpose.msra.mxu0 0.0
    %989 = vmatprep.subr.mxu0 0.0
    %990 = vmatpush1.xpose.msra.mxu0 0.0
    %991 = vmatprep.subr.mxu0 0.0
    %992 = vmatpush1.xpose.msra.mxu0 0.0
    %993 = vmatprep.subr.mxu0 0.0
    %994 = vmatpush1.xpose.msra.mxu0 0.0
    %995 = vmatprep.subr.mxu0 0.0
    %996 = vmatpush1.xpose.msra.mxu0 0.0
    %997 = vmatprep.subr.mxu0 0.0
    %998 = vmatpush1.xpose.msra.mxu0 0.0
    %999 = vmatprep.subr.mxu0 0.0
    %1000 = vmatpush1.xpose.msra.mxu0 0.0
    %1001 = vmatprep.subr.mxu0 0.0
    %1002 = vmatpush1.xpose.msra.mxu0 0.0
    %1003 = vmatprep.subr.mxu0 0.0
    %1004 = vmatpush1.xpose.msra.mxu0 0.0
    %1005 = vmatprep.subr.mxu0 0.0
    %1006 = vmatpush1.xpose.msra.mxu0 0.0
    %1007 = vmatprep.subr.mxu0 0.0
    %1008 = vmatpush1.xpose.msra.mxu0 0.0
    %1009 = vmatprep.subr.mxu0 0.0
    %1010 = vmatpush1.xpose.msra.mxu0 0.0
    %1011 = vmatprep.mubr.f32.mxu0 0.0
    %1012 = vmatmul.mubr.f32.gmra.mrb[0].mxu0 %v942
    %v1013 = vpop.f32.mrb[0].mxu0
    %v1014 = vadd.f32 0.0, %v1013
    %v1015 = vpop.f32.mrb[0].mxu0
    %1016 = vdwg.mxu0
    %v1018 = vsel %vm788, %v495, 0
    %v1021 = vsel %vm788, %v641, 0
    %1023 = vmatprep.subr.mxu0 0.0
    %1024 = vmatpush1.xpose.msra.mxu0 %v1021
    %1025 = vmatprep.subr.mxu0 0.0
    %1026 = vmatpush1.xpose.msra.mxu0 0.0
    %1027 = vmatprep.subr.mxu0 0.0
    %1028 = vmatpush1.xpose.msra.mxu0 0.0
    %1029 = vmatprep.subr.mxu0 0.0
    %1030 = vmatpush1.xpose.msra.mxu0 0.0
    %1031 = vmatprep.subr.mxu0 0.0
    %1032 = vmatpush1.xpose.msra.mxu0 0.0
    %1033 = vmatprep.subr.mxu0 0.0
    %1034 = vmatpush1.xpose.msra.mxu0 0.0
    %1035 = vmatprep.subr.mxu0 0.0
    %1036 = vmatpush1.xpose.msra.mxu0 0.0
    %1037 = vmatprep.subr.mxu0 0.0
    %1038 = vmatpush1.xpose.msra.mxu0 0.0
    %1039 = vmatprep.subr.mxu0 0.0
    %1040 = vmatpush1.xpose.msra.mxu0 0.0
    %1041 = vmatprep.subr.mxu0 0.0
    %1042 = vmatpush1.xpose.msra.mxu0 0.0
    %1043 = vmatprep.subr.mxu0 0.0
    %1044 = vmatpush1.xpose.msra.mxu0 0.0
    %1045 = vmatprep.subr.mxu0 0.0
    %1046 = vmatpush1.xpose.msra.mxu0 0.0
    %1047 = vmatprep.subr.mxu0 0.0
    %1048 = vmatpush1.xpose.msra.mxu0 0.0
    %1049 = vmatprep.subr.mxu0 0.0
    %1050 = vmatpush1.xpose.msra.mxu0 0.0
    %1051 = vmatprep.subr.mxu0 0.0
    %1052 = vmatpush1.xpose.msra.mxu0 0.0
    %1053 = vmatprep.subr.mxu0 0.0
    %1054 = vmatpush1.xpose.msra.mxu0 0.0
    %1055 = vmatprep.subr.mxu0 0.0
    %1056 = vmatpush1.xpose.msra.mxu0 0.0
    %1057 = vmatprep.subr.mxu0 0.0
    %1058 = vmatpush1.xpose.msra.mxu0 0.0
    %1059 = vmatprep.subr.mxu0 0.0
    %1060 = vmatpush1.xpose.msra.mxu0 0.0
    %1061 = vmatprep.subr.mxu0 0.0
    %1062 = vmatpush1.xpose.msra.mxu0 0.0
    %1063 = vmatprep.subr.mxu0 0.0
    %1064 = vmatpush1.xpose.msra.mxu0 0.0
    %1065 = vmatprep.subr.mxu0 0.0
    %1066 = vmatpush1.xpose.msra.mxu0 0.0
    %1067 = vmatprep.subr.mxu0 0.0
    %1068 = vmatpush1.xpose.msra.mxu0 0.0
    %1069 = vmatprep.subr.mxu0 0.0
    %1070 = vmatpush1.xpose.msra.mxu0 0.0
    %1071 = vmatprep.subr.mxu0 0.0
    %1072 = vmatpush1.xpose.msra.mxu0 0.0
    %1073 = vmatprep.subr.mxu0 0.0
    %1074 = vmatpush1.xpose.msra.mxu0 0.0
    %1075 = vmatprep.subr.mxu0 0.0
    %1076 = vmatpush1.xpose.msra.mxu0 0.0
    %1077 = vmatprep.subr.mxu0 0.0
    %1078 = vmatpush1.xpose.msra.mxu0 0.0
    %1079 = vmatprep.subr.mxu0 0.0
    %1080 = vmatpush1.xpose.msra.mxu0 0.0
    %1081 = vmatprep.subr.mxu0 0.0
    %1082 = vmatpush1.xpose.msra.mxu0 0.0
    %1083 = vmatprep.subr.mxu0 0.0
    %1084 = vmatpush1.xpose.msra.mxu0 0.0
    %1085 = vmatprep.subr.mxu0 0.0
    %1086 = vmatpush1.xpose.msra.mxu0 0.0
    %1087 = vmatprep.mubr.f32.mxu0 0.0
    %1088 = vmatmul.mubr.f32.gmra.mrb[0].mxu0 %v1018
    %v1089 = vpop.f32.mrb[0].mxu0
    %v1090 = vadd.f32 0.0, %v1089
    %v1091 = vpop.f32.mrb[0].mxu0
    %1092 = vdwg.mxu0
    %v1093 = vmul.f32 %v862, 0.17677669
    %v1094 = vmul.f32 %v938, 0.17677669
    %v1095 = vmul.f32 %v1014, 0.17677669
    %v1096 = vmul.f32 %v1090, 0.17677669
    %vm1097 = vcmask 64512
    %v1098 = vsel %vm1097, %v1093, -inf
    %v1099 = vrot.slane %v1098, 4
    %v1100 = vmax.f32 %v1098, %v1099
    %v1101 = vrot.slane %v1100, 2
    %v1102 = vmax.f32 %v1100, %v1101
    %v1103 = vrot.slane %v1102, 1
    %v1104 = vmax.f32 %v1102, %v1103
    %v1105 = vsel %vm1097, %v1094, -inf
    %v1106 = vrot.slane %v1105, 4
    %v1107 = vmax.f32 %v1105, %v1106
    %v1108 = vrot.slane %v1107, 2
    %v1109 = vmax.f32 %v1107, %v1108
    %v1110 = vrot.slane %v1109, 1
    %v1111 = vmax.f32 %v1109, %v1110
    %v1112 = vsel %vm1097, %v1095, -inf
    %v1113 = vrot.slane %v1112, 4
    %v1114 = vmax.f32 %v1112, %v1113
    %v1115 = vrot.slane %v1114, 2
    %v1116 = vmax.f32 %v1114, %v1115
    %v1117 = vrot.slane %v1116, 1
    %v1118 = vmax.f32 %v1116, %v1117
    %v1119 = vsel %vm1097, %v1096, -inf
    %v1120 = vrot.slane %v1119, 4
    %v1121 = vmax.f32 %v1119, %v1120
    %v1122 = vrot.slane %v1121, 2
    %v1123 = vmax.f32 %v1121, %v1122
    %v1124 = vrot.slane %v1123, 1
    %v1125 = vmax.f32 %v1123, %v1124
    %v1126 = vsub.f32 %v1093, %v1104
    %v1127 = vsub.f32 %v1094, %v1111
    %v1128 = vsub.f32 %v1095, %v1118
    %v1129 = vsub.f32 %v1096, %v1125
    %v1130 = vmul.f32 %v1126, 1.442695
    %v1131 = vpow.pop %v1130
    %v1132 = vmul.f32 %v1127, 1.442695
    %v1133 = vpow.pop %v1132
    %v1134 = vmul.f32 %v1128, 1.442695
    %v1135 = vpow.pop %v1134
    %v1136 = vmul.f32 %v1129, 1.442695
    %v1137 = vpow.pop %v1136
    %v1138 = vsel %vm1097, %v1131, 0.0
    %v1139 = vrot.slane %v1138, 4
    %v1140 = vadd.f32 %v1138, %v1139
    %v1141 = vrot.slane %v1140, 2
    %v1142 = vadd.f32 %v1140, %v1141
    %v1143 = vrot.slane %v1142, 1
    %v1144 = vadd.f32 %v1142, %v1143
    %v1145 = vsel %vm1097, %v1133, 0.0
    %v1146 = vrot.slane %v1145, 4
    %v1147 = vadd.f32 %v1145, %v1146
    %v1148 = vrot.slane %v1147, 2
    %v1149 = vadd.f32 %v1147, %v1148
    %v1150 = vrot.slane %v1149, 1
    %v1151 = vadd.f32 %v1149, %v1150
    %v1152 = vsel %vm1097, %v1135, 0.0
    %v1153 = vrot.slane %v1152, 4
    %v1154 = vadd.f32 %v1152, %v1153
    %v1155 = vrot.slane %v1154, 2
    %v1156 = vadd.f32 %v1154, %v1155
    %v1157 = vrot.slane %v1156, 1
    %v1158 = vadd.f32 %v1156, %v1157
    %v1159 = vsel %vm1097, %v1137, 0.0
    %v1160 = vrot.slane %v1159, 4
    %v1161 = vadd.f32 %v1159, %v1160
    %v1162 = vrot.slane %v1161, 2
    %v1163 = vadd.f32 %v1161, %v1162
    %v1164 = vrot.slane %v1163, 1
    %v1165 = vadd.f32 %v1163, %v1164
    %v1166 = vrcp.pop %v1144
    %v1167 = vrcp.pop %v1151
    %v1168 = vrcp.pop %v1158
    %v1169 = vrcp.pop %v1165
    %v1170 = vmul.f32 %v1131, %v1166
    %v1171 = vmul.f32 %v1133, %v1167
    %v1172 = vmul.f32 %v1135, %v1168
    %v1173 = vmul.f32 %v1137, %v1169
    %v1175 = vsel %vm1097, %v1170, 0
    %1177 = vmatprep.subr.mxu0 0.0
    %1178 = vmatpush1.msra.mxu0 %v784
    %1179 = vmatprep.subr.mxu0 0.0
    %1180 = vmatpush1.msra.mxu0 0.0
    %1181 = vmatprep.subr.mxu0 0.0
    %1182 = vmatpush1.msra.mxu0 0.0
    %1183 = vmatprep.subr.mxu0 0.0
    %1184 = vmatpush1.msra.mxu0 0.0
    %1185 = vmatprep.subr.mxu0 0.0
    %1186 = vmatpush1.msra.mxu0 0.0
    %1187 = vmatprep.subr.mxu0 0.0
    %1188 = vmatpush1.msra.mxu0 0.0
    %1189 = vmatprep.subr.mxu0 0.0
    %1190 = vmatpush1.msra.mxu0 0.0
    %1191 = vmatprep.subr.mxu0 0.0
    %1192 = vmatpush1.msra.mxu0 0.0
    %1193 = vmatprep.subr.mxu0 0.0
    %1194 = vmatpush1.msra.mxu0 0.0
    %1195 = vmatprep.subr.mxu0 0.0
    %1196 = vmatpush1.msra.mxu0 0.0
    %1197 = vmatprep.subr.mxu0 0.0
    %1198 = vmatpush1.msra.mxu0 0.0
    %1199 = vmatprep.subr.mxu0 0.0
    %1200 = vmatpush1.msra.mxu0 0.0
    %1201 = vmatprep.subr.mxu0 0.0
    %1202 = vmatpush1.msra.mxu0 0.0
    %1203 = vmatprep.subr.mxu0 0.0
    %1204 = vmatpush1.msra.mxu0 0.0
    %1205 = vmatprep.subr.mxu0 0.0
    %1206 = vmatpush1.msra.mxu0 0.0
    %1207 = vmatprep.subr.mxu0 0.0
    %1208 = vmatpush1.msra.mxu0 0.0
    %1209 = vmatprep.subr.mxu0 0.0
    %1210 = vmatpush1.msra.mxu0 0.0
    %1211 = vmatprep.subr.mxu0 0.0
    %1212 = vmatpush1.msra.mxu0 0.0
    %1213 = vmatprep.subr.mxu0 0.0
    %1214 = vmatpush1.msra.mxu0 0.0
    %1215 = vmatprep.subr.mxu0 0.0
    %1216 = vmatpush1.msra.mxu0 0.0
    %1217 = vmatprep.subr.mxu0 0.0
    %1218 = vmatpush1.msra.mxu0 0.0
    %1219 = vmatprep.subr.mxu0 0.0
    %1220 = vmatpush1.msra.mxu0 0.0
    %1221 = vmatprep.subr.mxu0 0.0
    %1222 = vmatpush1.msra.mxu0 0.0
    %1223 = vmatprep.subr.mxu0 0.0
    %1224 = vmatpush1.msra.mxu0 0.0
    %1225 = vmatprep.subr.mxu0 0.0
    %1226 = vmatpush1.msra.mxu0 0.0
    %1227 = vmatprep.subr.mxu0 0.0
    %1228 = vmatpush1.msra.mxu0 0.0
    %1229 = vmatprep.subr.mxu0 0.0
    %1230 = vmatpush1.msra.mxu0 0.0
    %1231 = vmatprep.subr.mxu0 0.0
    %1232 = vmatpush1.msra.mxu0 0.0
    %1233 = vmatprep.subr.mxu0 0.0
    %1234 = vmatpush1.msra.mxu0 0.0
    %1235 = vmatprep.subr.mxu0 0.0
    %1236 = vmatpush1.msra.mxu0 0.0
    %1237 = vmatprep.subr.mxu0 0.0
    %1238 = vmatpush1.msra.mxu0 0.0
    %1239 = vmatprep.subr.mxu0 0.0
    %1240 = vmatpush1.msra.mxu0 0.0
    %1241 = vmatprep.mubr.f32.mxu0 0.0
    %1242 = vmatmul.mubr.f32.gmra.mrb[0].mxu0 %v1175
    %v1243 = vpop.f32.mrb[0].mxu0
    %v1244 = vadd.f32 0.0, %v1243
    %v1245 = vpop.f32.mrb[0].mxu0
    %1246 = vdwg.mxu0
    %v1248 = vsel %vm1097, %v1171, 0
    %1250 = vmatprep.subr.mxu0 0.0
    %1251 = vmatpush1.msra.mxu0 %v785
    %1252 = vmatprep.subr.mxu0 0.0
    %1253 = vmatpush1.msra.mxu0 0.0
    %1254 = vmatprep.subr.mxu0 0.0
    %1255 = vmatpush1.msra.mxu0 0.0
    %1256 = vmatprep.subr.mxu0 0.0
    %1257 = vmatpush1.msra.mxu0 0.0
    %1258 = vmatprep.subr.mxu0 0.0
    %1259 = vmatpush1.msra.mxu0 0.0
    %1260 = vmatprep.subr.mxu0 0.0
    %1261 = vmatpush1.msra.mxu0 0.0
    %1262 = vmatprep.subr.mxu0 0.0
    %1263 = vmatpush1.msra.mxu0 0.0
    %1264 = vmatprep.subr.mxu0 0.0
    %1265 = vmatpush1.msra.mxu0 0.0
    %1266 = vmatprep.subr.mxu0 0.0
    %1267 = vmatpush1.msra.mxu0 0.0
    %1268 = vmatprep.subr.mxu0 0.0
    %1269 = vmatpush1.msra.mxu0 0.0
    %1270 = vmatprep.subr.mxu0 0.0
    %1271 = vmatpush1.msra.mxu0 0.0
    %1272 = vmatprep.subr.mxu0 0.0
    %1273 = vmatpush1.msra.mxu0 0.0
    %1274 = vmatprep.subr.mxu0 0.0
    %1275 = vmatpush1.msra.mxu0 0.0
    %1276 = vmatprep.subr.mxu0 0.0
    %1277 = vmatpush1.msra.mxu0 0.0
    %1278 = vmatprep.subr.mxu0 0.0
    %1279 = vmatpush1.msra.mxu0 0.0
    %1280 = vmatprep.subr.mxu0 0.0
    %1281 = vmatpush1.msra.mxu0 0.0
    %1282 = vmatprep.subr.mxu0 0.0
    %1283 = vmatpush1.msra.mxu0 0.0
    %1284 = vmatprep.subr.mxu0 0.0
    %1285 = vmatpush1.msra.mxu0 0.0
    %1286 = vmatprep.subr.mxu0 0.0
    %1287 = vmatpush1.msra.mxu0 0.0
    %1288 = vmatprep.subr.mxu0 0.0
    %1289 = vmatpush1.msra.mxu0 0.0
    %1290 = vmatprep.subr.mxu0 0.0
    %1291 = vmatpush1.msra.mxu0 0.0
    %1292 = vmatprep.subr.mxu0 0.0
    %1293 = vmatpush1.msra.mxu0 0.0
    %1294 = vmatprep.subr.mxu0 0.0
    %1295 = vmatpush1.msra.mxu0 0.0
    %1296 = vmatprep.subr.mxu0 0.0
    %1297 = vmatpush1.msra.mxu0 0.0
    %1298 = vmatprep.subr.mxu0 0.0
    %1299 = vmatpush1.msra.mxu0 0.0
    %1300 = vmatprep.subr.mxu0 0.0
    %1301 = vmatpush1.msra.mxu0 0.0
    %1302 = vmatprep.subr.mxu0 0.0
    %1303 = vmatpush1.msra.mxu0 0.0
    %1304 = vmatprep.subr.mxu0 0.0
    %1305 = vmatpush1.msra.mxu0 0.0
    %1306 = vmatprep.subr.mxu0 0.0
    %1307 = vmatpush1.msra.mxu0 0.0
    %1308 = vmatprep.subr.mxu0 0.0
    %1309 = vmatpush1.msra.mxu0 0.0
    %1310 = vmatprep.subr.mxu0 0.0
    %1311 = vmatpush1.msra.mxu0 0.0
    %1312 = vmatprep.subr.mxu0 0.0
    %1313 = vmatpush1.msra.mxu0 0.0
    %1314 = vmatprep.mubr.f32.mxu0 0.0
    %1315 = vmatmul.mubr.f32.gmra.mrb[0].mxu0 %v1248
    %v1316 = vpop.f32.mrb[0].mxu0
    %v1317 = vadd.f32 0.0, %v1316
    %v1318 = vpop.f32.mrb[0].mxu0
    %1319 = vdwg.mxu0
    %v1321 = vsel %vm1097, %v1172, 0
    %1323 = vmatprep.subr.mxu0 0.0
    %1324 = vmatpush1.msra.mxu0 %v786
    %1325 = vmatprep.subr.mxu0 0.0
    %1326 = vmatpush1.msra.mxu0 0.0
    %1327 = vmatprep.subr.mxu0 0.0
    %1328 = vmatpush1.msra.mxu0 0.0
    %1329 = vmatprep.subr.mxu0 0.0
    %1330 = vmatpush1.msra.mxu0 0.0
    %1331 = vmatprep.subr.mxu0 0.0
    %1332 = vmatpush1.msra.mxu0 0.0
    %1333 = vmatprep.subr.mxu0 0.0
    %1334 = vmatpush1.msra.mxu0 0.0
    %1335 = vmatprep.subr.mxu0 0.0
    %1336 = vmatpush1.msra.mxu0 0.0
    %1337 = vmatprep.subr.mxu0 0.0
    %1338 = vmatpush1.msra.mxu0 0.0
    %1339 = vmatprep.subr.mxu0 0.0
    %1340 = vmatpush1.msra.mxu0 0.0
    %1341 = vmatprep.subr.mxu0 0.0
    %1342 = vmatpush1.msra.mxu0 0.0
    %1343 = vmatprep.subr.mxu0 0.0
    %1344 = vmatpush1.msra.mxu0 0.0
    %1345 = vmatprep.subr.mxu0 0.0
    %1346 = vmatpush1.msra.mxu0 0.0
    %1347 = vmatprep.subr.mxu0 0.0
    %1348 = vmatpush1.msra.mxu0 0.0
    %1349 = vmatprep.subr.mxu0 0.0
    %1350 = vmatpush1.msra.mxu0 0.0
    %1351 = vmatprep.subr.mxu0 0.0
    %1352 = vmatpush1.msra.mxu0 0.0
    %1353 = vmatprep.subr.mxu0 0.0
    %1354 = vmatpush1.msra.mxu0 0.0
    %1355 = vmatprep.subr.mxu0 0.0
    %1356 = vmatpush1.msra.mxu0 0.0
    %1357 = vmatprep.subr.mxu0 0.0
    %1358 = vmatpush1.msra.mxu0 0.0
    %1359 = vmatprep.subr.mxu0 0.0
    %1360 = vmatpush1.msra.mxu0 0.0
    %1361 = vmatprep.subr.mxu0 0.0
    %1362 = vmatpush1.msra.mxu0 0.0
    %1363 = vmatprep.subr.mxu0 0.0
    %1364 = vmatpush1.msra.mxu0 0.0
    %1365 = vmatprep.subr.mxu0 0.0
    %1366 = vmatpush1.msra.mxu0 0.0
    %1367 = vmatprep.subr.mxu0 0.0
    %1368 = vmatpush1.msra.mxu0 0.0
    %1369 = vmatprep.subr.mxu0 0.0
    %1370 = vmatpush1.msra.mxu0 0.0
    %1371 = vmatprep.subr.mxu0 0.0
    %1372 = vmatpush1.msra.mxu0 0.0
    %1373 = vmatprep.subr.mxu0 0.0
    %1374 = vmatpush1.msra.mxu0 0.0
    %1375 = vmatprep.subr.mxu0 0.0
    %1376 = vmatpush1.msra.mxu0 0.0
    %1377 = vmatprep.subr.mxu0 0.0
    %1378 = vmatpush1.msra.mxu0 0.0
    %1379 = vmatprep.subr.mxu0 0.0
    %1380 = vmatpush1.msra.mxu0 0.0
    %1381 = vmatprep.subr.mxu0 0.0
    %1382 = vmatpush1.msra.mxu0 0.0
    %1383 = vmatprep.subr.mxu0 0.0
    %1384 = vmatpush1.msra.mxu0 0.0
    %1385 = vmatprep.subr.mxu0 0.0
    %1386 = vmatpush1.msra.mxu0 0.0
    %1387 = vmatprep.mubr.f32.mxu0 0.0
    %1388 = vmatmul.mubr.f32.gmra.mrb[0].mxu0 %v1321
    %v1389 = vpop.f32.mrb[0].mxu0
    %v1390 = vadd.f32 0.0, %v1389
    %v1391 = vpop.f32.mrb[0].mxu0
    %1392 = vdwg.mxu0
    %v1394 = vsel %vm1097, %v1173, 0
    %1396 = vmatprep.subr.mxu0 0.0
    %1397 = vmatpush1.msra.mxu0 %v787
    %1398 = vmatprep.subr.mxu0 0.0
    %1399 = vmatpush1.msra.mxu0 0.0
    %1400 = vmatprep.subr.mxu0 0.0
    %1401 = vmatpush1.msra.mxu0 0.0
    %1402 = vmatprep.subr.mxu0 0.0
    %1403 = vmatpush1.msra.mxu0 0.0
    %1404 = vmatprep.subr.mxu0 0.0
    %1405 = vmatpush1.msra.mxu0 0.0
    %1406 = vmatprep.subr.mxu0 0.0
    %1407 = vmatpush1.msra.mxu0 0.0
    %1408 = vmatprep.subr.mxu0 0.0
    %1409 = vmatpush1.msra.mxu0 0.0
    %1410 = vmatprep.subr.mxu0 0.0
    %1411 = vmatpush1.msra.mxu0 0.0
    %1412 = vmatprep.subr.mxu0 0.0
    %1413 = vmatpush1.msra.mxu0 0.0
    %1414 = vmatprep.subr.mxu0 0.0
    %1415 = vmatpush1.msra.mxu0 0.0
    %1416 = vmatprep.subr.mxu0 0.0
    %1417 = vmatpush1.msra.mxu0 0.0
    %1418 = vmatprep.subr.mxu0 0.0
    %1419 = vmatpush1.msra.mxu0 0.0
    %1420 = vmatprep.subr.mxu0 0.0
    %1421 = vmatpush1.msra.mxu0 0.0
    %1422 = vmatprep.subr.mxu0 0.0
    %1423 = vmatpush1.msra.mxu0 0.0
    %1424 = vmatprep.subr.mxu0 0.0
    %1425 = vmatpush1.msra.mxu0 0.0
    %1426 = vmatprep.subr.mxu0 0.0
    %1427 = vmatpush1.msra.mxu0 0.0
    %1428 = vmatprep.subr.mxu0 0.0
    %1429 = vmatpush1.msra.mxu0 0.0
    %1430 = vmatprep.subr.mxu0 0.0
    %1431 = vmatpush1.msra.mxu0 0.0
    %1432 = vmatprep.subr.mxu0 0.0
    %1433 = vmatpush1.msra.mxu0 0.0
    %1434 = vmatprep.subr.mxu0 0.0
    %1435 = vmatpush1.msra.mxu0 0.0
    %1436 = vmatprep.subr.mxu0 0.0
    %1437 = vmatpush1.msra.mxu0 0.0
    %1438 = vmatprep.subr.mxu0 0.0
    %1439 = vmatpush1.msra.mxu0 0.0
    %1440 = vmatprep.subr.mxu0 0.0
    %1441 = vmatpush1.msra.mxu0 0.0
    %1442 = vmatprep.subr.mxu0 0.0
    %1443 = vmatpush1.msra.mxu0 0.0
    %1444 = vmatprep.subr.mxu0 0.0
    %1445 = vmatpush1.msra.mxu0 0.0
    %1446 = vmatprep.subr.mxu0 0.0
    %1447 = vmatpush1.msra.mxu0 0.0
    %1448 = vmatprep.subr.mxu0 0.0
    %1449 = vmatpush1.msra.mxu0 0.0
    %1450 = vmatprep.subr.mxu0 0.0
    %1451 = vmatpush1.msra.mxu0 0.0
    %1452 = vmatprep.subr.mxu0 0.0
    %1453 = vmatpush1.msra.mxu0 0.0
    %1454 = vmatprep.subr.mxu0 0.0
    %1455 = vmatpush1.msra.mxu0 0.0
    %1456 = vmatprep.subr.mxu0 0.0
    %1457 = vmatpush1.msra.mxu0 0.0
    %1458 = vmatprep.subr.mxu0 0.0
    %1459 = vmatpush1.msra.mxu0 0.0
    %1460 = vmatprep.mubr.f32.mxu0 0.0
    %1461 = vmatmul.mubr.f32.gmra.mrb[0].mxu0 %v1394
    %v1462 = vpop.f32.mrb[0].mxu0
    %v1463 = vadd.f32 0.0, %v1462
    %v1464 = vpop.f32.mrb[0].mxu0
    %1465 = vdwg.mxu0
    %v1466 = vcombine.low %v1244, %v1390
    %v1467 = vcombine.high %v1244, %v1390
    %v1469 = vunpack.c.l.s4 1983009808
    %v1470 = vunpack.c.0.s8 %v1469
    %v1471 = vlaneseq
    %v1472 = vshrl.u32 %v1471, 7
    %v1473 = vsub.s32 %v1470, %v1472
    %v1474 = vrot.slane %v1466, %v1473
    %v1476 = vunpack.c.l.s4 1983009808
    %v1477 = vunpack.c.0.s8 %v1476
    %v1478 = vlaneseq
    %v1479 = vshrl.u32 %v1478, 7
    %v1480 = vsub.s32 %v1477, %v1479
    %v1481 = vrot.slane %v1467, %v1480
    %v1482 = vcombine.low %v1317, %v1463
    %v1483 = vcombine.high %v1317, %v1463
    %v1485 = vunpack.c.l.s4 1983009808
    %v1486 = vunpack.c.0.s8 %v1485
    %v1487 = vlaneseq
    %v1488 = vshrl.u32 %v1487, 7
    %v1489 = vsub.s32 %v1486, %v1488
    %v1490 = vrot.slane %v1482, %v1489
    %v1492 = vunpack.c.l.s4 1983009808
    %v1493 = vunpack.c.0.s8 %v1492
    %v1494 = vlaneseq
    %v1495 = vshrl.u32 %v1494, 7
    %v1496 = vsub.s32 %v1493, %v1495
    %v1497 = vrot.slane %v1483, %v1496
    %v1498 = vcombine.low %v1474, %v1490
    %v1499 = vcombine.high %v1474, %v1490
    %v1501 = vunpack.c.l.s4 1934713408
    %v1502 = vunpack.c.0.s8 %v1501
    %v1503 = vlaneseq
    %v1504 = vshrl.u32 %v1503, 7
    %v1505 = vsub.s32 %v1502, %v1504
    %v1506 = vrot.slane %v1498, %v1505
    %v1508 = vunpack.c.l.s4 1934713408
    %v1509 = vunpack.c.0.s8 %v1508
    %v1510 = vlaneseq
    %v1511 = vshrl.u32 %v1510, 7
    %v1512 = vsub.s32 %v1509, %v1511
    %v1513 = vrot.slane %v1499, %v1512
    %v1514 = vcombine.low %v1481, %v1497
    %v1515 = vcombine.high %v1481, %v1497
    %v1517 = vunpack.c.l.s4 1934713408
    %v1518 = vunpack.c.0.s8 %v1517
    %v1519 = vlaneseq
    %v1520 = vshrl.u32 %v1519, 7
    %v1521 = vsub.s32 %v1518, %v1520
    %v1522 = vrot.slane %v1514, %v1521
    %v1524 = vunpack.c.l.s4 1934713408
    %v1525 = vunpack.c.0.s8 %v1524
    %v1526 = vlaneseq
    %v1527 = vshrl.u32 %v1526, 7
    %v1528 = vsub.s32 %v1525, %v1527
    %v1529 = vrot.slane %v1515, %v1528
    %v1530 = vcombine.high %v1506, 0.0
    %v1531 = vcombine.high %v1513, 0.0
    %v1532 = vcombine.high %v1522, 0.0
    %v1533 = vcombine.high %v1529, 0.0
    %v1534 = vcombine.low %v1506, %v1513
    %v1536 = vunpack.c.l.s4 1983009808
    %v1537 = vunpack.c.0.s8 %v1536
    %v1538 = vlaneseq
    %v1539 = vshrl.u32 %v1538, 7
    %v1540 = vsub.s32 %v1537, %v1539
    %v1541 = vrot.slane %v1534, %v1540
    %v1542 = vcombine.low %v1530, %v1531
    %v1544 = vunpack.c.l.s4 1983009808
    %v1545 = vunpack.c.0.s8 %v1544
    %v1546 = vlaneseq
    %v1547 = vshrl.u32 %v1546, 7
    %v1548 = vsub.s32 %v1545, %v1547
    %v1549 = vrot.slane %v1542, %v1548
    %v1550 = vcombine.low %v1522, %v1529
    %v1552 = vunpack.c.l.s4 1983009808
    %v1553 = vunpack.c.0.s8 %v1552
    %v1554 = vlaneseq
    %v1555 = vshrl.u32 %v1554, 7
    %v1556 = vsub.s32 %v1553, %v1555
    %v1557 = vrot.slane %v1550, %v1556
    %v1558 = vcombine.low %v1532, %v1533
    %v1560 = vunpack.c.l.s4 1983009808
    %v1561 = vunpack.c.0.s8 %v1560
    %v1562 = vlaneseq
    %v1563 = vshrl.u32 %v1562, 7
    %v1564 = vsub.s32 %v1561, %v1563
    %v1565 = vrot.slane %v1558, %v1564
    %v1566 = vcombine.low %v1541, %v1549
    %v1567 = vcombine.high %v1541, %v1549
    %v1569 = vunpack.c.l.s4 1934713408
    %v1570 = vunpack.c.0.s8 %v1569
    %v1571 = vlaneseq
    %v1572 = vshrl.u32 %v1571, 7
    %v1573 = vsub.s32 %v1570, %v1572
    %v1574 = vrot.slane %v1566, %v1573
    %v1576 = vunpack.c.l.s4 1934713408
    %v1577 = vunpack.c.0.s8 %v1576
    %v1578 = vlaneseq
    %v1579 = vshrl.u32 %v1578, 7
    %v1580 = vsub.s32 %v1577, %v1579
    %v1581 = vrot.slane %v1567, %v1580
    %v1582 = vcombine.low %v1557, %v1565
    %v1583 = vcombine.high %v1557, %v1565
    %v1585 = vunpack.c.l.s4 1934713408
    %v1586 = vunpack.c.0.s8 %v1585
    %v1587 = vlaneseq
    %v1588 = vshrl.u32 %v1587, 7
    %v1589 = vsub.s32 %v1586, %v1588
    %v1590 = vrot.slane %v1582, %v1589
    %v1592 = vunpack.c.l.s4 1934713408
    %v1593 = vunpack.c.0.s8 %v1592
    %v1594 = vlaneseq
    %v1595 = vshrl.u32 %v1594, 7
    %v1596 = vsub.s32 %v1593, %v1595
    %v1597 = vrot.slane %v1583, %v1596
    %v1598 = vcombine.low %v1574, %v1590
    %v1599 = vcombine.high %v1574, %v1590
    %v1600 = vcombine.low %v1581, %v1597
    %v1601 = vcombine.high %v1581, %v1597
    %1603 = vrot.lane.b32.xlu0 %v1599, 32
    %v1604 = vpop.permute.xlu0 %1603
    %1607 = vrot.lane.b32.xlu0 %v1600, 64
    %v1608 = vpop.permute.xlu0 %1607
    %1611 = vrot.lane.b32.xlu0 %v1601, 96
    %v1612 = vpop.permute.xlu0 %1611
    %v1614 = vsel %vm788, %v1598, %v1604
    %vm1615 = vcmask 523264
    %v1616 = vsel %vm1615, %v1614, %v1608
    %vm1617 = vcmask 785408
    %v1618 = vsel %vm1617, %v1616, %v1612
    %1620 = vrot.lane.b32.xlu0 %v271, 96
    %v1621 = vpop.permute.xlu0 %1620
    %1623 = vrot.lane.b32.xlu0 %v271, 64
    %v1624 = vpop.permute.xlu0 %1623
    %1626 = vrot.lane.b32.xlu0 %v271, 32
    %v1627 = vpop.permute.xlu0 %1626
    %v1629 = vcombine.low %v271, %v1624
    %v1630 = vcombine.high %v271, %v1624
    %v1632 = vunpack.c.l.s4 1983009808
    %v1633 = vunpack.c.0.s8 %v1632
    %v1634 = vlaneseq
    %v1635 = vshrl.u32 %v1634, 7
    %v1636 = vsub.s32 %v1633, %v1635
    %v1637 = vrot.slane %v1629, %v1636
    %v1639 = vunpack.c.l.s4 1983009808
    %v1640 = vunpack.c.0.s8 %v1639
    %v1641 = vlaneseq
    %v1642 = vshrl.u32 %v1641, 7
    %v1643 = vsub.s32 %v1640, %v1642
    %v1644 = vrot.slane %v1630, %v1643
    %v1645 = vcombine.low %v1621, %v1627
    %v1646 = vcombine.high %v1621, %v1627
    %v1648 = vunpack.c.l.s4 1983009808
    %v1649 = vunpack.c.0.s8 %v1648
    %v1650 = vlaneseq
    %v1651 = vshrl.u32 %v1650, 7
    %v1652 = vsub.s32 %v1649, %v1651
    %v1653 = vrot.slane %v1645, %v1652
    %v1655 = vunpack.c.l.s4 1983009808
    %v1656 = vunpack.c.0.s8 %v1655
    %v1657 = vlaneseq
    %v1658 = vshrl.u32 %v1657, 7
    %v1659 = vsub.s32 %v1656, %v1658
    %v1660 = vrot.slane %v1646, %v1659
    %v1661 = vcombine.low %v1637, %v1653
    %v1662 = vcombine.high %v1637, %v1653
    %v1664 = vunpack.c.l.s4 1934713408
    %v1665 = vunpack.c.0.s8 %v1664
    %v1666 = vlaneseq
    %v1667 = vshrl.u32 %v1666, 7
    %v1668 = vsub.s32 %v1665, %v1667
    %v1669 = vrot.slane %v1661, %v1668
    %v1671 = vunpack.c.l.s4 1934713408
    %v1672 = vunpack.c.0.s8 %v1671
    %v1673 = vlaneseq
    %v1674 = vshrl.u32 %v1673, 7
    %v1675 = vsub.s32 %v1672, %v1674
    %v1676 = vrot.slane %v1662, %v1675
    %v1677 = vcombine.low %v1644, %v1660
    %v1678 = vcombine.high %v1644, %v1660
    %v1680 = vunpack.c.l.s4 1934713408
    %v1681 = vunpack.c.0.s8 %v1680
    %v1682 = vlaneseq
    %v1683 = vshrl.u32 %v1682, 7
    %v1684 = vsub.s32 %v1681, %v1683
    %v1685 = vrot.slane %v1677, %v1684
    %v1687 = vunpack.c.l.s4 1934713408
    %v1688 = vunpack.c.0.s8 %v1687
    %v1689 = vlaneseq
    %v1690 = vshrl.u32 %v1689, 7
    %v1691 = vsub.s32 %v1688, %v1690
    %v1692 = vrot.slane %v1678, %v1691
    %v1693 = vcombine.high %v1669, 0.0
    %v1694 = vcombine.high %v1676, 0.0
    %v1695 = vcombine.high %v1685, 0.0
    %v1696 = vcombine.high %v1692, 0.0
    %v1697 = vcombine.low %v1669, %v1676
    %v1699 = vunpack.c.l.s4 1983009808
    %v1700 = vunpack.c.0.s8 %v1699
    %v1701 = vlaneseq
    %v1702 = vshrl.u32 %v1701, 7
    %v1703 = vsub.s32 %v1700, %v1702
    %v1704 = vrot.slane %v1697, %v1703
    %v1705 = vcombine.low %v1693, %v1694
    %v1707 = vunpack.c.l.s4 1983009808
    %v1708 = vunpack.c.0.s8 %v1707
    %v1709 = vlaneseq
    %v1710 = vshrl.u32 %v1709, 7
    %v1711 = vsub.s32 %v1708, %v1710
    %v1712 = vrot.slane %v1705, %v1711
    %v1713 = vcombine.low %v1685, %v1692
    %v1715 = vunpack.c.l.s4 1983009808
    %v1716 = vunpack.c.0.s8 %v1715
    %v1717 = vlaneseq
    %v1718 = vshrl.u32 %v1717, 7
    %v1719 = vsub.s32 %v1716, %v1718
    %v1720 = vrot.slane %v1713, %v1719
    %v1721 = vcombine.low %v1695, %v1696
    %v1723 = vunpack.c.l.s4 1983009808
    %v1724 = vunpack.c.0.s8 %v1723
    %v1725 = vlaneseq
    %v1726 = vshrl.u32 %v1725, 7
    %v1727 = vsub.s32 %v1724, %v1726
    %v1728 = vrot.slane %v1721, %v1727
    %v1729 = vcombine.low %v1704, %v1712
    %v1730 = vcombine.high %v1704, %v1712
    %v1732 = vunpack.c.l.s4 1934713408
    %v1733 = vunpack.c.0.s8 %v1732
    %v1734 = vlaneseq
    %v1735 = vshrl.u32 %v1734, 7
    %v1736 = vsub.s32 %v1733, %v1735
    %v1737 = vrot.slane %v1729, %v1736
    %v1739 = vunpack.c.l.s4 1934713408
    %v1740 = vunpack.c.0.s8 %v1739
    %v1741 = vlaneseq
    %v1742 = vshrl.u32 %v1741, 7
    %v1743 = vsub.s32 %v1740, %v1742
    %v1744 = vrot.slane %v1730, %v1743
    %v1745 = vcombine.low %v1720, %v1728
    %v1746 = vcombine.high %v1720, %v1728
    %v1748 = vunpack.c.l.s4 1934713408
    %v1749 = vunpack.c.0.s8 %v1748
    %v1750 = vlaneseq
    %v1751 = vshrl.u32 %v1750, 7
    %v1752 = vsub.s32 %v1749, %v1751
    %v1753 = vrot.slane %v1745, %v1752
    %v1755 = vunpack.c.l.s4 1934713408
    %v1756 = vunpack.c.0.s8 %v1755
    %v1757 = vlaneseq
    %v1758 = vshrl.u32 %v1757, 7
    %v1759 = vsub.s32 %v1756, %v1758
    %v1760 = vrot.slane %v1746, %v1759
    %v1761 = vcombine.low %v1737, %v1753
    %v1762 = vcombine.high %v1737, %v1753
    %v1763 = vcombine.low %v1744, %v1760
    %v1764 = vcombine.high %v1744, %v1760
    %1766 = vrot.lane.b32.xlu0 %v273, 96
    %v1767 = vpop.permute.xlu0 %1766
    %1769 = vrot.lane.b32.xlu0 %v273, 64
    %v1770 = vpop.permute.xlu0 %1769
    %1772 = vrot.lane.b32.xlu0 %v273, 32
    %v1773 = vpop.permute.xlu0 %1772
    %v1775 = vcombine.low %v273, %v1770
    %v1776 = vcombine.high %v273, %v1770
    %v1778 = vunpack.c.l.s4 1983009808
    %v1779 = vunpack.c.0.s8 %v1778
    %v1780 = vlaneseq
    %v1781 = vshrl.u32 %v1780, 7
    %v1782 = vsub.s32 %v1779, %v1781
    %v1783 = vrot.slane %v1775, %v1782
    %v1785 = vunpack.c.l.s4 1983009808
    %v1786 = vunpack.c.0.s8 %v1785
    %v1787 = vlaneseq
    %v1788 = vshrl.u32 %v1787, 7
    %v1789 = vsub.s32 %v1786, %v1788
    %v1790 = vrot.slane %v1776, %v1789
    %v1791 = vcombine.low %v1767, %v1773
    %v1792 = vcombine.high %v1767, %v1773
    %v1794 = vunpack.c.l.s4 1983009808
    %v1795 = vunpack.c.0.s8 %v1794
    %v1796 = vlaneseq
    %v1797 = vshrl.u32 %v1796, 7
    %v1798 = vsub.s32 %v1795, %v1797
    %v1799 = vrot.slane %v1791, %v1798
    %v1801 = vunpack.c.l.s4 1983009808
    %v1802 = vunpack.c.0.s8 %v1801
    %v1803 = vlaneseq
    %v1804 = vshrl.u32 %v1803, 7
    %v1805 = vsub.s32 %v1802, %v1804
    %v1806 = vrot.slane %v1792, %v1805
    %v1807 = vcombine.low %v1783, %v1799
    %v1808 = vcombine.high %v1783, %v1799
    %v1810 = vunpack.c.l.s4 1934713408
    %v1811 = vunpack.c.0.s8 %v1810
    %v1812 = vlaneseq
    %v1813 = vshrl.u32 %v1812, 7
    %v1814 = vsub.s32 %v1811, %v1813
    %v1815 = vrot.slane %v1807, %v1814
    %v1817 = vunpack.c.l.s4 1934713408
    %v1818 = vunpack.c.0.s8 %v1817
    %v1819 = vlaneseq
    %v1820 = vshrl.u32 %v1819, 7
    %v1821 = vsub.s32 %v1818, %v1820
    %v1822 = vrot.slane %v1808, %v1821
    %v1823 = vcombine.low %v1790, %v1806
    %v1824 = vcombine.high %v1790, %v1806
    %v1826 = vunpack.c.l.s4 1934713408
    %v1827 = vunpack.c.0.s8 %v1826
    %v1828 = vlaneseq
    %v1829 = vshrl.u32 %v1828, 7
    %v1830 = vsub.s32 %v1827, %v1829
    %v1831 = vrot.slane %v1823, %v1830
    %v1833 = vunpack.c.l.s4 1934713408
    %v1834 = vunpack.c.0.s8 %v1833
    %v1835 = vlaneseq
    %v1836 = vshrl.u32 %v1835, 7
    %v1837 = vsub.s32 %v1834, %v1836
    %v1838 = vrot.slane %v1824, %v1837
    %v1839 = vcombine.high %v1815, 0.0
    %v1840 = vcombine.high %v1822, 0.0
    %v1841 = vcombine.high %v1831, 0.0
    %v1842 = vcombine.high %v1838, 0.0
    %v1843 = vcombine.low %v1815, %v1822
    %v1845 = vunpack.c.l.s4 1983009808
    %v1846 = vunpack.c.0.s8 %v1845
    %v1847 = vlaneseq
    %v1848 = vshrl.u32 %v1847, 7
    %v1849 = vsub.s32 %v1846, %v1848
    %v1850 = vrot.slane %v1843, %v1849
    %v1851 = vcombine.low %v1839, %v1840
    %v1853 = vunpack.c.l.s4 1983009808
    %v1854 = vunpack.c.0.s8 %v1853
    %v1855 = vlaneseq
    %v1856 = vshrl.u32 %v1855, 7
    %v1857 = vsub.s32 %v1854, %v1856
    %v1858 = vrot.slane %v1851, %v1857
    %v1859 = vcombine.low %v1831, %v1838
    %v1861 = vunpack.c.l.s4 1983009808
    %v1862 = vunpack.c.0.s8 %v1861
    %v1863 = vlaneseq
    %v1864 = vshrl.u32 %v1863, 7
    %v1865 = vsub.s32 %v1862, %v1864
    %v1866 = vrot.slane %v1859, %v1865
    %v1867 = vcombine.low %v1841, %v1842
    %v1869 = vunpack.c.l.s4 1983009808
    %v1870 = vunpack.c.0.s8 %v1869
    %v1871 = vlaneseq
    %v1872 = vshrl.u32 %v1871, 7
    %v1873 = vsub.s32 %v1870, %v1872
    %v1874 = vrot.slane %v1867, %v1873
    %v1875 = vcombine.low %v1850, %v1858
    %v1876 = vcombine.high %v1850, %v1858
    %v1878 = vunpack.c.l.s4 1934713408
    %v1879 = vunpack.c.0.s8 %v1878
    %v1880 = vlaneseq
    %v1881 = vshrl.u32 %v1880, 7
    %v1882 = vsub.s32 %v1879, %v1881
    %v1883 = vrot.slane %v1875, %v1882
    %v1885 = vunpack.c.l.s4 1934713408
    %v1886 = vunpack.c.0.s8 %v1885
    %v1887 = vlaneseq
    %v1888 = vshrl.u32 %v1887, 7
    %v1889 = vsub.s32 %v1886, %v1888
    %v1890 = vrot.slane %v1876, %v1889
    %v1891 = vcombine.low %v1866, %v1874
    %v1892 = vcombine.high %v1866, %v1874
    %v1894 = vunpack.c.l.s4 1934713408
    %v1895 = vunpack.c.0.s8 %v1894
    %v1896 = vlaneseq
    %v1897 = vshrl.u32 %v1896, 7
    %v1898 = vsub.s32 %v1895, %v1897
    %v1899 = vrot.slane %v1891, %v1898
    %v1901 = vunpack.c.l.s4 1934713408
    %v1902 = vunpack.c.0.s8 %v1901
    %v1903 = vlaneseq
    %v1904 = vshrl.u32 %v1903, 7
    %v1905 = vsub.s32 %v1902, %v1904
    %v1906 = vrot.slane %v1892, %v1905
    %v1907 = vcombine.low %v1883, %v1899
    %v1908 = vcombine.high %v1883, %v1899
    %v1909 = vcombine.low %v1890, %v1906
    %v1910 = vcombine.high %v1890, %v1906
    %1912 = vrot.lane.b32.xlu0 %v347, 96
    %v1913 = vpop.permute.xlu0 %1912
    %1915 = vrot.lane.b32.xlu0 %v347, 64
    %v1916 = vpop.permute.xlu0 %1915
    %1918 = vrot.lane.b32.xlu0 %v347, 32
    %v1919 = vpop.permute.xlu0 %1918
    %v1921 = vcombine.low %v347, %v1916
    %v1922 = vcombine.high %v347, %v1916
    %v1924 = vunpack.c.l.s4 1983009808
    %v1925 = vunpack.c.0.s8 %v1924
    %v1926 = vlaneseq
    %v1927 = vshrl.u32 %v1926, 7
    %v1928 = vsub.s32 %v1925, %v1927
    %v1929 = vrot.slane %v1921, %v1928
    %v1931 = vunpack.c.l.s4 1983009808
    %v1932 = vunpack.c.0.s8 %v1931
    %v1933 = vlaneseq
    %v1934 = vshrl.u32 %v1933, 7
    %v1935 = vsub.s32 %v1932, %v1934
    %v1936 = vrot.slane %v1922, %v1935
    %v1937 = vcombine.low %v1913, %v1919
    %v1938 = vcombine.high %v1913, %v1919
    %v1940 = vunpack.c.l.s4 1983009808
    %v1941 = vunpack.c.0.s8 %v1940
    %v1942 = vlaneseq
    %v1943 = vshrl.u32 %v1942, 7
    %v1944 = vsub.s32 %v1941, %v1943
    %v1945 = vrot.slane %v1937, %v1944
    %v1947 = vunpack.c.l.s4 1983009808
    %v1948 = vunpack.c.0.s8 %v1947
    %v1949 = vlaneseq
    %v1950 = vshrl.u32 %v1949, 7
    %v1951 = vsub.s32 %v1948, %v1950
    %v1952 = vrot.slane %v1938, %v1951
    %v1953 = vcombine.low %v1929, %v1945
    %v1954 = vcombine.high %v1929, %v1945
    %v1956 = vunpack.c.l.s4 1934713408
    %v1957 = vunpack.c.0.s8 %v1956
    %v1958 = vlaneseq
    %v1959 = vshrl.u32 %v1958, 7
    %v1960 = vsub.s32 %v1957, %v1959
    %v1961 = vrot.slane %v1953, %v1960
    %v1963 = vunpack.c.l.s4 1934713408
    %v1964 = vunpack.c.0.s8 %v1963
    %v1965 = vlaneseq
    %v1966 = vshrl.u32 %v1965, 7
    %v1967 = vsub.s32 %v1964, %v1966
    %v1968 = vrot.slane %v1954, %v1967
    %v1969 = vcombine.low %v1936, %v1952
    %v1970 = vcombine.high %v1936, %v1952
    %v1972 = vunpack.c.l.s4 1934713408
    %v1973 = vunpack.c.0.s8 %v1972
    %v1974 = vlaneseq
    %v1975 = vshrl.u32 %v1974, 7
    %v1976 = vsub.s32 %v1973, %v1975
    %v1977 = vrot.slane %v1969, %v1976
    %v1979 = vunpack.c.l.s4 1934713408
    %v1980 = vunpack.c.0.s8 %v1979
    %v1981 = vlaneseq
    %v1982 = vshrl.u32 %v1981, 7
    %v1983 = vsub.s32 %v1980, %v1982
    %v1984 = vrot.slane %v1970, %v1983
    %v1985 = vcombine.high %v1961, 0.0
    %v1986 = vcombine.high %v1968, 0.0
    %v1987 = vcombine.high %v1977, 0.0
    %v1988 = vcombine.high %v1984, 0.0
    %v1989 = vcombine.low %v1961, %v1968
    %v1991 = vunpack.c.l.s4 1983009808
    %v1992 = vunpack.c.0.s8 %v1991
    %v1993 = vlaneseq
    %v1994 = vshrl.u32 %v1993, 7
    %v1995 = vsub.s32 %v1992, %v1994
    %v1996 = vrot.slane %v1989, %v1995
    %v1997 = vcombine.low %v1985, %v1986
    %v1999 = vunpack.c.l.s4 1983009808
    %v2000 = vunpack.c.0.s8 %v1999
    %v2001 = vlaneseq
    %v2002 = vshrl.u32 %v2001, 7
    %v2003 = vsub.s32 %v2000, %v2002
    %v2004 = vrot.slane %v1997, %v2003
    %v2005 = vcombine.low %v1977, %v1984
    %v2007 = vunpack.c.l.s4 1983009808
    %v2008 = vunpack.c.0.s8 %v2007
    %v2009 = vlaneseq
    %v2010 = vshrl.u32 %v2009, 7
    %v2011 = vsub.s32 %v2008, %v2010
    %v2012 = vrot.slane %v2005, %v2011
    %v2013 = vcombine.low %v1987, %v1988
    %v2015 = vunpack.c.l.s4 1983009808
    %v2016 = vunpack.c.0.s8 %v2015
    %v2017 = vlaneseq
    %v2018 = vshrl.u32 %v2017, 7
    %v2019 = vsub.s32 %v2016, %v2018
    %v2020 = vrot.slane %v2013, %v2019
    %v2021 = vcombine.low %v1996, %v2004
    %v2022 = vcombine.high %v1996, %v2004
    %v2024 = vunpack.c.l.s4 1934713408
    %v2025 = vunpack.c.0.s8 %v2024
    %v2026 = vlaneseq
    %v2027 = vshrl.u32 %v2026, 7
    %v2028 = vsub.s32 %v2025, %v2027
    %v2029 = vrot.slane %v2021, %v2028
    %v2031 = vunpack.c.l.s4 1934713408
    %v2032 = vunpack.c.0.s8 %v2031
    %v2033 = vlaneseq
    %v2034 = vshrl.u32 %v2033, 7
    %v2035 = vsub.s32 %v2032, %v2034
    %v2036 = vrot.slane %v2022, %v2035
    %v2037 = vcombine.low %v2012, %v2020
    %v2038 = vcombine.high %v2012, %v2020
    %v2040 = vunpack.c.l.s4 1934713408
    %v2041 = vunpack.c.0.s8 %v2040
    %v2042 = vlaneseq
    %v2043 = vshrl.u32 %v2042, 7
    %v2044 = vsub.s32 %v2041, %v2043
    %v2045 = vrot.slane %v2037, %v2044
    %v2047 = vunpack.c.l.s4 1934713408
    %v2048 = vunpack.c.0.s8 %v2047
    %v2049 = vlaneseq
    %v2050 = vshrl.u32 %v2049, 7
    %v2051 = vsub.s32 %v2048, %v2050
    %v2052 = vrot.slane %v2038, %v2051
    %v2053 = vcombine.low %v2029, %v2045
    %v2054 = vcombine.high %v2029, %v2045
    %v2055 = vcombine.low %v2036, %v2052
    %v2056 = vcombine.high %v2036, %v2052
    %v2058 = vsel %vm788, %v1761, 0
    %v2061 = vsel %vm788, %v1907, 0
    %2063 = vmatprep.subr.mxu0 0.0
    %2064 = vmatpush1.xpose.msra.mxu0 %v2061
    %2065 = vmatprep.subr.mxu0 0.0
    %2066 = vmatpush1.xpose.msra.mxu0 0.0
    %2067 = vmatprep.subr.mxu0 0.0
    %2068 = vmatpush1.xpose.msra.mxu0 0.0
    %2069 = vmatprep.subr.mxu0 0.0
    %2070 = vmatpush1.xpose.msra.mxu0 0.0
    %2071 = vmatprep.subr.mxu0 0.0
    %2072 = vmatpush1.xpose.msra.mxu0 0.0
    %2073 = vmatprep.subr.mxu0 0.0
    %2074 = vmatpush1.xpose.msra.mxu0 0.0
    %2075 = vmatprep.subr.mxu0 0.0
    %2076 = vmatpush1.xpose.msra.mxu0 0.0
    %2077 = vmatprep.subr.mxu0 0.0
    %2078 = vmatpush1.xpose.msra.mxu0 0.0
    %2079 = vmatprep.subr.mxu0 0.0
    %2080 = vmatpush1.xpose.msra.mxu0 0.0
    %2081 = vmatprep.subr.mxu0 0.0
    %2082 = vmatpush1.xpose.msra.mxu0 0.0
    %2083 = vmatprep.subr.mxu0 0.0
    %2084 = vmatpush1.xpose.msra.mxu0 0.0
    %2085 = vmatprep.subr.mxu0 0.0
    %2086 = vmatpush1.xpose.msra.mxu0 0.0
    %2087 = vmatprep.subr.mxu0 0.0
    %2088 = vmatpush1.xpose.msra.mxu0 0.0
    %2089 = vmatprep.subr.mxu0 0.0
    %2090 = vmatpush1.xpose.msra.mxu0 0.0
    %2091 = vmatprep.subr.mxu0 0.0
    %2092 = vmatpush1.xpose.msra.mxu0 0.0
    %2093 = vmatprep.subr.mxu0 0.0
    %2094 = vmatpush1.xpose.msra.mxu0 0.0
    %2095 = vmatprep.subr.mxu0 0.0
    %2096 = vmatpush1.xpose.msra.mxu0 0.0
    %2097 = vmatprep.subr.mxu0 0.0
    %2098 = vmatpush1.xpose.msra.mxu0 0.0
    %2099 = vmatprep.subr.mxu0 0.0
    %2100 = vmatpush1.xpose.msra.mxu0 0.0
    %2101 = vmatprep.subr.mxu0 0.0
    %2102 = vmatpush1.xpose.msra.mxu0 0.0
    %2103 = vmatprep.subr.mxu0 0.0
    %2104 = vmatpush1.xpose.msra.mxu0 0.0
    %2105 = vmatprep.subr.mxu0 0.0
    %2106 = vmatpush1.xpose.msra.mxu0 0.0
    %2107 = vmatprep.subr.mxu0 0.0
    %2108 = vmatpush1.xpose.msra.mxu0 0.0
    %2109 = vmatprep.subr.mxu0 0.0
    %2110 = vmatpush1.xpose.msra.mxu0 0.0
    %2111 = vmatprep.subr.mxu0 0.0
    %2112 = vmatpush1.xpose.msra.mxu0 0.0
    %2113 = vmatprep.subr.mxu0 0.0
    %2114 = vmatpush1.xpose.msra.mxu0 0.0
    %2115 = vmatprep.subr.mxu0 0.0
    %2116 = vmatpush1.xpose.msra.mxu0 0.0
    %2117 = vmatprep.subr.mxu0 0.0
    %2118 = vmatpush1.xpose.msra.mxu0 0.0
    %2119 = vmatprep.subr.mxu0 0.0
    %2120 = vmatpush1.xpose.msra.mxu0 0.0
    %2121 = vmatprep.subr.mxu0 0.0
    %2122 = vmatpush1.xpose.msra.mxu0 0.0
    %2123 = vmatprep.subr.mxu0 0.0
    %2124 = vmatpush1.xpose.msra.mxu0 0.0
    %2125 = vmatprep.subr.mxu0 0.0
    %2126 = vmatpush1.xpose.msra.mxu0 0.0
    %2127 = vmatprep.mubr.f32.mxu0 0.0
    %2128 = vmatmul.mubr.f32.gmra.mrb[0].mxu0 %v2058
    %v2129 = vpop.f32.mrb[0].mxu0
    %v2130 = vadd.f32 0.0, %v2129
    %v2131 = vpop.f32.mrb[0].mxu0
    %2132 = vdwg.mxu0
    %v2134 = vsel %vm788, %v1762, 0
    %v2137 = vsel %vm788, %v1908, 0
    %2139 = vmatprep.subr.mxu0 0.0
    %2140 = vmatpush1.xpose.msra.mxu0 %v2137
    %2141 = vmatprep.subr.mxu0 0.0
    %2142 = vmatpush1.xpose.msra.mxu0 0.0
    %2143 = vmatprep.subr.mxu0 0.0
    %2144 = vmatpush1.xpose.msra.mxu0 0.0
    %2145 = vmatprep.subr.mxu0 0.0
    %2146 = vmatpush1.xpose.msra.mxu0 0.0
    %2147 = vmatprep.subr.mxu0 0.0
    %2148 = vmatpush1.xpose.msra.mxu0 0.0
    %2149 = vmatprep.subr.mxu0 0.0
    %2150 = vmatpush1.xpose.msra.mxu0 0.0
    %2151 = vmatprep.subr.mxu0 0.0
    %2152 = vmatpush1.xpose.msra.mxu0 0.0
    %2153 = vmatprep.subr.mxu0 0.0
    %2154 = vmatpush1.xpose.msra.mxu0 0.0
    %2155 = vmatprep.subr.mxu0 0.0
    %2156 = vmatpush1.xpose.msra.mxu0 0.0
    %2157 = vmatprep.subr.mxu0 0.0
    %2158 = vmatpush1.xpose.msra.mxu0 0.0
    %2159 = vmatprep.subr.mxu0 0.0
    %2160 = vmatpush1.xpose.msra.mxu0 0.0
    %2161 = vmatprep.subr.mxu0 0.0
    %2162 = vmatpush1.xpose.msra.mxu0 0.0
    %2163 = vmatprep.subr.mxu0 0.0
    %2164 = vmatpush1.xpose.msra.mxu0 0.0
    %2165 = vmatprep.subr.mxu0 0.0
    %2166 = vmatpush1.xpose.msra.mxu0 0.0
    %2167 = vmatprep.subr.mxu0 0.0
    %2168 = vmatpush1.xpose.msra.mxu0 0.0
    %2169 = vmatprep.subr.mxu0 0.0
    %2170 = vmatpush1.xpose.msra.mxu0 0.0
    %2171 = vmatprep.subr.mxu0 0.0
    %2172 = vmatpush1.xpose.msra.mxu0 0.0
    %2173 = vmatprep.subr.mxu0 0.0
    %2174 = vmatpush1.xpose.msra.mxu0 0.0
    %2175 = vmatprep.subr.mxu0 0.0
    %2176 = vmatpush1.xpose.msra.mxu0 0.0
    %2177 = vmatprep.subr.mxu0 0.0
    %2178 = vmatpush1.xpose.msra.mxu0 0.0
    %2179 = vmatprep.subr.mxu0 0.0
    %2180 = vmatpush1.xpose.msra.mxu0 0.0
    %2181 = vmatprep.subr.mxu0 0.0
    %2182 = vmatpush1.xpose.msra.mxu0 0.0
    %2183 = vmatprep.subr.mxu0 0.0
    %2184 = vmatpush1.xpose.msra.mxu0 0.0
    %2185 = vmatprep.subr.mxu0 0.0
    %2186 = vmatpush1.xpose.msra.mxu0 0.0
    %2187 = vmatprep.subr.mxu0 0.0
    %2188 = vmatpush1.xpose.msra.mxu0 0.0
    %2189 = vmatprep.subr.mxu0 0.0
    %2190 = vmatpush1.xpose.msra.mxu0 0.0
    %2191 = vmatprep.subr.mxu0 0.0
    %2192 = vmatpush1.xpose.msra.mxu0 0.0
    %2193 = vmatprep.subr.mxu0 0.0
    %2194 = vmatpush1.xpose.msra.mxu0 0.0
    %2195 = vmatprep.subr.mxu0 0.0
    %2196 = vmatpush1.xpose.msra.mxu0 0.0
    %2197 = vmatprep.subr.mxu0 0.0
    %2198 = vmatpush1.xpose.msra.mxu0 0.0
    %2199 = vmatprep.subr.mxu0 0.0
    %2200 = vmatpush1.xpose.msra.mxu0 0.0
    %2201 = vmatprep.subr.mxu0 0.0
    %2202 = vmatpush1.xpose.msra.mxu0 0.0
    %2203 = vmatprep.mubr.f32.mxu0 0.0
    %2204 = vmatmul.mubr.f32.gmra.mrb[0].mxu0 %v2134
    %v2205 = vpop.f32.mrb[0].mxu0
    %v2206 = vadd.f32 0.0, %v2205
    %v2207 = vpop.f32.mrb[0].mxu0
    %2208 = vdwg.mxu0
    %v2210 = vsel %vm788, %v1763, 0
    %v2213 = vsel %vm788, %v1909, 0
    %2215 = vmatprep.subr.mxu0 0.0
    %2216 = vmatpush1.xpose.msra.mxu0 %v2213
    %2217 = vmatprep.subr.mxu0 0.0
    %2218 = vmatpush1.xpose.msra.mxu0 0.0
    %2219 = vmatprep.subr.mxu0 0.0
    %2220 = vmatpush1.xpose.msra.mxu0 0.0
    %2221 = vmatprep.subr.mxu0 0.0
    %2222 = vmatpush1.xpose.msra.mxu0 0.0
    %2223 = vmatprep.subr.mxu0 0.0
    %2224 = vmatpush1.xpose.msra.mxu0 0.0
    %2225 = vmatprep.subr.mxu0 0.0
    %2226 = vmatpush1.xpose.msra.mxu0 0.0
    %2227 = vmatprep.subr.mxu0 0.0
    %2228 = vmatpush1.xpose.msra.mxu0 0.0
    %2229 = vmatprep.subr.mxu0 0.0
    %2230 = vmatpush1.xpose.msra.mxu0 0.0
    %2231 = vmatprep.subr.mxu0 0.0
    %2232 = vmatpush1.xpose.msra.mxu0 0.0
    %2233 = vmatprep.subr.mxu0 0.0
    %2234 = vmatpush1.xpose.msra.mxu0 0.0
    %2235 = vmatprep.subr.mxu0 0.0
    %2236 = vmatpush1.xpose.msra.mxu0 0.0
    %2237 = vmatprep.subr.mxu0 0.0
    %2238 = vmatpush1.xpose.msra.mxu0 0.0
    %2239 = vmatprep.subr.mxu0 0.0
    %2240 = vmatpush1.xpose.msra.mxu0 0.0
    %2241 = vmatprep.subr.mxu0 0.0
    %2242 = vmatpush1.xpose.msra.mxu0 0.0
    %2243 = vmatprep.subr.mxu0 0.0
    %2244 = vmatpush1.xpose.msra.mxu0 0.0
    %2245 = vmatprep.subr.mxu0 0.0
    %2246 = vmatpush1.xpose.msra.mxu0 0.0
    %2247 = vmatprep.subr.mxu0 0.0
    %2248 = vmatpush1.xpose.msra.mxu0 0.0
    %2249 = vmatprep.subr.mxu0 0.0
    %2250 = vmatpush1.xpose.msra.mxu0 0.0
    %2251 = vmatprep.subr.mxu0 0.0
    %2252 = vmatpush1.xpose.msra.mxu0 0.0
    %2253 = vmatprep.subr.mxu0 0.0
    %2254 = vmatpush1.xpose.msra.mxu0 0.0
    %2255 = vmatprep.subr.mxu0 0.0
    %2256 = vmatpush1.xpose.msra.mxu0 0.0
    %2257 = vmatprep.subr.mxu0 0.0
    %2258 = vmatpush1.xpose.msra.mxu0 0.0
    %2259 = vmatprep.subr.mxu0 0.0
    %2260 = vmatpush1.xpose.msra.mxu0 0.0
    %2261 = vmatprep.subr.mxu0 0.0
    %2262 = vmatpush1.xpose.msra.mxu0 0.0
    %2263 = vmatprep.subr.mxu0 0.0
    %2264 = vmatpush1.xpose.msra.mxu0 0.0
    %2265 = vmatprep.subr.mxu0 0.0
    %2266 = vmatpush1.xpose.msra.mxu0 0.0
    %2267 = vmatprep.subr.mxu0 0.0
    %2268 = vmatpush1.xpose.msra.mxu0 0.0
    %2269 = vmatprep.subr.mxu0 0.0
    %2270 = vmatpush1.xpose.msra.mxu0 0.0
    %2271 = vmatprep.subr.mxu0 0.0
    %2272 = vmatpush1.xpose.msra.mxu0 0.0
    %2273 = vmatprep.subr.mxu0 0.0
    %2274 = vmatpush1.xpose.msra.mxu0 0.0
    %2275 = vmatprep.subr.mxu0 0.0
    %2276 = vmatpush1.xpose.msra.mxu0 0.0
    %2277 = vmatprep.subr.mxu0 0.0
    %2278 = vmatpush1.xpose.msra.mxu0 0.0
    %2279 = vmatprep.mubr.f32.mxu0 0.0
    %2280 = vmatmul.mubr.f32.gmra.mrb[0].mxu0 %v2210
    %v2281 = vpop.f32.mrb[0].mxu0
    %v2282 = vadd.f32 0.0, %v2281
    %v2283 = vpop.f32.mrb[0].mxu0
    %2284 = vdwg.mxu0
    %v2286 = vsel %vm788, %v1764, 0
    %v2289 = vsel %vm788, %v1910, 0
    %2291 = vmatprep.subr.mxu0 0.0
    %2292 = vmatpush1.xpose.msra.mxu0 %v2289
    %2293 = vmatprep.subr.mxu0 0.0
    %2294 = vmatpush1.xpose.msra.mxu0 0.0
    %2295 = vmatprep.subr.mxu0 0.0
    %2296 = vmatpush1.xpose.msra.mxu0 0.0
    %2297 = vmatprep.subr.mxu0 0.0
    %2298 = vmatpush1.xpose.msra.mxu0 0.0
    %2299 = vmatprep.subr.mxu0 0.0
    %2300 = vmatpush1.xpose.msra.mxu0 0.0
    %2301 = vmatprep.subr.mxu0 0.0
    %2302 = vmatpush1.xpose.msra.mxu0 0.0
    %2303 = vmatprep.subr.mxu0 0.0
    %2304 = vmatpush1.xpose.msra.mxu0 0.0
    %2305 = vmatprep.subr.mxu0 0.0
    %2306 = vmatpush1.xpose.msra.mxu0 0.0
    %2307 = vmatprep.subr.mxu0 0.0
    %2308 = vmatpush1.xpose.msra.mxu0 0.0
    %2309 = vmatprep.subr.mxu0 0.0
    %2310 = vmatpush1.xpose.msra.mxu0 0.0
    %2311 = vmatprep.subr.mxu0 0.0
    %2312 = vmatpush1.xpose.msra.mxu0 0.0
    %2313 = vmatprep.subr.mxu0 0.0
    %2314 = vmatpush1.xpose.msra.mxu0 0.0
    %2315 = vmatprep.subr.mxu0 0.0
    %2316 = vmatpush1.xpose.msra.mxu0 0.0
    %2317 = vmatprep.subr.mxu0 0.0
    %2318 = vmatpush1.xpose.msra.mxu0 0.0
    %2319 = vmatprep.subr.mxu0 0.0
    %2320 = vmatpush1.xpose.msra.mxu0 0.0
    %2321 = vmatprep.subr.mxu0 0.0
    %2322 = vmatpush1.xpose.msra.mxu0 0.0
    %2323 = vmatprep.subr.mxu0 0.0
    %2324 = vmatpush1.xpose.msra.mxu0 0.0
    %2325 = vmatprep.subr.mxu0 0.0
    %2326 = vmatpush1.xpose.msra.mxu0 0.0
    %2327 = vmatprep.subr.mxu0 0.0
    %2328 = vmatpush1.xpose.msra.mxu0 0.0
    %2329 = vmatprep.subr.mxu0 0.0
    %2330 = vmatpush1.xpose.msra.mxu0 0.0
    %2331 = vmatprep.subr.mxu0 0.0
    %2332 = vmatpush1.xpose.msra.mxu0 0.0
    %2333 = vmatprep.subr.mxu0 0.0
    %2334 = vmatpush1.xpose.msra.mxu0 0.0
    %2335 = vmatprep.subr.mxu0 0.0
    %2336 = vmatpush1.xpose.msra.mxu0 0.0
    %2337 = vmatprep.subr.mxu0 0.0
    %2338 = vmatpush1.xpose.msra.mxu0 0.0
    %2339 = vmatprep.subr.mxu0 0.0
    %2340 = vmatpush1.xpose.msra.mxu0 0.0
    %2341 = vmatprep.subr.mxu0 0.0
    %2342 = vmatpush1.xpose.msra.mxu0 0.0
    %2343 = vmatprep.subr.mxu0 0.0
    %2344 = vmatpush1.xpose.msra.mxu0 0.0
    %2345 = vmatprep.subr.mxu0 0.0
    %2346 = vmatpush1.xpose.msra.mxu0 0.0
    %2347 = vmatprep.subr.mxu0 0.0
    %2348 = vmatpush1.xpose.msra.mxu0 0.0
    %2349 = vmatprep.subr.mxu0 0.0
    %2350 = vmatpush1.xpose.msra.mxu0 0.0
    %2351 = vmatprep.subr.mxu0 0.0
    %2352 = vmatpush1.xpose.msra.mxu0 0.0
    %2353 = vmatprep.subr.mxu0 0.0
    %2354 = vmatpush1.xpose.msra.mxu0 0.0
    %2355 = vmatprep.mubr.f32.mxu0 0.0
    %2356 = vmatmul.mubr.f32.gmra.mrb[0].mxu0 %v2286
    %v2357 = vpop.f32.mrb[0].mxu0
    %v2358 = vadd.f32 0.0, %v2357
    %v2359 = vpop.f32.mrb[0].mxu0
    %2360 = vdwg.mxu0
    %v2361 = vmul.f32 %v2130, 0.17677669
    %v2362 = vmul.f32 %v2206, 0.17677669
    %v2363 = vmul.f32 %v2282, 0.17677669
    %v2364 = vmul.f32 %v2358, 0.17677669
    %v2365 = vsel %vm1097, %v2361, -inf
    %v2366 = vrot.slane %v2365, 4
    %v2367 = vmax.f32 %v2365, %v2366
    %v2368 = vrot.slane %v2367, 2
    %v2369 = vmax.f32 %v2367, %v2368
    %v2370 = vrot.slane %v2369, 1
    %v2371 = vmax.f32 %v2369, %v2370
    %v2372 = vsel %vm1097, %v2362, -inf
    %v2373 = vrot.slane %v2372, 4
    %v2374 = vmax.f32 %v2372, %v2373
    %v2375 = vrot.slane %v2374, 2
    %v2376 = vmax.f32 %v2374, %v2375
    %v2377 = vrot.slane %v2376, 1
    %v2378 = vmax.f32 %v2376, %v2377
    %v2379 = vsel %vm1097, %v2363, -inf
    %v2380 = vrot.slane %v2379, 4
    %v2381 = vmax.f32 %v2379, %v2380
    %v2382 = vrot.slane %v2381, 2
    %v2383 = vmax.f32 %v2381, %v2382
    %v2384 = vrot.slane %v2383, 1
    %v2385 = vmax.f32 %v2383, %v2384
    %v2386 = vsel %vm1097, %v2364, -inf
    %v2387 = vrot.slane %v2386, 4
    %v2388 = vmax.f32 %v2386, %v2387
    %v2389 = vrot.slane %v2388, 2
    %v2390 = vmax.f32 %v2388, %v2389
    %v2391 = vrot.slane %v2390, 1
    %v2392 = vmax.f32 %v2390, %v2391
    %v2393 = vsub.f32 %v2361, %v2371
    %v2394 = vsub.f32 %v2362, %v2378
    %v2395 = vsub.f32 %v2363, %v2385
    %v2396 = vsub.f32 %v2364, %v2392
    %v2397 = vmul.f32 %v2393, 1.442695
    %v2398 = vpow.pop %v2397
    %v2399 = vmul.f32 %v2394, 1.442695
    %v2400 = vpow.pop %v2399
    %v2401 = vmul.f32 %v2395, 1.442695
    %v2402 = vpow.pop %v2401
    %v2403 = vmul.f32 %v2396, 1.442695
    %v2404 = vpow.pop %v2403
    %v2405 = vsel %vm1097, %v2398, 0.0
    %v2406 = vrot.slane %v2405, 4
    %v2407 = vadd.f32 %v2405, %v2406
    %v2408 = vrot.slane %v2407, 2
    %v2409 = vadd.f32 %v2407, %v2408
    %v2410 = vrot.slane %v2409, 1
    %v2411 = vadd.f32 %v2409, %v2410
    %v2412 = vsel %vm1097, %v2400, 0.0
    %v2413 = vrot.slane %v2412, 4
    %v2414 = vadd.f32 %v2412, %v2413
    %v2415 = vrot.slane %v2414, 2
    %v2416 = vadd.f32 %v2414, %v2415
    %v2417 = vrot.slane %v2416, 1
    %v2418 = vadd.f32 %v2416, %v2417
    %v2419 = vsel %vm1097, %v2402, 0.0
    %v2420 = vrot.slane %v2419, 4
    %v2421 = vadd.f32 %v2419, %v2420
    %v2422 = vrot.slane %v2421, 2
    %v2423 = vadd.f32 %v2421, %v2422
    %v2424 = vrot.slane %v2423, 1
    %v2425 = vadd.f32 %v2423, %v2424
    %v2426 = vsel %vm1097, %v2404, 0.0
    %v2427 = vrot.slane %v2426, 4
    %v2428 = vadd.f32 %v2426, %v2427
    %v2429 = vrot.slane %v2428, 2
    %v2430 = vadd.f32 %v2428, %v2429
    %v2431 = vrot.slane %v2430, 1
    %v2432 = vadd.f32 %v2430, %v2431
    %v2433 = vrcp.pop %v2411
    %v2434 = vrcp.pop %v2418
    %v2435 = vrcp.pop %v2425
    %v2436 = vrcp.pop %v2432
    %v2437 = vmul.f32 %v2398, %v2433
    %v2438 = vmul.f32 %v2400, %v2434
    %v2439 = vmul.f32 %v2402, %v2435
    %v2440 = vmul.f32 %v2404, %v2436
    %v2442 = vsel %vm1097, %v2437, 0
    %2444 = vmatprep.subr.mxu0 0.0
    %2445 = vmatpush1.msra.mxu0 %v2053
    %2446 = vmatprep.subr.mxu0 0.0
    %2447 = vmatpush1.msra.mxu0 0.0
    %2448 = vmatprep.subr.mxu0 0.0
    %2449 = vmatpush1.msra.mxu0 0.0
    %2450 = vmatprep.subr.mxu0 0.0
    %2451 = vmatpush1.msra.mxu0 0.0
    %2452 = vmatprep.subr.mxu0 0.0
    %2453 = vmatpush1.msra.mxu0 0.0
    %2454 = vmatprep.subr.mxu0 0.0
    %2455 = vmatpush1.msra.mxu0 0.0
    %2456 = vmatprep.subr.mxu0 0.0
    %2457 = vmatpush1.msra.mxu0 0.0
    %2458 = vmatprep.subr.mxu0 0.0
    %2459 = vmatpush1.msra.mxu0 0.0
    %2460 = vmatprep.subr.mxu0 0.0
    %2461 = vmatpush1.msra.mxu0 0.0
    %2462 = vmatprep.subr.mxu0 0.0
    %2463 = vmatpush1.msra.mxu0 0.0
    %2464 = vmatprep.subr.mxu0 0.0
    %2465 = vmatpush1.msra.mxu0 0.0
    %2466 = vmatprep.subr.mxu0 0.0
    %2467 = vmatpush1.msra.mxu0 0.0
    %2468 = vmatprep.subr.mxu0 0.0
    %2469 = vmatpush1.msra.mxu0 0.0
    %2470 = vmatprep.subr.mxu0 0.0
    %2471 = vmatpush1.msra.mxu0 0.0
    %2472 = vmatprep.subr.mxu0 0.0
    %2473 = vmatpush1.msra.mxu0 0.0
    %2474 = vmatprep.subr.mxu0 0.0
    %2475 = vmatpush1.msra.mxu0 0.0
    %2476 = vmatprep.subr.mxu0 0.0
    %2477 = vmatpush1.msra.mxu0 0.0
    %2478 = vmatprep.subr.mxu0 0.0
    %2479 = vmatpush1.msra.mxu0 0.0
    %2480 = vmatprep.subr.mxu0 0.0
    %2481 = vmatpush1.msra.mxu0 0.0
    %2482 = vmatprep.subr.mxu0 0.0
    %2483 = vmatpush1.msra.mxu0 0.0
    %2484 = vmatprep.subr.mxu0 0.0
    %2485 = vmatpush1.msra.mxu0 0.0
    %2486 = vmatprep.subr.mxu0 0.0
    %2487 = vmatpush1.msra.mxu0 0.0
    %2488 = vmatprep.subr.mxu0 0.0
    %2489 = vmatpush1.msra.mxu0 0.0
    %2490 = vmatprep.subr.mxu0 0.0
    %2491 = vmatpush1.msra.mxu0 0.0
    %2492 = vmatprep.subr.mxu0 0.0
    %2493 = vmatpush1.msra.mxu0 0.0
    %2494 = vmatprep.subr.mxu0 0.0
    %2495 = vmatpush1.msra.mxu0 0.0
    %2496 = vmatprep.subr.mxu0 0.0
    %2497 = vmatpush1.msra.mxu0 0.0
    %2498 = vmatprep.subr.mxu0 0.0
    %2499 = vmatpush1.msra.mxu0 0.0
    %2500 = vmatprep.subr.mxu0 0.0
    %2501 = vmatpush1.msra.mxu0 0.0
    %2502 = vmatprep.subr.mxu0 0.0
    %2503 = vmatpush1.msra.mxu0 0.0
    %2504 = vmatprep.subr.mxu0 0.0
    %2505 = vmatpush1.msra.mxu0 0.0
    %2506 = vmatprep.subr.mxu0 0.0
    %2507 = vmatpush1.msra.mxu0 0.0
    %2508 = vmatprep.mubr.f32.mxu0 0.0
    %2509 = vmatmul.mubr.f32.gmra.mrb[0].mxu0 %v2442
    %v2510 = vpop.f32.mrb[0].mxu0
    %v2511 = vadd.f32 0.0, %v2510
    %v2512 = vpop.f32.mrb[0].mxu0
    %2513 = vdwg.mxu0
    %v2515 = vsel %vm1097, %v2438, 0
    %2517 = vmatprep.subr.mxu0 0.0
    %2518 = vmatpush1.msra.mxu0 %v2054
    %2519 = vmatprep.subr.mxu0 0.0
    %2520 = vmatpush1.msra.mxu0 0.0
    %2521 = vmatprep.subr.mxu0 0.0
    %2522 = vmatpush1.msra.mxu0 0.0
    %2523 = vmatprep.subr.mxu0 0.0
    %2524 = vmatpush1.msra.mxu0 0.0
    %2525 = vmatprep.subr.mxu0 0.0
    %2526 = vmatpush1.msra.mxu0 0.0
    %2527 = vmatprep.subr.mxu0 0.0
    %2528 = vmatpush1.msra.mxu0 0.0
    %2529 = vmatprep.subr.mxu0 0.0
    %2530 = vmatpush1.msra.mxu0 0.0
    %2531 = vmatprep.subr.mxu0 0.0
    %2532 = vmatpush1.msra.mxu0 0.0
    %2533 = vmatprep.subr.mxu0 0.0
    %2534 = vmatpush1.msra.mxu0 0.0
    %2535 = vmatprep.subr.mxu0 0.0
    %2536 = vmatpush1.msra.mxu0 0.0
    %2537 = vmatprep.subr.mxu0 0.0
    %2538 = vmatpush1.msra.mxu0 0.0
    %2539 = vmatprep.subr.mxu0 0.0
    %2540 = vmatpush1.msra.mxu0 0.0
    %2541 = vmatprep.subr.mxu0 0.0
    %2542 = vmatpush1.msra.mxu0 0.0
    %2543 = vmatprep.subr.mxu0 0.0
    %2544 = vmatpush1.msra.mxu0 0.0
    %2545 = vmatprep.subr.mxu0 0.0
    %2546 = vmatpush1.msra.mxu0 0.0
    %2547 = vmatprep.subr.mxu0 0.0
    %2548 = vmatpush1.msra.mxu0 0.0
    %2549 = vmatprep.subr.mxu0 0.0
    %2550 = vmatpush1.msra.mxu0 0.0
    %2551 = vmatprep.subr.mxu0 0.0
    %2552 = vmatpush1.msra.mxu0 0.0
    %2553 = vmatprep.subr.mxu0 0.0
    %2554 = vmatpush1.msra.mxu0 0.0
    %2555 = vmatprep.subr.mxu0 0.0
    %2556 = vmatpush1.msra.mxu0 0.0
    %2557 = vmatprep.subr.mxu0 0.0
    %2558 = vmatpush1.msra.mxu0 0.0
    %2559 = vmatprep.subr.mxu0 0.0
    %2560 = vmatpush1.msra.mxu0 0.0
    %2561 = vmatprep.subr.mxu0 0.0
    %2562 = vmatpush1.msra.mxu0 0.0
    %2563 = vmatprep.subr.mxu0 0.0
    %2564 = vmatpush1.msra.mxu0 0.0
    %2565 = vmatprep.subr.mxu0 0.0
    %2566 = vmatpush1.msra.mxu0 0.0
    %2567 = vmatprep.subr.mxu0 0.0
    %2568 = vmatpush1.msra.mxu0 0.0
    %2569 = vmatprep.subr.mxu0 0.0
    %2570 = vmatpush1.msra.mxu0 0.0
    %2571 = vmatprep.subr.mxu0 0.0
    %2572 = vmatpush1.msra.mxu0 0.0
    %2573 = vmatprep.subr.mxu0 0.0
    %2574 = vmatpush1.msra.mxu0 0.0
    %2575 = vmatprep.subr.mxu0 0.0
    %2576 = vmatpush1.msra.mxu0 0.0
    %2577 = vmatprep.subr.mxu0 0.0
    %2578 = vmatpush1.msra.mxu0 0.0
    %2579 = vmatprep.subr.mxu0 0.0
    %2580 = vmatpush1.msra.mxu0 0.0
    %2581 = vmatprep.mubr.f32.mxu0 0.0
    %2582 = vmatmul.mubr.f32.gmra.mrb[0].mxu0 %v2515
    %v2583 = vpop.f32.mrb[0].mxu0
    %v2584 = vadd.f32 0.0, %v2583
    %v2585 = vpop.f32.mrb[0].mxu0
    %2586 = vdwg.mxu0
    %v2588 = vsel %vm1097, %v2439, 0
    %2590 = vmatprep.subr.mxu0 0.0
    %2591 = vmatpush1.msra.mxu0 %v2055
    %2592 = vmatprep.subr.mxu0 0.0
    %2593 = vmatpush1.msra.mxu0 0.0
    %2594 = vmatprep.subr.mxu0 0.0
    %2595 = vmatpush1.msra.mxu0 0.0
    %2596 = vmatprep.subr.mxu0 0.0
    %2597 = vmatpush1.msra.mxu0 0.0
    %2598 = vmatprep.subr.mxu0 0.0
    %2599 = vmatpush1.msra.mxu0 0.0
    %2600 = vmatprep.subr.mxu0 0.0
    %2601 = vmatpush1.msra.mxu0 0.0
    %2602 = vmatprep.subr.mxu0 0.0
    %2603 = vmatpush1.msra.mxu0 0.0
    %2604 = vmatprep.subr.mxu0 0.0
    %2605 = vmatpush1.msra.mxu0 0.0
    %2606 = vmatprep.subr.mxu0 0.0
    %2607 = vmatpush1.msra.mxu0 0.0
    %2608 = vmatprep.subr.mxu0 0.0
    %2609 = vmatpush1.msra.mxu0 0.0
    %2610 = vmatprep.subr.mxu0 0.0
    %2611 = vmatpush1.msra.mxu0 0.0
    %2612 = vmatprep.subr.mxu0 0.0
    %2613 = vmatpush1.msra.mxu0 0.0
    %2614 = vmatprep.subr.mxu0 0.0
    %2615 = vmatpush1.msra.mxu0 0.0
    %2616 = vmatprep.subr.mxu0 0.0
    %2617 = vmatpush1.msra.mxu0 0.0
    %2618 = vmatprep.subr.mxu0 0.0
    %2619 = vmatpush1.msra.mxu0 0.0
    %2620 = vmatprep.subr.mxu0 0.0
    %2621 = vmatpush1.msra.mxu0 0.0
    %2622 = vmatprep.subr.mxu0 0.0
    %2623 = vmatpush1.msra.mxu0 0.0
    %2624 = vmatprep.subr.mxu0 0.0
    %2625 = vmatpush1.msra.mxu0 0.0
    %2626 = vmatprep.subr.mxu0 0.0
    %2627 = vmatpush1.msra.mxu0 0.0
    %2628 = vmatprep.subr.mxu0 0.0
    %2629 = vmatpush1.msra.mxu0 0.0
    %2630 = vmatprep.subr.mxu0 0.0
    %2631 = vmatpush1.msra.mxu0 0.0
    %2632 = vmatprep.subr.mxu0 0.0
    %2633 = vmatpush1.msra.mxu0 0.0
    %2634 = vmatprep.subr.mxu0 0.0
    %2635 = vmatpush1.msra.mxu0 0.0
    %2636 = vmatprep.subr.mxu0 0.0
    %2637 = vmatpush1.msra.mxu0 0.0
    %2638 = vmatprep.subr.mxu0 0.0
    %2639 = vmatpush1.msra.mxu0 0.0
    %2640 = vmatprep.subr.mxu0 0.0
    %2641 = vmatpush1.msra.mxu0 0.0
    %2642 = vmatprep.subr.mxu0 0.0
    %2643 = vmatpush1.msra.mxu0 0.0
    %2644 = vmatprep.subr.mxu0 0.0
    %2645 = vmatpush1.msra.mxu0 0.0
    %2646 = vmatprep.subr.mxu0 0.0
    %2647 = vmatpush1.msra.mxu0 0.0
    %2648 = vmatprep.subr.mxu0 0.0
    %2649 = vmatpush1.msra.mxu0 0.0
    %2650 = vmatprep.subr.mxu0 0.0
    %2651 = vmatpush1.msra.mxu0 0.0
    %2652 = vmatprep.subr.mxu0 0.0
    %2653 = vmatpush1.msra.mxu0 0.0
    %2654 = vmatprep.mubr.f32.mxu0 0.0
    %2655 = vmatmul.mubr.f32.gmra.mrb[0].mxu0 %v2588
    %v2656 = vpop.f32.mrb[0].mxu0
    %v2657 = vadd.f32 0.0, %v2656
    %v2658 = vpop.f32.mrb[0].mxu0
    %2659 = vdwg.mxu0
    %v2661 = vsel %vm1097, %v2440, 0
    %2663 = vmatprep.subr.mxu0 0.0
    %2664 = vmatpush1.msra.mxu0 %v2056
    %2665 = vmatprep.subr.mxu0 0.0
    %2666 = vmatpush1.msra.mxu0 0.0
    %2667 = vmatprep.subr.mxu0 0.0
    %2668 = vmatpush1.msra.mxu0 0.0
    %2669 = vmatprep.subr.mxu0 0.0
    %2670 = vmatpush1.msra.mxu0 0.0
    %2671 = vmatprep.subr.mxu0 0.0
    %2672 = vmatpush1.msra.mxu0 0.0
    %2673 = vmatprep.subr.mxu0 0.0
    %2674 = vmatpush1.msra.mxu0 0.0
    %2675 = vmatprep.subr.mxu0 0.0
    %2676 = vmatpush1.msra.mxu0 0.0
    %2677 = vmatprep.subr.mxu0 0.0
    %2678 = vmatpush1.msra.mxu0 0.0
    %2679 = vmatprep.subr.mxu0 0.0
    %2680 = vmatpush1.msra.mxu0 0.0
    %2681 = vmatprep.subr.mxu0 0.0
    %2682 = vmatpush1.msra.mxu0 0.0
    %2683 = vmatprep.subr.mxu0 0.0
    %2684 = vmatpush1.msra.mxu0 0.0
    %2685 = vmatprep.subr.mxu0 0.0
    %2686 = vmatpush1.msra.mxu0 0.0
    %2687 = vmatprep.subr.mxu0 0.0
    %2688 = vmatpush1.msra.mxu0 0.0
    %2689 = vmatprep.subr.mxu0 0.0
    %2690 = vmatpush1.msra.mxu0 0.0
    %2691 = vmatprep.subr.mxu0 0.0
    %2692 = vmatpush1.msra.mxu0 0.0
    %2693 = vmatprep.subr.mxu0 0.0
    %2694 = vmatpush1.msra.mxu0 0.0
    %2695 = vmatprep.subr.mxu0 0.0
    %2696 = vmatpush1.msra.mxu0 0.0
    %2697 = vmatprep.subr.mxu0 0.0
    %2698 = vmatpush1.msra.mxu0 0.0
    %2699 = vmatprep.subr.mxu0 0.0
    %2700 = vmatpush1.msra.mxu0 0.0
    %2701 = vmatprep.subr.mxu0 0.0
    %2702 = vmatpush1.msra.mxu0 0.0
    %2703 = vmatprep.subr.mxu0 0.0
    %2704 = vmatpush1.msra.mxu0 0.0
    %2705 = vmatprep.subr.mxu0 0.0
    %2706 = vmatpush1.msra.mxu0 0.0
    %2707 = vmatprep.subr.mxu0 0.0
    %2708 = vmatpush1.msra.mxu0 0.0
    %2709 = vmatprep.subr.mxu0 0.0
    %2710 = vmatpush1.msra.mxu0 0.0
    %2711 = vmatprep.subr.mxu0 0.0
    %2712 = vmatpush1.msra.mxu0 0.0
    %2713 = vmatprep.subr.mxu0 0.0
    %2714 = vmatpush1.msra.mxu0 0.0
    %2715 = vmatprep.subr.mxu0 0.0
    %2716 = vmatpush1.msra.mxu0 0.0
    %2717 = vmatprep.subr.mxu0 0.0
    %2718 = vmatpush1.msra.mxu0 0.0
    %2719 = vmatprep.subr.mxu0 0.0
    %2720 = vmatpush1.msra.mxu0 0.0
    %2721 = vmatprep.subr.mxu0 0.0
    %2722 = vmatpush1.msra.mxu0 0.0
    %2723 = vmatprep.subr.mxu0 0.0
    %2724 = vmatpush1.msra.mxu0 0.0
    %2725 = vmatprep.subr.mxu0 0.0
    %2726 = vmatpush1.msra.mxu0 0.0
    %2727 = vmatprep.mubr.f32.mxu0 0.0
    %2728 = vmatmul.mubr.f32.gmra.mrb[0].mxu0 %v2661
    %v2729 = vpop.f32.mrb[0].mxu0
    %v2730 = vadd.f32 0.0, %v2729
    %v2731 = vpop.f32.mrb[0].mxu0
    %2732 = vdwg.mxu0
    %v2733 = vcombine.low %v2511, %v2657
    %v2734 = vcombine.high %v2511, %v2657
    %v2736 = vunpack.c.l.s4 1983009808
    %v2737 = vunpack.c.0.s8 %v2736
    %v2738 = vlaneseq
    %v2739 = vshrl.u32 %v2738, 7
    %v2740 = vsub.s32 %v2737, %v2739
    %v2741 = vrot.slane %v2733, %v2740
    %v2743 = vunpack.c.l.s4 1983009808
    %v2744 = vunpack.c.0.s8 %v2743
    %v2745 = vlaneseq
    %v2746 = vshrl.u32 %v2745, 7
    %v2747 = vsub.s32 %v2744, %v2746
    %v2748 = vrot.slane %v2734, %v2747
    %v2749 = vcombine.low %v2584, %v2730
    %v2750 = vcombine.high %v2584, %v2730
    %v2752 = vunpack.c.l.s4 1983009808
    %v2753 = vunpack.c.0.s8 %v2752
    %v2754 = vlaneseq
    %v2755 = vshrl.u32 %v2754, 7
    %v2756 = vsub.s32 %v2753, %v2755
    %v2757 = vrot.slane %v2749, %v2756
    %v2759 = vunpack.c.l.s4 1983009808
    %v2760 = vunpack.c.0.s8 %v2759
    %v2761 = vlaneseq
    %v2762 = vshrl.u32 %v2761, 7
    %v2763 = vsub.s32 %v2760, %v2762
    %v2764 = vrot.slane %v2750, %v2763
    %v2765 = vcombine.low %v2741, %v2757
    %v2766 = vcombine.high %v2741, %v2757
    %v2768 = vunpack.c.l.s4 1934713408
    %v2769 = vunpack.c.0.s8 %v2768
    %v2770 = vlaneseq
    %v2771 = vshrl.u32 %v2770, 7
    %v2772 = vsub.s32 %v2769, %v2771
    %v2773 = vrot.slane %v2765, %v2772
    %v2775 = vunpack.c.l.s4 1934713408
    %v2776 = vunpack.c.0.s8 %v2775
    %v2777 = vlaneseq
    %v2778 = vshrl.u32 %v2777, 7
    %v2779 = vsub.s32 %v2776, %v2778
    %v2780 = vrot.slane %v2766, %v2779
    %v2781 = vcombine.low %v2748, %v2764
    %v2782 = vcombine.high %v2748, %v2764
    %v2784 = vunpack.c.l.s4 1934713408
    %v2785 = vunpack.c.0.s8 %v2784
    %v2786 = vlaneseq
    %v2787 = vshrl.u32 %v2786, 7
    %v2788 = vsub.s32 %v2785, %v2787
    %v2789 = vrot.slane %v2781, %v2788
    %v2791 = vunpack.c.l.s4 1934713408
    %v2792 = vunpack.c.0.s8 %v2791
    %v2793 = vlaneseq
    %v2794 = vshrl.u32 %v2793, 7
    %v2795 = vsub.s32 %v2792, %v2794
    %v2796 = vrot.slane %v2782, %v2795
    %v2797 = vcombine.high %v2773, 0.0
    %v2798 = vcombine.high %v2780, 0.0
    %v2799 = vcombine.high %v2789, 0.0
    %v2800 = vcombine.high %v2796, 0.0
    %v2801 = vcombine.low %v2773, %v2780
    %v2803 = vunpack.c.l.s4 1983009808
    %v2804 = vunpack.c.0.s8 %v2803
    %v2805 = vlaneseq
    %v2806 = vshrl.u32 %v2805, 7
    %v2807 = vsub.s32 %v2804, %v2806
    %v2808 = vrot.slane %v2801, %v2807
    %v2809 = vcombine.low %v2797, %v2798
    %v2811 = vunpack.c.l.s4 1983009808
    %v2812 = vunpack.c.0.s8 %v2811
    %v2813 = vlaneseq
    %v2814 = vshrl.u32 %v2813, 7
    %v2815 = vsub.s32 %v2812, %v2814
    %v2816 = vrot.slane %v2809, %v2815
    %v2817 = vcombine.low %v2789, %v2796
    %v2819 = vunpack.c.l.s4 1983009808
    %v2820 = vunpack.c.0.s8 %v2819
    %v2821 = vlaneseq
    %v2822 = vshrl.u32 %v2821, 7
    %v2823 = vsub.s32 %v2820, %v2822
    %v2824 = vrot.slane %v2817, %v2823
    %v2825 = vcombine.low %v2799, %v2800
    %v2827 = vunpack.c.l.s4 1983009808
    %v2828 = vunpack.c.0.s8 %v2827
    %v2829 = vlaneseq
    %v2830 = vshrl.u32 %v2829, 7
    %v2831 = vsub.s32 %v2828, %v2830
    %v2832 = vrot.slane %v2825, %v2831
    %v2833 = vcombine.low %v2808, %v2816
    %v2834 = vcombine.high %v2808, %v2816
    %v2836 = vunpack.c.l.s4 1934713408
    %v2837 = vunpack.c.0.s8 %v2836
    %v2838 = vlaneseq
    %v2839 = vshrl.u32 %v2838, 7
    %v2840 = vsub.s32 %v2837, %v2839
    %v2841 = vrot.slane %v2833, %v2840
    %v2843 = vunpack.c.l.s4 1934713408
    %v2844 = vunpack.c.0.s8 %v2843
    %v2845 = vlaneseq
    %v2846 = vshrl.u32 %v2845, 7
    %v2847 = vsub.s32 %v2844, %v2846
    %v2848 = vrot.slane %v2834, %v2847
    %v2849 = vcombine.low %v2824, %v2832
    %v2850 = vcombine.high %v2824, %v2832
    %v2852 = vunpack.c.l.s4 1934713408
    %v2853 = vunpack.c.0.s8 %v2852
    %v2854 = vlaneseq
    %v2855 = vshrl.u32 %v2854, 7
    %v2856 = vsub.s32 %v2853, %v2855
    %v2857 = vrot.slane %v2849, %v2856
    %v2859 = vunpack.c.l.s4 1934713408
    %v2860 = vunpack.c.0.s8 %v2859
    %v2861 = vlaneseq
    %v2862 = vshrl.u32 %v2861, 7
    %v2863 = vsub.s32 %v2860, %v2862
    %v2864 = vrot.slane %v2850, %v2863
    %v2865 = vcombine.low %v2841, %v2857
    %v2866 = vcombine.high %v2841, %v2857
    %v2867 = vcombine.low %v2848, %v2864
    %v2868 = vcombine.high %v2848, %v2864
    %2870 = vrot.lane.b32.xlu0 %v2866, 32
    %v2871 = vpop.permute.xlu0 %2870
    %2874 = vrot.lane.b32.xlu0 %v2867, 64
    %v2875 = vpop.permute.xlu0 %2874
    %2878 = vrot.lane.b32.xlu0 %v2868, 96
    %v2879 = vpop.permute.xlu0 %2878
    %v2881 = vsel %vm788, %v2865, %v2871
    %v2882 = vsel %vm1615, %v2881, %v2875
    %v2883 = vsel %vm1617, %v2882, %v2879
    %v2884 = vld [vmem:[#allocation7] sm:$0xff]
    %v2885 = vld [vmem:[#allocation7 + $0x8] sm:$0xff]
    %v2886 = vld [vmem:[#allocation7 + $0x10] sm:$0xff]
    %v2887 = vld [vmem:[#allocation7 + $0x18] sm:$0xff]
    %v2888 = vld [vmem:[#allocation7 + $0x20] sm:$0xff]
    %v2889 = vld [vmem:[#allocation7 + $0x28] sm:$0xff]
    %v2890 = vld [vmem:[#allocation7 + $0x30] sm:$0xff]
    %v2891 = vld [vmem:[#allocation7 + $0x38] sm:$0xff]
    %v2892 = vld [vmem:[#allocation7 + $0x40] sm:$0xff]
    %v2893 = vld [vmem:[#allocation7 + $0x48] sm:$0xff]
    %v2894 = vld [vmem:[#allocation7 + $0x50] sm:$0xff]
    %v2895 = vld [vmem:[#allocation7 + $0x58] sm:$0xff]
    %v2896 = vld [vmem:[#allocation7 + $0x60] sm:$0xff]
    %v2897 = vld [vmem:[#allocation7 + $0x68] sm:$0xff]
    %v2898 = vld [vmem:[#allocation7 + $0x70] sm:$0xff]
    %v2899 = vld [vmem:[#allocation7 + $0x78] sm:$0xff]
    %2900 = vmatprep.subr.mxu0 0.0
    %2901 = vmatpush1.msra.mxu0 %v2884
    %2902 = vmatprep.subr.mxu0 0.0
    %2903 = vmatpush1.msra.mxu0 %v2885
    %2904 = vmatprep.subr.mxu0 0.0
    %2905 = vmatpush1.msra.mxu0 %v2886
    %2906 = vmatprep.subr.mxu0 0.0
    %2907 = vmatpush1.msra.mxu0 %v2887
    %2908 = vmatprep.subr.mxu0 0.0
    %2909 = vmatpush1.msra.mxu0 %v2888
    %2910 = vmatprep.subr.mxu0 0.0
    %2911 = vmatpush1.msra.mxu0 %v2889
    %2912 = vmatprep.subr.mxu0 0.0
    %2913 = vmatpush1.msra.mxu0 %v2890
    %2914 = vmatprep.subr.mxu0 0.0
    %2915 = vmatpush1.msra.mxu0 %v2891
    %2916 = vmatprep.subr.mxu0 0.0
    %2917 = vmatpush1.msra.mxu0 %v2892
    %2918 = vmatprep.subr.mxu0 0.0
    %2919 = vmatpush1.msra.mxu0 %v2893
    %2920 = vmatprep.subr.mxu0 0.0
    %2921 = vmatpush1.msra.mxu0 %v2894
    %2922 = vmatprep.subr.mxu0 0.0
    %2923 = vmatpush1.msra.mxu0 %v2895
    %2924 = vmatprep.subr.mxu0 0.0
    %2925 = vmatpush1.msra.mxu0 %v2896
    %2926 = vmatprep.subr.mxu0 0.0
    %2927 = vmatpush1.msra.mxu0 %v2897
    %2928 = vmatprep.subr.mxu0 0.0
    %2929 = vmatpush1.msra.mxu0 %v2898
    %2930 = vmatprep.subr.mxu0 0.0
    %2931 = vmatpush1.msra.mxu0 %v2899
    %2932 = vmatprep.subr.mxu0 0.0
    %2933 = vmatpush1.msra.mxu0 0.0
    %2934 = vmatprep.subr.mxu0 0.0
    %2935 = vmatpush1.msra.mxu0 0.0
    %2936 = vmatprep.subr.mxu0 0.0
    %2937 = vmatpush1.msra.mxu0 0.0
    %2938 = vmatprep.subr.mxu0 0.0
    %2939 = vmatpush1.msra.mxu0 0.0
    %2940 = vmatprep.subr.mxu0 0.0
    %2941 = vmatpush1.msra.mxu0 0.0
    %2942 = vmatprep.subr.mxu0 0.0
    %2943 = vmatpush1.msra.mxu0 0.0
    %2944 = vmatprep.subr.mxu0 0.0
    %2945 = vmatpush1.msra.mxu0 0.0
    %2946 = vmatprep.subr.mxu0 0.0
    %2947 = vmatpush1.msra.mxu0 0.0
    %2948 = vmatprep.subr.mxu0 0.0
    %2949 = vmatpush1.msra.mxu0 0.0
    %2950 = vmatprep.subr.mxu0 0.0
    %2951 = vmatpush1.msra.mxu0 0.0
    %2952 = vmatprep.subr.mxu0 0.0
    %2953 = vmatpush1.msra.mxu0 0.0
    %2954 = vmatprep.subr.mxu0 0.0
    %2955 = vmatpush1.msra.mxu0 0.0
    %2956 = vmatprep.subr.mxu0 0.0
    %2957 = vmatpush1.msra.mxu0 0.0
    %2958 = vmatprep.subr.mxu0 0.0
    %2959 = vmatpush1.msra.mxu0 0.0
    %2960 = vmatprep.subr.mxu0 0.0
    %2961 = vmatpush1.msra.mxu0 0.0
    %2962 = vmatprep.subr.mxu0 0.0
    %2963 = vmatpush1.msra.mxu0 0.0
    %2964 = vmatprep.mubr.f32.mxu0 0.0
    %2965 = vmatmul.mubr.f32.gmra.mrb[0].mxu0 %v1618
    %v2966 = vpop.f32.mrb[0].mxu0
    %v2967 = vadd.f32 0.0, %v2966
    %v2968 = vpop.f32.mrb[0].mxu0
    %2969 = vmatprep.mubr.f32.mxu0 0.0
    %2970 = vmatmul.mubr.f32.gmra.mrb[0].mxu0 %v2883
    %v2971 = vpop.f32.mrb[0].mxu0
    %v2972 = vadd.f32 0.0, %v2971
    %v2973 = vpop.f32.mrb[0].mxu0
    %2974 = vdwg.mxu0
    %v2975 = vadd.f32 %v107, %v2967
    %v2976 = vadd.f32 %v108, %v2972
    %v2977 = vld [vmem:[%s5] sm:$0x1]
    %v2978 = vld [vmem:[%s6] sm:$0x1]
    %2979 = vadd.xlane.f32.xlu0 %v2975
    %v2980 = vpop.xlane.xlu0 %2979
    %2981 = vadd.xlane.f32.xlu0 %v2976
    %v2982 = vpop.xlane.xlu0 %2981
    %v2983 = vmul.f32 %v2980, %v115
    %v2984 = vmul.f32 %v2982, %v115
    %v2985 = vsub.f32 %v2975, %v2983
    %v2986 = vsub.f32 %v2976, %v2984
    %v2987 = vmul.f32 %v2985, %v2985
    %v2988 = vmul.f32 %v2986, %v2986
    %2989 = vadd.xlane.f32.xlu0 %v2987
    %v2990 = vpop.xlane.xlu0 %2989
    %2991 = vadd.xlane.f32.xlu0 %v2988
    %v2992 = vpop.xlane.xlu0 %2991
    %v2993 = vmul.f32 %v2990, %v115
    %v2994 = vmul.f32 %v2992, %v115
    %v2995 = vadd.f32 %v2993, 1e-05
    %v2996 = vadd.f32 %v2994, 1e-05
    %v2997 = vrsqrt.pop %v2995
    %v2998 = vrsqrt.pop %v2996
    %v2999 = vmul.f32 %v2985, %v2997
    %v3000 = vmul.f32 %v2986, %v2998
    %v3002 = vlaneseq
    %v3003 = vshrl.u32 %v3002, 7
    %v3004 = vsub.s32 0, %v3003
    %v3005 = vrot.slane %v2977, %v3004
    %v3007 = vmul.f32 %v2999, %v3005
    %v3008 = vmul.f32 %v3000, %v3005
    %v3010 = vlaneseq
    %v3011 = vshrl.u32 %v3010, 7
    %v3012 = vsub.s32 0, %v3011
    %v3013 = vrot.slane %v2978, %v3012
    %v3015 = vadd.f32 %v3007, %v3013
    %v3016 = vadd.f32 %v3008, %v3013
    %v3017 = vld [vmem:[#allocation8] sm:$0xff]
    %v3018 = vld [vmem:[#allocation8 + $0x8] sm:$0xff]
    %v3019 = vld [vmem:[#allocation8 + $0x10] sm:$0xff]
    %v3020 = vld [vmem:[#allocation8 + $0x18] sm:$0xff]
    %v3021 = vld [vmem:[#allocation8 + $0x20] sm:$0xff]
    %v3022 = vld [vmem:[#allocation8 + $0x28] sm:$0xff]
    %v3023 = vld [vmem:[#allocation8 + $0x30] sm:$0xff]
    %v3024 = vld [vmem:[#allocation8 + $0x38] sm:$0xff]
    %v3025 = vld [vmem:[#allocation8 + $0x40] sm:$0xff]
    %v3026 = vld [vmem:[#allocation8 + $0x48] sm:$0xff]
    %v3027 = vld [vmem:[#allocation8 + $0x50] sm:$0xff]
    %v3028 = vld [vmem:[#allocation8 + $0x58] sm:$0xff]
    %v3029 = vld [vmem:[#allocation8 + $0x60] sm:$0xff]
    %v3030 = vld [vmem:[#allocation8 + $0x68] sm:$0xff]
    %v3031 = vld [vmem:[#allocation8 + $0x70] sm:$0xff]
    %v3032 = vld [vmem:[#allocation8 + $0x78] sm:$0xff]
    %v3033 = vld [vmem:[#allocation8 + $0x80] sm:$0xff]
    %v3034 = vld [vmem:[#allocation8 + $0x88] sm:$0xff]
    %v3035 = vld [vmem:[#allocation8 + $0x90] sm:$0xff]
    %v3036 = vld [vmem:[#allocation8 + $0x98] sm:$0xff]
    %v3037 = vld [vmem:[#allocation8 + $0xa0] sm:$0xff]
    %v3038 = vld [vmem:[#allocation8 + $0xa8] sm:$0xff]
    %v3039 = vld [vmem:[#allocation8 + $0xb0] sm:$0xff]
    %v3040 = vld [vmem:[#allocation8 + $0xb8] sm:$0xff]
    %v3041 = vld [vmem:[#allocation8 + $0xc0] sm:$0xff]
    %v3042 = vld [vmem:[#allocation8 + $0xc8] sm:$0xff]
    %v3043 = vld [vmem:[#allocation8 + $0xd0] sm:$0xff]
    %v3044 = vld [vmem:[#allocation8 + $0xd8] sm:$0xff]
    %v3045 = vld [vmem:[#allocation8 + $0xe0] sm:$0xff]
    %v3046 = vld [vmem:[#allocation8 + $0xe8] sm:$0xff]
    %v3047 = vld [vmem:[#allocation8 + $0xf0] sm:$0xff]
    %v3048 = vld [vmem:[#allocation8 + $0xf8] sm:$0xff]
    %v3049 = vld [vmem:[%s8] sm:$0x3]
    %v3051 = vlaneseq
    %v3052 = vshrl.u32 %v3051, 7
    %v3053 = vsub.s32 0, %v3052
    %v3054 = vrot.slane %v3049, %v3053
    %v3055 = vlaneseq
    %v3056 = vshrl.u32 %v3055, 7
    %v3057 = vsub.s32 1, %v3056
    %v3058 = vrot.slane %v3049, %v3057
    %3061 = vmatprep.subr.mxu0 %v3018
    %3062 = vmatpush1.msra.mxu0 %v3017
    %3063 = vmatprep.subr.mxu0 %v3020
    %3064 = vmatpush1.msra.mxu0 %v3019
    %3065 = vmatprep.subr.mxu0 %v3022
    %3066 = vmatpush1.msra.mxu0 %v3021
    %3067 = vmatprep.subr.mxu0 %v3024
    %3068 = vmatpush1.msra.mxu0 %v3023
    %3069 = vmatprep.subr.mxu0 %v3026
    %3070 = vmatpush1.msra.mxu0 %v3025
    %3071 = vmatprep.subr.mxu0 %v3028
    %3072 = vmatpush1.msra.mxu0 %v3027
    %3073 = vmatprep.subr.mxu0 %v3030
    %3074 = vmatpush1.msra.mxu0 %v3029
    %3075 = vmatprep.subr.mxu0 %v3032
    %3076 = vmatpush1.msra.mxu0 %v3031
    %3077 = vmatprep.subr.mxu0 %v3034
    %3078 = vmatpush1.msra.mxu0 %v3033
    %3079 = vmatprep.subr.mxu0 %v3036
    %3080 = vmatpush1.msra.mxu0 %v3035
    %3081 = vmatprep.subr.mxu0 %v3038
    %3082 = vmatpush1.msra.mxu0 %v3037
    %3083 = vmatprep.subr.mxu0 %v3040
    %3084 = vmatpush1.msra.mxu0 %v3039
    %3085 = vmatprep.subr.mxu0 %v3042
    %3086 = vmatpush1.msra.mxu0 %v3041
    %3087 = vmatprep.subr.mxu0 %v3044
    %3088 = vmatpush1.msra.mxu0 %v3043
    %3089 = vmatprep.subr.mxu0 %v3046
    %3090 = vmatpush1.msra.mxu0 %v3045
    %3091 = vmatprep.subr.mxu0 %v3048
    %3092 = vmatpush1.msra.mxu0 %v3047
    %3093 = vmatprep.subr.mxu0 0.0
    %3094 = vmatpush1.msra.mxu0 0.0
    %3095 = vmatprep.subr.mxu0 0.0
    %3096 = vmatpush1.msra.mxu0 0.0
    %3097 = vmatprep.subr.mxu0 0.0
    %3098 = vmatpush1.msra.mxu0 0.0
    %3099 = vmatprep.subr.mxu0 0.0
    %3100 = vmatpush1.msra.mxu0 0.0
    %3101 = vmatprep.subr.mxu0 0.0
    %3102 = vmatpush1.msra.mxu0 0.0
    %3103 = vmatprep.subr.mxu0 0.0
    %3104 = vmatpush1.msra.mxu0 0.0
    %3105 = vmatprep.subr.mxu0 0.0
    %3106 = vmatpush1.msra.mxu0 0.0
    %3107 = vmatprep.subr.mxu0 0.0
    %3108 = vmatpush1.msra.mxu0 0.0
    %3109 = vmatprep.subr.mxu0 0.0
    %3110 = vmatpush1.msra.mxu0 0.0
    %3111 = vmatprep.subr.mxu0 0.0
    %3112 = vmatpush1.msra.mxu0 0.0
    %3113 = vmatprep.subr.mxu0 0.0
    %3114 = vmatpush1.msra.mxu0 0.0
    %3115 = vmatprep.subr.mxu0 0.0
    %3116 = vmatpush1.msra.mxu0 0.0
    %3117 = vmatprep.subr.mxu0 0.0
    %3118 = vmatpush1.msra.mxu0 0.0
    %3119 = vmatprep.subr.mxu0 0.0
    %3120 = vmatpush1.msra.mxu0 0.0
    %3121 = vmatprep.subr.mxu0 0.0
    %3122 = vmatpush1.msra.mxu0 0.0
    %3123 = vmatprep.subr.mxu0 0.0
    %3124 = vmatpush1.msra.mxu0 0.0
    %3125 = vmatprep.mubr.f32.mxu0 0.0
    %3126 = vmatmul.mubr.f32.gmra.mrb[0].mxu0 %v3015
    %v3127 = vpop.f32.mrb[0].mxu0
    %v3128 = vadd.f32 %v3054, %v3127
    %v3129 = vpop.f32.mrb[0].mxu0
    %v3130 = vadd.f32 %v3058, %v3129
    %3131 = vmatprep.mubr.f32.mxu0 0.0
    %3132 = vmatmul.mubr.f32.gmra.mrb[0].mxu0 %v3016
    %v3133 = vpop.f32.mrb[0].mxu0
    %v3134 = vadd.f32 %v3054, %v3133
    %v3135 = vpop.f32.mrb[0].mxu0
    %v3136 = vadd.f32 %v3058, %v3135
    %3137 = vdwg.mxu0
    %v3138 = vmul.f32 %v3128, 0.5
    %v3139 = vmul.f32 %v3130, 0.5
    %v3140 = vmul.f32 %v3134, 0.5
    %v3141 = vmul.f32 %v3136, 0.5
    %v3142 = vmul.f32 %v3128, 0.044715
    %v3143 = vmul.f32 %v3130, 0.044715
    %v3144 = vmul.f32 %v3134, 0.044715
    %v3145 = vmul.f32 %v3136, 0.044715
    %v3146 = vmul.f32 %v3142, %v3128
    %v3147 = vmul.f32 %v3143, %v3130
    %v3148 = vmul.f32 %v3144, %v3134
    %v3149 = vmul.f32 %v3145, %v3136
    %v3150 = vmul.f32 %v3146, %v3128
    %v3151 = vmul.f32 %v3147, %v3130
    %v3152 = vmul.f32 %v3148, %v3134
    %v3153 = vmul.f32 %v3149, %v3136
    %v3154 = vadd.f32 %v3128, %v3150
    %v3155 = vadd.f32 %v3130, %v3151
    %v3156 = vadd.f32 %v3134, %v3152
    %v3157 = vadd.f32 %v3136, %v3153
    %v3158 = vmul.f32 %v3154, 0.7978846
    %v3159 = vmul.f32 %v3155, 0.7978846
    %v3160 = vmul.f32 %v3156, 0.7978846
    %v3161 = vmul.f32 %v3157, 0.7978846
    %v3162 = vtanh.pop %v3158
    %v3163 = vtanh.pop %v3159
    %v3164 = vtanh.pop %v3160
    %v3165 = vtanh.pop %v3161
    %v3166 = vadd.f32 %v3162, 1.0
    %v3167 = vadd.f32 %v3163, 1.0
    %v3168 = vadd.f32 %v3164, 1.0
    %v3169 = vadd.f32 %v3165, 1.0
    %v3170 = vmul.f32 %v3138, %v3166
    %v3171 = vmul.f32 %v3139, %v3167
    %v3172 = vmul.f32 %v3140, %v3168
    %v3173 = vmul.f32 %v3141, %v3169
    %v3174 = vld [vmem:[#allocation10] sm:$0xff]
    %v3175 = vld [vmem:[#allocation10 + $0x8] sm:$0xff]
    %v3176 = vld [vmem:[#allocation10 + $0x10] sm:$0xff]
    %v3177 = vld [vmem:[#allocation10 + $0x18] sm:$0xff]
    %v3178 = vld [vmem:[#allocation10 + $0x20] sm:$0xff]
    %v3179 = vld [vmem:[#allocation10 + $0x28] sm:$0xff]
    %v3180 = vld [vmem:[#allocation10 + $0x30] sm:$0xff]
    %v3181 = vld [vmem:[#allocation10 + $0x38] sm:$0xff]
    %v3182 = vld [vmem:[#allocation10 + $0x40] sm:$0xff]
    %v3183 = vld [vmem:[#allocation10 + $0x48] sm:$0xff]
    %v3184 = vld [vmem:[#allocation10 + $0x50] sm:$0xff]
    %v3185 = vld [vmem:[#allocation10 + $0x58] sm:$0xff]
    %v3186 = vld [vmem:[#allocation10 + $0x60] sm:$0xff]
    %v3187 = vld [vmem:[#allocation10 + $0x68] sm:$0xff]
    %v3188 = vld [vmem:[#allocation10 + $0x70] sm:$0xff]
    %v3189 = vld [vmem:[#allocation10 + $0x78] sm:$0xff]
    %v3190 = vld [vmem:[#allocation10 + $0x80] sm:$0xff]
    %v3191 = vld [vmem:[#allocation10 + $0x88] sm:$0xff]
    %v3192 = vld [vmem:[#allocation10 + $0x90] sm:$0xff]
    %v3193 = vld [vmem:[#allocation10 + $0x98] sm:$0xff]
    %v3194 = vld [vmem:[#allocation10 + $0xa0] sm:$0xff]
    %v3195 = vld [vmem:[#allocation10 + $0xa8] sm:$0xff]
    %v3196 = vld [vmem:[#allocation10 + $0xb0] sm:$0xff]
    %v3197 = vld [vmem:[#allocation10 + $0xb8] sm:$0xff]
    %v3198 = vld [vmem:[#allocation10 + $0xc0] sm:$0xff]
    %v3199 = vld [vmem:[#allocation10 + $0xc8] sm:$0xff]
    %v3200 = vld [vmem:[#allocation10 + $0xd0] sm:$0xff]
    %v3201 = vld [vmem:[#allocation10 + $0xd8] sm:$0xff]
    %v3202 = vld [vmem:[#allocation10 + $0xe0] sm:$0xff]
    %v3203 = vld [vmem:[#allocation10 + $0xe8] sm:$0xff]
    %v3204 = vld [vmem:[#allocation10 + $0xf0] sm:$0xff]
    %v3205 = vld [vmem:[#allocation10 + $0xf8] sm:$0xff]
    %v3206 = vld [vmem:[%s10] sm:$0x1]
    %v3208 = vlaneseq
    %v3209 = vshrl.u32 %v3208, 7
    %v3210 = vsub.s32 0, %v3209
    %v3211 = vrot.slane %v3206, %v3210
    %3213 = vmatprep.subr.mxu0 0.0
    %3214 = vmatpush1.msra.mxu0 %v3174
    %3215 = vmatprep.subr.mxu0 0.0
    %3216 = vmatpush1.msra.mxu0 %v3175
    %3217 = vmatprep.subr.mxu0 0.0
    %3218 = vmatpush1.msra.mxu0 %v3176
    %3219 = vmatprep.subr.mxu0 0.0
    %3220 = vmatpush1.msra.mxu0 %v3177
    %3221 = vmatprep.subr.mxu0 0.0
    %3222 = vmatpush1.msra.mxu0 %v3178
    %3223 = vmatprep.subr.mxu0 0.0
    %3224 = vmatpush1.msra.mxu0 %v3179
    %3225 = vmatprep.subr.mxu0 0.0
    %3226 = vmatpush1.msra.mxu0 %v3180
    %3227 = vmatprep.subr.mxu0 0.0
    %3228 = vmatpush1.msra.mxu0 %v3181
    %3229 = vmatprep.subr.mxu0 0.0
    %3230 = vmatpush1.msra.mxu0 %v3182
    %3231 = vmatprep.subr.mxu0 0.0
    %3232 = vmatpush1.msra.mxu0 %v3183
    %3233 = vmatprep.subr.mxu0 0.0
    %3234 = vmatpush1.msra.mxu0 %v3184
    %3235 = vmatprep.subr.mxu0 0.0
    %3236 = vmatpush1.msra.mxu0 %v3185
    %3237 = vmatprep.subr.mxu0 0.0
    %3238 = vmatpush1.msra.mxu0 %v3186
    %3239 = vmatprep.subr.mxu0 0.0
    %3240 = vmatpush1.msra.mxu0 %v3187
    %3241 = vmatprep.subr.mxu0 0.0
    %3242 = vmatpush1.msra.mxu0 %v3188
    %3243 = vmatprep.subr.mxu0 0.0
    %3244 = vmatpush1.msra.mxu0 %v3189
    %3245 = vmatprep.subr.mxu0 0.0
    %3246 = vmatpush1.msra.mxu0 %v3190
    %3247 = vmatprep.subr.mxu0 0.0
    %3248 = vmatpush1.msra.mxu0 %v3191
    %3249 = vmatprep.subr.mxu0 0.0
    %3250 = vmatpush1.msra.mxu0 %v3192
    %3251 = vmatprep.subr.mxu0 0.0
    %3252 = vmatpush1.msra.mxu0 %v3193
    %3253 = vmatprep.subr.mxu0 0.0
    %3254 = vmatpush1.msra.mxu0 %v3194
    %3255 = vmatprep.subr.mxu0 0.0
    %3256 = vmatpush1.msra.mxu0 %v3195
    %3257 = vmatprep.subr.mxu0 0.0
    %3258 = vmatpush1.msra.mxu0 %v3196
    %3259 = vmatprep.subr.mxu0 0.0
    %3260 = vmatpush1.msra.mxu0 %v3197
    %3261 = vmatprep.subr.mxu0 0.0
    %3262 = vmatpush1.msra.mxu0 %v3198
    %3263 = vmatprep.subr.mxu0 0.0
    %3264 = vmatpush1.msra.mxu0 %v3199
    %3265 = vmatprep.subr.mxu0 0.0
    %3266 = vmatpush1.msra.mxu0 %v3200
    %3267 = vmatprep.subr.mxu0 0.0
    %3268 = vmatpush1.msra.mxu0 %v3201
    %3269 = vmatprep.subr.mxu0 0.0
    %3270 = vmatpush1.msra.mxu0 %v3202
    %3271 = vmatprep.subr.mxu0 0.0
    %3272 = vmatpush1.msra.mxu0 %v3203
    %3273 = vmatprep.subr.mxu0 0.0
    %3274 = vmatpush1.msra.mxu0 %v3204
    %3275 = vmatprep.subr.mxu0 0.0
    %3276 = vmatpush1.msra.mxu0 %v3205
    %3277 = vmatprep.mubr.f32.mxu0 %v3171
    %3278 = vmatmul.mubr.f32.gmra.mrb[0].mxu0 %v3170
    %v3279 = vpop.f32.mrb[0].mxu0
    %v3280 = vadd.f32 %v3211, %v3279
    %v3281 = vpop.f32.mrb[0].mxu0
    %3282 = vmatprep.mubr.f32.mxu0 %v3173
    %3283 = vmatmul.mubr.f32.gmra.mrb[0].mxu0 %v3172
    %v3284 = vpop.f32.mrb[0].mxu0
    %v3285 = vadd.f32 %v3211, %v3284
    %v3286 = vpop.f32.mrb[0].mxu0
    %3287 = vdwg.mxu0
    %v3288 = vadd.f32 %v2975, %v3280
    %v3289 = vadd.f32 %v2976, %v3285
    %3290 = vst [vmem:[#allocation11] sm:$0xff] %v3288
    %3291 = vst [vmem:[#allocation11 + $0x8] sm:$0xff] %v3289
    // Predicated region
    $region66: #{tpu_custom_call.1} parent=1 // pred_check
      _
    $region67: #{tpu_custom_call.1} parent=1 // pred_check_branch
      %3293 = sbr.rel (0) target = $region69
    $region68: #{tpu_custom_call.1} parent=1 // pred_region
      %s3295 = ssub.s32 256, 256
      %3296 = vsyncadd [#allocation4], %s3295
      %s3297 = sshll.u32 [#allocation11], 4
      %s3298 = int_to_ptr.vmem [resolvable:$true] %s3297
      %3303 = dma.vmem_to_hbm [thread:$0]  %s3298, 256, %s11, [#allocation4], 128, 128, 8
    $region69: #{tpu_custom_call.1} parent=1 // pred_fallthru
      _
    // Predicated region
    $region70: #{tpu_custom_call.1} parent=1 // pred_check
      _
    $region71: #{tpu_custom_call.1} parent=1 // pred_check_branch
      %3305 = sbr.rel (0) target = $region73
    $region72: #{tpu_custom_call.1} parent=1 // pred_region
      %3306 = dma.done [#allocation4], 256
    $region73: #{tpu_custom_call.1} parent=1 // pred_fallthru
      _
    %3307 = vsyncpa [#allocation3], 1
    %3308 = vsyncpa [#allocation6], 1
    %3309 = vsyncpa [#allocation9], 1
    %3310 = vsyncpa [#allocation4], 1

</llo_original>
